<compile_context>
chip_gen: v7x
topology: tpu7x:2x2x1
jax: 0.10.0
libtpu: 0.0.40
codegen_flags: <defaults>
</compile_context>

<pallas_src>
import functools

import jax
import jax.numpy as jnp
import numpy as np
from jax import lax
from jax.experimental import pallas as pl
from jax.experimental.pallas import tpu as pltpu


# ----------------------------------------------------------------------------
# Fused kernel: one grid step == BB batch elements.
# ----------------------------------------------------------------------------
def _astgcn_block_kernel(x2_ref, xft_ref,
                         u1k_ref, u2_ref, s3u_ref, be_ref, ve_ref,
                         w1_ref, w2rep_ref, erep_ref, s3w_ref, bs_ref, vs_ref,
                         cheb_ref, wcheb_ref, wtime_ref, bt_ref,
                         wres_ref, br_ref, aavg_ref, gamma_ref, beta_ref,
                         out_ref, *, K, BB, N, T, Fc):
    f32 = jnp.float32
    bf16 = jnp.bfloat16

    x2 = x2_ref[...]                                   # (BB*N, T*F) f32, [t][f] lanes

    # Batch-independent input projections, M = BB*N (structured weights).
    rhs_all = jnp.dot(x2, s3u_ref[...], preferred_element_type=f32)    # (BB*N, T)  U3.x
    w3p_all = jnp.dot(x2, s3w_ref[...], preferred_element_type=f32)    # (BB*N, T)  W3.x

    u2 = u2_ref[...]
    be = be_ref[...]
    ve = ve_ref[...]
    w1 = w1_ref[...]
    bs = bs_ref[...]
    vs = vs_ref[...]
    erep = erep_ref[...]
    w2rep = w2rep_ref[...]
    u1k = u1k_ref[...]

    # ---------------- per-batch temporal + spatial attention (unrolled) -----
    sats = []
    for b in range(BB):
        lo = b * N
        xb2 = x2[lo:lo + N, :]                         # (N, T*F)
        rhsT = rhs_all[lo:lo + N, :]                   # (N, T)
        w3p = w3p_all[lo:lo + N, :]                    # (N, T)

        # --- temporal attention (softmax over axis 0) ---
        vmatT = jnp.dot(xft_ref[b], u1k, preferred_element_type=f32)    # (F, T)  U1.x
        g = jnp.dot(u2, rhsT, preferred_element_type=f32)               # (F, T)
        prodT = lax.dot_general(vmatT, g, (((0,), (0,)), ((), ())),
                                preferred_element_type=f32)             # (T, T)
        e = jnp.dot(ve, jax.nn.sigmoid(prodT + be), preferred_element_type=f32)
        e = e - jnp.max(e, axis=0, keepdims=True)
        pe = jnp.exp(e)
        tat = pe * pl.reciprocal(jnp.sum(pe, axis=0, keepdims=True), approx=True)

        # --- spatial attention (x_tat folded through tat, never materialized) ---
        w1row = lax.dot_general(w1, tat, (((1,), (1,)), ((), ())),
                                preferred_element_type=f32)             # (1, T)
        w1lane = jnp.dot(w1row, erep, preferred_element_type=f32)       # (1, T*F)
        lhsS = jnp.dot(xb2 * w1lane, w2rep, preferred_element_type=f32)  # (N, T)
        rhsS = jnp.dot(w3p, tat, preferred_element_type=f32)            # (N, T)
        prodS = lax.dot_general(lhsS, rhsS, (((1,), (1,)), ((), ())),
                                preferred_element_type=f32)             # (N, N)
        s = jnp.dot(vs, jax.nn.sigmoid(prodS + bs), preferred_element_type=f32)
        s = s - jnp.max(s, axis=0, keepdims=True)
        ps = jnp.exp(s)
        sats.append(ps * pl.reciprocal(jnp.sum(ps, axis=0, keepdims=True),
                                       approx=True))                    # (N, N)

    # ---------------- K-order Chebyshev graph conv with SAt -----------------
    # Per-k rows of all BB batches stacked along sublanes -> one M=BB*N GEMM
    # per k, accumulated into gcn (no K-way lane concatenate).
    gcn = jnp.zeros((BB * N, T * Fc), f32)
    for k in range(K):
        rows = [lax.dot_general(cheb_ref[k] * sats[b], x2[b * N:(b + 1) * N, :],
                                (((0,), (0,)), ((), ())),
                                preferred_element_type=f32)
                for b in range(BB)]
        r_k = rows[0] if BB == 1 else jnp.concatenate(rows, axis=0)     # (BB*N, T*F)
        gcn = gcn + jnp.dot(r_k.astype(bf16), wcheb_ref[k],
                            preferred_element_type=f32)                 # (BB*N, T*Fc)
    gcn = jnp.maximum(gcn, 0.0)

    # ---------------- (1,3) time conv + 1x1 residual conv + ReLU ------------
    conv = jnp.dot(gcn.astype(bf16), wtime_ref[...],
                   preferred_element_type=f32) + bt_ref[...]            # (BB*N, T*Ft)
    res = jnp.dot(x2.astype(bf16), wres_ref[...],
                  preferred_element_type=f32) + br_ref[...]             # (BB*N, T*Ft)
    h = jnp.maximum(conv + res, 0.0)

    # ---------------- LayerNorm per (n, t) Ft-group via block-diag averaging -
    aavg = aavg_ref[...]                                                # (T*Ft, T*Ft) f32
    mean = jnp.dot(h, aavg, preferred_element_type=f32)
    m2 = jnp.dot(h * h, aavg, preferred_element_type=f32)
    inv = lax.rsqrt(m2 - mean * mean + 1e-5)
    out_ref[...] = (h - mean) * inv * gamma_ref[...] + beta_ref[...]    # lane-dense store


# ----------------------------------------------------------------------------
# Wrapper: structured-weight preprocessing + one pallas_call.
# ----------------------------------------------------------------------------
def astgcn_block_forward(x, params, *, batches_per_step=None):
    B, N, F_in, T = x.shape
    K, _, Fc = params["theta"].shape
    Ft = params["wt"].shape[2]
    f32 = jnp.float32
    bf16 = jnp.bfloat16

    # Batches per grid step: default keeps two grid steps (both v7x TCs busy
    # under the "parallel" grid axis); on v5e/v6e they just amortize overhead.
    if batches_per_step is None:
        batches_per_step = B if B < 2 else (B + 1) // 2
    BB = batches_per_step
    assert B % BB == 0, (B, BB)
    steps = B // BB

    eyeT = jnp.eye(T, dtype=f32)

    # --- structured matrices for the attention prologue (from lane-major x2) -
    s3u = jnp.kron(eyeT, params["u3"].reshape(F_in, 1))     # (T*F, T): u3[f]*d(t,t')
    s3w = jnp.kron(eyeT, params["w3"].reshape(F_in, 1))     # (T*F, T): w3[f]*d(t,t')
    u1k = jnp.kron(params["u1"].reshape(N, 1), eyeT)        # (N*T, T): u1[n]*d(t,t')
    erep = jnp.kron(eyeT, jnp.ones((1, F_in), f32))         # (T, T*F): d(t,t')
    w2rep = jnp.tile(params["w2"], (T, 1))                  # (T*F, T): w2[f, t']

    # --- block-structured weights (bf16 MXU operands, f32 accumulation) ------
    # Wcheb[k, t*F+f, t*Fc+o] = theta[k, f, o]
    wcheb = jnp.stack([jnp.kron(eyeT, params["theta"][k])
                       for k in range(K)]).astype(bf16)
    # Wtime[t*Fc+c, t'*Ft+o] = wt[t - t' + 1, c, o]   (banded (1,3) conv, pad 1)
    wt = params["wt"]
    wtime = sum(jnp.eye(T, T, k=1 - d, dtype=f32)[:, None, :, None] *
                wt[d][None, :, None, :]
                for d in range(3)).reshape(T * Fc, T * Ft).astype(bf16)
    # Wres[t*F+f, t*Ft+o] = wr[f, o]   (block-diagonal 1x1 conv)
    wres = jnp.kron(eyeT, params["wr"]).astype(bf16)
    bt_t = jnp.tile(params["bt"], (1, T))                   # (1, T*Ft)
    br_t = jnp.tile(params["br"], (1, T))
    # LayerNorm block-diagonal averaging matrix (kept f32 for parity)
    aavg = jnp.kron(eyeT, jnp.full((Ft, Ft), 1.0 / Ft, f32))  # (T*Ft, T*Ft)
    gamma_t = jnp.tile(params["gamma"], (1, T))
    beta_t = jnp.tile(params["beta"], (1, T))

    # --- activations: lane-major x2 + tiny F-major copy for the U1 projection
    x2 = jnp.transpose(x, (0, 1, 3, 2)).reshape(B * N, T * F_in)   # [b*N+n, t*F+f]
    xft = jnp.transpose(x, (0, 2, 1, 3)).reshape(B, F_in, N * T)   # [b, f, n*T+t]

    def rep(shape):
        nd = len(shape)
        return pl.BlockSpec(shape, lambda i, _nd=nd: (0,) * _nd)

    # NOTE(vmem): at these shapes the resident weights (~1 MiB) are irrelevant;
    # at production graph sizes (N ~ 300-2000, more batches/step) re-derive the
    # budget against v7x's 64 MiB and set vmem_limit_bytes / pl.Buffered(1) on
    # the replicated (N,N)/cheb/aavg specs (their index maps are constant).
    out_flat = pl.pallas_call(
        functools.partial(_astgcn_block_kernel, K=K, BB=BB, N=N, T=T, Fc=Fc),
        out_shape=jax.ShapeDtypeStruct((B * N, T * Ft), f32),
        grid=(steps,),
        in_specs=[
            pl.BlockSpec((BB * N, T * F_in), lambda i: (i, 0)),
            pl.BlockSpec((BB, F_in, N * T), lambda i: (i, 0, 0)),
            rep((N * T, T)),            # u1k
            rep((F_in, N)),             # u2
            rep((T * F_in, T)),         # s3u
            rep((T, T)),                # be
            rep((T, T)),                # ve
            rep((1, T)),                # w1
            rep((T * F_in, T)),         # w2rep
            rep((T, T * F_in)),         # erep
            rep((T * F_in, T)),         # s3w
            rep((N, N)),                # bs
            rep((N, N)),                # vs
            rep((K, N, N)),             # cheb
            rep((K, T * F_in, T * Fc)),  # wcheb (bf16)
            rep((T * Fc, T * Ft)),      # wtime (bf16)
            rep((1, T * Ft)),           # bt
            rep((T * F_in, T * Ft)),    # wres (bf16)
            rep((1, T * Ft)),           # br
            rep((T * Ft, T * Ft)),      # aavg
            rep((1, T * Ft)),           # gamma
            rep((1, T * Ft)),           # beta
        ],
        out_specs=pl.BlockSpec((BB * N, T * Ft), lambda i: (i, 0)),
        compiler_params=pltpu.CompilerParams(dimension_semantics=("parallel",)),
    )(x2, xft,
      u1k, params["u2"], s3u, params["be"], params["ve"],
      params["w1"], w2rep, erep, s3w, params["bs"], params["vs"],
      params["cheb"], wcheb, wtime, bt_t, wres, br_t,
      aavg, gamma_t, beta_t)

    # back to the PyTorch output layout (B, N, nb_time_filter, T)
    return jnp.transpose(out_flat.reshape(B, N, T, Ft), (0, 1, 3, 2))


# ----------------------------------------------------------------------------
# Deterministic parameter init (shapes from the module __init__)
# ----------------------------------------------------------------------------
def init_params(key, N, F_in, T, K, Fc, Ft):
    keys = jax.random.split(key, 16)
    s = 0.1
    p = {
        # TemporalAttentionLayer
        "u1": jax.random.normal(keys[0], (N, 1), jnp.float32) * s,
        "u2": jax.random.normal(keys[1], (F_in, N), jnp.float32) * s,
        "u3": jax.random.normal(keys[2], (1, F_in), jnp.float32) * s,
        "be": jax.random.normal(keys[3], (T, T), jnp.float32) * s,
        "ve": jax.random.normal(keys[4], (T, T), jnp.float32) * s,
        # SpatialAttentionLayer
        "w1": jax.random.normal(keys[5], (1, T), jnp.float32) * s,
        "w2": jax.random.normal(keys[6], (F_in, T), jnp.float32) * s,
        "w3": jax.random.normal(keys[7], (1, F_in), jnp.float32) * s,
        "bs": jax.random.normal(keys[8], (N, N), jnp.float32) * s,
        "vs": jax.random.normal(keys[9], (N, N), jnp.float32) * s,
        # ChebConvWithSAt Theta (K, F_in, Fc)
        "theta": jax.random.normal(keys[11], (K, F_in, Fc), jnp.float32) * s,
        # time_conv: weight (Ft, Fc, 1, 3) stored as (3, Fc, Ft); bias (Ft,)
        "wt": jax.random.normal(keys[12], (3, Fc, Ft), jnp.float32) * s,
        "bt": jax.random.normal(keys[13], (1, Ft), jnp.float32) * s,
        # residual_conv: weight (Ft, F_in, 1, 1) stored as (F_in, Ft); bias (Ft,)
        "wr": jax.random.normal(keys[14], (F_in, Ft), jnp.float32) * s,
        "br": jax.random.normal(keys[15], (1, Ft), jnp.float32) * s,
        # LayerNorm(nb_time_filter)
        "gamma": jnp.ones((1, Ft), jnp.float32),
        "beta": jnp.zeros((1, Ft), jnp.float32),
    }
    # Chebyshev polynomials of a random scaled Laplacian, stacked (K, N, N)
    adj = jax.random.uniform(keys[10], (N, N), jnp.float32)
    adj = (adj + adj.T) / 2.0
    eye = jnp.eye(N, dtype=jnp.float32)
    deg = jnp.sum(adj, axis=1)
    lap = jnp.diag(deg) - adj
    l_tilde = (2.0 / (jnp.max(deg) + 1e-6)) * lap - eye
    chebs = [eye]
    if K > 1:
        chebs.append(l_tilde)
    for _ in range(2, K):
        chebs.append(2.0 * l_tilde @ chebs[-1] - chebs[-2])
    p["cheb"] = jnp.stack(chebs[:K])
    return p


# ----------------------------------------------------------------------------
# Pure-JAX reference (follows the PyTorch code, torch layouts) for validation
# ----------------------------------------------------------------------------
def reference_forward(x, p):
    B, N, F_in, T = x.shape
    K, _, Fc = p["theta"].shape
    Ft = p["wt"].shape[2]
    # temporal attention
    lhs = jnp.einsum("bnft,n->btf", x, p["u1"][:, 0])
    lhs = jnp.einsum("btf,fn->btn", lhs, p["u2"])
    rhs = jnp.einsum("f,bnft->bnt", p["u3"][0], x)
    prod = jnp.einsum("btn,bns->bts", lhs, rhs)
    e = jnp.einsum("tu,bus->bts", p["ve"], jax.nn.sigmoid(prod + p["be"][None]))
    tat = jax.nn.softmax(e, axis=1)
    x_tat = jnp.einsum("bmt,bts->bms", x.reshape(B, N * F_in, T),
                       tat).reshape(B, N, F_in, T)
    # spatial attention
    lhs = jnp.einsum("bnft,t->bnf", x_tat, p["w1"][0])
    lhs = jnp.einsum("bnf,ft->bnt", lhs, p["w2"])
    rhs = jnp.einsum("f,bnft->bnt", p["w3"][0], x_tat)
    prod = jnp.einsum("bnt,bmt->bnm", lhs, rhs)
    s = jnp.einsum("nm,bmk->bnk", p["vs"], jax.nn.sigmoid(prod + p["bs"][None]))
    sat = jax.nn.softmax(s, axis=1)
    # cheb conv with SAt (uses x, not x_tat)
    out = jnp.zeros((B, N, Fc, T), jnp.float32)
    for k in range(K):
        a_k = p["cheb"][k][None] * sat                      # (B, N, N)
        rhs_k = jnp.einsum("bmn,bmft->bnft", a_k, x)        # (T_k * S)^T @ x
        out = out + jnp.einsum("bnft,fo->bnot", rhs_k, p["theta"][k])
    gcn = jax.nn.relu(out)                                  # (B, N, Fc, T)
    # time conv: kernel (1,3), pad (0,1), stride 1
    gp = jnp.pad(gcn, ((0, 0), (0, 0), (0, 0), (1, 1)))
    conv = (jnp.einsum("bnct,co->bnot", gp[..., 0:T], p["wt"][0])
            + jnp.einsum("bnct,co->bnot", gp[..., 1:T + 1], p["wt"][1])
            + jnp.einsum("bnct,co->bnot", gp[..., 2:T + 2], p["wt"][2])
            + p["bt"][0][None, None, :, None])
    res = jnp.einsum("bnft,fo->bnot", x, p["wr"]) + p["br"][0][None, None, :, None]
    h = jax.nn.relu(conv + res)                             # (B, N, Ft, T)
    mean = jnp.mean(h, axis=2, keepdims=True)
    var = jnp.mean((h - mean) ** 2, axis=2, keepdims=True)
    hn = (h - mean) / jnp.sqrt(var + 1e-5)
    return hn * p["gamma"][0][None, None, :, None] + p["beta"][0][None, None, :, None]


# ----------------------------------------------------------------------------
if __name__ == "__main__":
    B, N, F_in, T = 4, 16, 4, 8
    K, Fc, Ft = 3, 32, 32       # nb_chev_filter, nb_time_filter (time_strides = 1)

    root = jax.random.PRNGKey(0)
    kx, kp = jax.random.split(root)
    x = jax.random.normal(kx, (B, N, F_in, T), jnp.float32)
    params = init_params(kp, N, F_in, T, K, Fc, Ft)

    fwd = jax.jit(functools.partial(astgcn_block_forward, batches_per_step=2))
    out = jax.block_until_ready(fwd(x, params))
    assert out.shape == (B, N, Ft, T), out.shape

    with jax.default_matmul_precision("highest"):
        ref = reference_forward(x, params)
    ref = jax.block_until_ready(ref)

    # bf16 MXU operands on the three structured weight GEMMs and the approx
    # EUP softmax reciprocal trade exact f32 parity for fewer MXU passes;
    # 2e-2 bound (drop the .astype(bf16) casts / approx=True for f32 parity).
    err = float(np.max(np.abs(np.asarray(out) - np.asarray(ref))))
    if not np.allclose(np.asarray(out), np.asarray(ref), rtol=2e-2, atol=2e-2):
        raise AssertionError(f"Pallas vs reference mismatch, max abs err = {err}")
    print("KERNEL_OK")
</pallas_src>

<mosaic_0001>
module attributes {stable_mosaic.version = 11 : i64} {
  func.func @_astgcn_block_kernel(%arg0: i32, %arg1: memref<32x32xf32, #tpu.memory_space<vmem>>, %arg2: memref<2x4x128xf32, #tpu.memory_space<vmem>>, %arg3: memref<128x8xf32, #tpu.memory_space<vmem>>, %arg4: memref<4x16xf32, #tpu.memory_space<vmem>>, %arg5: memref<32x8xf32, #tpu.memory_space<vmem>>, %arg6: memref<8x8xf32, #tpu.memory_space<vmem>>, %arg7: memref<8x8xf32, #tpu.memory_space<vmem>>, %arg8: memref<1x8xf32, #tpu.memory_space<vmem>>, %arg9: memref<32x8xf32, #tpu.memory_space<vmem>>, %arg10: memref<8x32xf32, #tpu.memory_space<vmem>>, %arg11: memref<32x8xf32, #tpu.memory_space<vmem>>, %arg12: memref<16x16xf32, #tpu.memory_space<vmem>>, %arg13: memref<16x16xf32, #tpu.memory_space<vmem>>, %arg14: memref<3x16x16xf32, #tpu.memory_space<vmem>>, %arg15: memref<3x32x256xbf16, #tpu.memory_space<vmem>>, %arg16: memref<256x256xbf16, #tpu.memory_space<vmem>>, %arg17: memref<1x256xf32, #tpu.memory_space<vmem>>, %arg18: memref<32x256xbf16, #tpu.memory_space<vmem>>, %arg19: memref<1x256xf32, #tpu.memory_space<vmem>>, %arg20: memref<256x256xf32, #tpu.memory_space<vmem>>, %arg21: memref<1x256xf32, #tpu.memory_space<vmem>>, %arg22: memref<1x256xf32, #tpu.memory_space<vmem>>, %arg23: memref<32x256xf32, #tpu.memory_space<vmem>>) attributes {dimension_semantics = [#tpu.dimension_semantics<parallel>], iteration_bounds = array<i64: 2>, scalar_prefetch = 0 : i64, scratch_operands = 0 : i64, tpu.core_type = #tpu.core_type<tc>, window_params = [{transform_indices = @transform_0, window_bounds = array<i64: 32, 32>}, {transform_indices = @transform_1, window_bounds = array<i64: 2, 4, 128>}, {pipeline_mode = #tpu.pipeline_mode<synchronous>, transform_indices = @transform_2, window_bounds = array<i64: 128, 8>}, {pipeline_mode = #tpu.pipeline_mode<synchronous>, transform_indices = @transform_3, window_bounds = array<i64: 4, 16>}, {pipeline_mode = #tpu.pipeline_mode<synchronous>, transform_indices = @transform_4, window_bounds = array<i64: 32, 8>}, {pipeline_mode = #tpu.pipeline_mode<synchronous>, transform_indices = @transform_5, window_bounds = array<i64: 8, 8>}, {pipeline_mode = #tpu.pipeline_mode<synchronous>, transform_indices = @transform_6, window_bounds = array<i64: 8, 8>}, {pipeline_mode = #tpu.pipeline_mode<synchronous>, transform_indices = @transform_7, window_bounds = array<i64: 1, 8>}, {pipeline_mode = #tpu.pipeline_mode<synchronous>, transform_indices = @transform_8, window_bounds = array<i64: 32, 8>}, {pipeline_mode = #tpu.pipeline_mode<synchronous>, transform_indices = @transform_9, window_bounds = array<i64: 8, 32>}, {pipeline_mode = #tpu.pipeline_mode<synchronous>, transform_indices = @transform_10, window_bounds = array<i64: 32, 8>}, {pipeline_mode = #tpu.pipeline_mode<synchronous>, transform_indices = @transform_11, window_bounds = array<i64: 16, 16>}, {pipeline_mode = #tpu.pipeline_mode<synchronous>, transform_indices = @transform_12, window_bounds = array<i64: 16, 16>}, {pipeline_mode = #tpu.pipeline_mode<synchronous>, transform_indices = @transform_13, window_bounds = array<i64: 3, 16, 16>}, {pipeline_mode = #tpu.pipeline_mode<synchronous>, transform_indices = @transform_14, window_bounds = array<i64: 3, 32, 256>}, {pipeline_mode = #tpu.pipeline_mode<synchronous>, transform_indices = @transform_15, window_bounds = array<i64: 256, 256>}, {pipeline_mode = #tpu.pipeline_mode<synchronous>, transform_indices = @transform_16, window_bounds = array<i64: 1, 256>}, {pipeline_mode = #tpu.pipeline_mode<synchronous>, transform_indices = @transform_17, window_bounds = array<i64: 32, 256>}, {pipeline_mode = #tpu.pipeline_mode<synchronous>, transform_indices = @transform_18, window_bounds = array<i64: 1, 256>}, {pipeline_mode = #tpu.pipeline_mode<synchronous>, transform_indices = @transform_19, window_bounds = array<i64: 256, 256>}, {pipeline_mode = #tpu.pipeline_mode<synchronous>, transform_indices = @transform_20, window_bounds = array<i64: 1, 256>}, {pipeline_mode = #tpu.pipeline_mode<synchronous>, transform_indices = @transform_21, window_bounds = array<i64: 1, 256>}, {transform_indices = @transform_22, window_bounds = array<i64: 32, 256>}]} {
    %c0 = arith.constant 0 : index
    %c0_0 = arith.constant 0 : index
    %0 = vector.load %arg1[%c0, %c0_0] : memref<32x32xf32, #tpu.memory_space<vmem>>, vector<32x32xf32>
    %c0_1 = arith.constant 0 : index
    %c0_2 = arith.constant 0 : index
    %1 = vector.load %arg5[%c0_1, %c0_2] : memref<32x8xf32, #tpu.memory_space<vmem>>, vector<32x8xf32>
    %cst = arith.constant dense<0.000000e+00> : vector<32x8xf32>
    %2 = tpu.matmul %0, %1, %cst {dimension_numbers = #tpu.dot_dimension_numbers<[1], [0], [0], [1], [0, 0, 1, 1], [], []>} : vector<32x32xf32>, vector<32x8xf32>, vector<32x8xf32> -> vector<32x8xf32>
    %c0_3 = arith.constant 0 : index
    %c0_4 = arith.constant 0 : index
    %3 = vector.load %arg11[%c0_3, %c0_4] : memref<32x8xf32, #tpu.memory_space<vmem>>, vector<32x8xf32>
    %cst_5 = arith.constant dense<0.000000e+00> : vector<32x8xf32>
    %4 = tpu.matmul %0, %3, %cst_5 {dimension_numbers = #tpu.dot_dimension_numbers<[1], [0], [0], [1], [0, 0, 1, 1], [], []>} : vector<32x32xf32>, vector<32x8xf32>, vector<32x8xf32> -> vector<32x8xf32>
    %c0_6 = arith.constant 0 : index
    %c0_7 = arith.constant 0 : index
    %5 = vector.load %arg4[%c0_6, %c0_7] : memref<4x16xf32, #tpu.memory_space<vmem>>, vector<4x16xf32>
    %c0_8 = arith.constant 0 : index
    %c0_9 = arith.constant 0 : index
    %6 = vector.load %arg6[%c0_8, %c0_9] : memref<8x8xf32, #tpu.memory_space<vmem>>, vector<8x8xf32>
    %c0_10 = arith.constant 0 : index
    %c0_11 = arith.constant 0 : index
    %7 = vector.load %arg7[%c0_10, %c0_11] : memref<8x8xf32, #tpu.memory_space<vmem>>, vector<8x8xf32>
    %c0_12 = arith.constant 0 : index
    %c0_13 = arith.constant 0 : index
    %8 = vector.load %arg8[%c0_12, %c0_13] : memref<1x8xf32, #tpu.memory_space<vmem>>, vector<1x8xf32>
    %c0_14 = arith.constant 0 : index
    %c0_15 = arith.constant 0 : index
    %9 = vector.load %arg12[%c0_14, %c0_15] : memref<16x16xf32, #tpu.memory_space<vmem>>, vector<16x16xf32>
    %c0_16 = arith.constant 0 : index
    %c0_17 = arith.constant 0 : index
    %10 = vector.load %arg13[%c0_16, %c0_17] : memref<16x16xf32, #tpu.memory_space<vmem>>, vector<16x16xf32>
    %c0_18 = arith.constant 0 : index
    %c0_19 = arith.constant 0 : index
    %11 = vector.load %arg10[%c0_18, %c0_19] : memref<8x32xf32, #tpu.memory_space<vmem>>, vector<8x32xf32>
    %c0_20 = arith.constant 0 : index
    %c0_21 = arith.constant 0 : index
    %12 = vector.load %arg9[%c0_20, %c0_21] : memref<32x8xf32, #tpu.memory_space<vmem>>, vector<32x8xf32>
    %c0_22 = arith.constant 0 : index
    %c0_23 = arith.constant 0 : index
    %13 = vector.load %arg3[%c0_22, %c0_23] : memref<128x8xf32, #tpu.memory_space<vmem>>, vector<128x8xf32>
    %14 = vector.extract_strided_slice %0 {offsets = [0, 0], sizes = [16, 32], strides = [1, 1]} : vector<32x32xf32> to vector<16x32xf32>
    %15 = vector.extract_strided_slice %2 {offsets = [0, 0], sizes = [16, 8], strides = [1, 1]} : vector<32x8xf32> to vector<16x8xf32>
    %16 = vector.extract_strided_slice %4 {offsets = [0, 0], sizes = [16, 8], strides = [1, 1]} : vector<32x8xf32> to vector<16x8xf32>
    %c0_24 = arith.constant 0 : index
    %c0_25 = arith.constant 0 : index
    %c0_26 = arith.constant 0 : index
    %17 = vector.load %arg2[%c0_24, %c0_25, %c0_26] : memref<2x4x128xf32, #tpu.memory_space<vmem>>, vector<1x4x128xf32>
    %18 = vector.shape_cast %17 : vector<1x4x128xf32> to vector<4x128xf32>
    %cst_27 = arith.constant dense<0.000000e+00> : vector<4x8xf32>
    %19 = tpu.matmul %18, %13, %cst_27 {dimension_numbers = #tpu.dot_dimension_numbers<[1], [0], [0], [1], [0, 0, 1, 1], [], []>} : vector<4x128xf32>, vector<128x8xf32>, vector<4x8xf32> -> vector<4x8xf32>
    %cst_28 = arith.constant dense<0.000000e+00> : vector<4x8xf32>
    %20 = tpu.matmul %5, %15, %cst_28 {dimension_numbers = #tpu.dot_dimension_numbers<[1], [0], [0], [1], [0, 0, 1, 1], [], []>} : vector<4x16xf32>, vector<16x8xf32>, vector<4x8xf32> -> vector<4x8xf32>
    %cst_29 = arith.constant dense<0.000000e+00> : vector<8x8xf32>
    %21 = tpu.matmul %19, %20, %cst_29 {dimension_numbers = #tpu.dot_dimension_numbers<[0], [0], [1], [1], [0, 1, 1, 1], [], []>} : vector<4x8xf32>, vector<4x8xf32>, vector<8x8xf32> -> vector<8x8xf32>
    %22 = arith.addf %21, %6 : vector<8x8xf32>
    %23 = arith.negf %22 : vector<8x8xf32>
    %24 = math.exp %23 : vector<8x8xf32>
    %cst_30 = arith.constant 1.000000e+00 : f32
    %25 = vector.broadcast %cst_30 : f32 to vector<8x8xf32>
    %26 = arith.addf %25, %24 : vector<8x8xf32>
    %27 = arith.divf %25, %26 : vector<8x8xf32>
    %cst_31 = arith.constant dense<0.000000e+00> : vector<8x8xf32>
    %28 = tpu.matmul %7, %27, %cst_31 {dimension_numbers = #tpu.dot_dimension_numbers<[1], [0], [0], [1], [0, 0, 1, 1], [], []>} : vector<8x8xf32>, vector<8x8xf32>, vector<8x8xf32> -> vector<8x8xf32>
    %cst_32 = arith.constant dense<0xFF800000> : vector<8xf32>
    %29 = vector.multi_reduction <maximumf>, %28, %cst_32 [0] : vector<8x8xf32> to vector<8xf32>
    %30 = vector.shape_cast %29 : vector<8xf32> to vector<1x8xf32>
    %31 = vector.broadcast %30 : vector<1x8xf32> to vector<8x8xf32>
    %32 = arith.subf %28, %31 : vector<8x8xf32>
    %33 = math.exp %32 : vector<8x8xf32>
    %cst_33 = arith.constant dense<0.000000e+00> : vector<8xf32>
    %34 = vector.multi_reduction <add>, %33, %cst_33 [0] : vector<8x8xf32> to vector<8xf32>
    %35 = vector.shape_cast %34 : vector<8xf32> to vector<1x8xf32>
    %36 = tpu.reciprocal %35 {approx = true} : vector<1x8xf32> -> vector<1x8xf32>
    %37 = vector.broadcast %36 : vector<1x8xf32> to vector<8x8xf32>
    %38 = arith.mulf %33, %37 : vector<8x8xf32>
    %cst_34 = arith.constant dense<0.000000e+00> : vector<1x8xf32>
    %39 = tpu.matmul %8, %38, %cst_34 {dimension_numbers = #tpu.dot_dimension_numbers<[1], [1], [0], [0], [0, 0, 1, 0], [], []>} : vector<1x8xf32>, vector<8x8xf32>, vector<1x8xf32> -> vector<1x8xf32>
    %cst_35 = arith.constant dense<0.000000e+00> : vector<1x32xf32>
    %40 = tpu.matmul %39, %11, %cst_35 {dimension_numbers = #tpu.dot_dimension_numbers<[1], [0], [0], [1], [0, 0, 1, 1], [], []>} : vector<1x8xf32>, vector<8x32xf32>, vector<1x32xf32> -> vector<1x32xf32>
    %41 = vector.broadcast %40 : vector<1x32xf32> to vector<16x32xf32>
    %42 = arith.mulf %14, %41 : vector<16x32xf32>
    %cst_36 = arith.constant dense<0.000000e+00> : vector<16x8xf32>
    %43 = tpu.matmul %42, %12, %cst_36 {dimension_numbers = #tpu.dot_dimension_numbers<[1], [0], [0], [1], [0, 0, 1, 1], [], []>} : vector<16x32xf32>, vector<32x8xf32>, vector<16x8xf32> -> vector<16x8xf32>
    %cst_37 = arith.constant dense<0.000000e+00> : vector<16x8xf32>
    %44 = tpu.matmul %16, %38, %cst_37 {dimension_numbers = #tpu.dot_dimension_numbers<[1], [0], [0], [1], [0, 0, 1, 1], [], []>} : vector<16x8xf32>, vector<8x8xf32>, vector<16x8xf32> -> vector<16x8xf32>
    %cst_38 = arith.constant dense<0.000000e+00> : vector<16x16xf32>
    %45 = tpu.matmul %43, %44, %cst_38 {dimension_numbers = #tpu.dot_dimension_numbers<[1], [1], [0], [0], [0, 0, 1, 0], [], []>} : vector<16x8xf32>, vector<16x8xf32>, vector<16x16xf32> -> vector<16x16xf32>
    %46 = arith.addf %45, %9 : vector<16x16xf32>
    %47 = arith.negf %46 : vector<16x16xf32>
    %48 = math.exp %47 : vector<16x16xf32>
    %cst_39 = arith.constant 1.000000e+00 : f32
    %49 = vector.broadcast %cst_39 : f32 to vector<16x16xf32>
    %50 = arith.addf %49, %48 : vector<16x16xf32>
    %51 = arith.divf %49, %50 : vector<16x16xf32>
    %cst_40 = arith.constant dense<0.000000e+00> : vector<16x16xf32>
    %52 = tpu.matmul %10, %51, %cst_40 {dimension_numbers = #tpu.dot_dimension_numbers<[1], [0], [0], [1], [0, 0, 1, 1], [], []>} : vector<16x16xf32>, vector<16x16xf32>, vector<16x16xf32> -> vector<16x16xf32>
    %cst_41 = arith.constant dense<0xFF800000> : vector<16xf32>
    %53 = vector.multi_reduction <maximumf>, %52, %cst_41 [0] : vector<16x16xf32> to vector<16xf32>
    %54 = vector.shape_cast %53 : vector<16xf32> to vector<1x16xf32>
    %55 = vector.broadcast %54 : vector<1x16xf32> to vector<16x16xf32>
    %56 = arith.subf %52, %55 : vector<16x16xf32>
    %57 = math.exp %56 : vector<16x16xf32>
    %cst_42 = arith.constant dense<0.000000e+00> : vector<16xf32>
    %58 = vector.multi_reduction <add>, %57, %cst_42 [0] : vector<16x16xf32> to vector<16xf32>
    %59 = vector.shape_cast %58 : vector<16xf32> to vector<1x16xf32>
    %60 = tpu.reciprocal %59 {approx = true} : vector<1x16xf32> -> vector<1x16xf32>
    %61 = vector.broadcast %60 : vector<1x16xf32> to vector<16x16xf32>
    %62 = arith.mulf %57, %61 : vector<16x16xf32>
    %63 = vector.extract_strided_slice %0 {offsets = [16, 0], sizes = [16, 32], strides = [1, 1]} : vector<32x32xf32> to vector<16x32xf32>
    %64 = vector.extract_strided_slice %2 {offsets = [16, 0], sizes = [16, 8], strides = [1, 1]} : vector<32x8xf32> to vector<16x8xf32>
    %65 = vector.extract_strided_slice %4 {offsets = [16, 0], sizes = [16, 8], strides = [1, 1]} : vector<32x8xf32> to vector<16x8xf32>
    %c1 = arith.constant 1 : index
    %c0_43 = arith.constant 0 : index
    %c0_44 = arith.constant 0 : index
    %66 = vector.load %arg2[%c1, %c0_43, %c0_44] : memref<2x4x128xf32, #tpu.memory_space<vmem>>, vector<1x4x128xf32>
    %67 = vector.shape_cast %66 : vector<1x4x128xf32> to vector<4x128xf32>
    %cst_45 = arith.constant dense<0.000000e+00> : vector<4x8xf32>
    %68 = tpu.matmul %67, %13, %cst_45 {dimension_numbers = #tpu.dot_dimension_numbers<[1], [0], [0], [1], [0, 0, 1, 1], [], []>} : vector<4x128xf32>, vector<128x8xf32>, vector<4x8xf32> -> vector<4x8xf32>
    %cst_46 = arith.constant dense<0.000000e+00> : vector<4x8xf32>
    %69 = tpu.matmul %5, %64, %cst_46 {dimension_numbers = #tpu.dot_dimension_numbers<[1], [0], [0], [1], [0, 0, 1, 1], [], []>} : vector<4x16xf32>, vector<16x8xf32>, vector<4x8xf32> -> vector<4x8xf32>
    %cst_47 = arith.constant dense<0.000000e+00> : vector<8x8xf32>
    %70 = tpu.matmul %68, %69, %cst_47 {dimension_numbers = #tpu.dot_dimension_numbers<[0], [0], [1], [1], [0, 1, 1, 1], [], []>} : vector<4x8xf32>, vector<4x8xf32>, vector<8x8xf32> -> vector<8x8xf32>
    %71 = arith.addf %70, %6 : vector<8x8xf32>
    %72 = arith.negf %71 : vector<8x8xf32>
    %73 = math.exp %72 : vector<8x8xf32>
    %cst_48 = arith.constant 1.000000e+00 : f32
    %74 = vector.broadcast %cst_48 : f32 to vector<8x8xf32>
    %75 = arith.addf %74, %73 : vector<8x8xf32>
    %76 = arith.divf %74, %75 : vector<8x8xf32>
    %cst_49 = arith.constant dense<0.000000e+00> : vector<8x8xf32>
    %77 = tpu.matmul %7, %76, %cst_49 {dimension_numbers = #tpu.dot_dimension_numbers<[1], [0], [0], [1], [0, 0, 1, 1], [], []>} : vector<8x8xf32>, vector<8x8xf32>, vector<8x8xf32> -> vector<8x8xf32>
    %cst_50 = arith.constant dense<0xFF800000> : vector<8xf32>
    %78 = vector.multi_reduction <maximumf>, %77, %cst_50 [0] : vector<8x8xf32> to vector<8xf32>
    %79 = vector.shape_cast %78 : vector<8xf32> to vector<1x8xf32>
    %80 = vector.broadcast %79 : vector<1x8xf32> to vector<8x8xf32>
    %81 = arith.subf %77, %80 : vector<8x8xf32>
    %82 = math.exp %81 : vector<8x8xf32>
    %cst_51 = arith.constant dense<0.000000e+00> : vector<8xf32>
    %83 = vector.multi_reduction <add>, %82, %cst_51 [0] : vector<8x8xf32> to vector<8xf32>
    %84 = vector.shape_cast %83 : vector<8xf32> to vector<1x8xf32>
    %85 = tpu.reciprocal %84 {approx = true} : vector<1x8xf32> -> vector<1x8xf32>
    %86 = vector.broadcast %85 : vector<1x8xf32> to vector<8x8xf32>
    %87 = arith.mulf %82, %86 : vector<8x8xf32>
    %cst_52 = arith.constant dense<0.000000e+00> : vector<1x8xf32>
    %88 = tpu.matmul %8, %87, %cst_52 {dimension_numbers = #tpu.dot_dimension_numbers<[1], [1], [0], [0], [0, 0, 1, 0], [], []>} : vector<1x8xf32>, vector<8x8xf32>, vector<1x8xf32> -> vector<1x8xf32>
    %cst_53 = arith.constant dense<0.000000e+00> : vector<1x32xf32>
    %89 = tpu.matmul %88, %11, %cst_53 {dimension_numbers = #tpu.dot_dimension_numbers<[1], [0], [0], [1], [0, 0, 1, 1], [], []>} : vector<1x8xf32>, vector<8x32xf32>, vector<1x32xf32> -> vector<1x32xf32>
    %90 = vector.broadcast %89 : vector<1x32xf32> to vector<16x32xf32>
    %91 = arith.mulf %63, %90 : vector<16x32xf32>
    %cst_54 = arith.constant dense<0.000000e+00> : vector<16x8xf32>
    %92 = tpu.matmul %91, %12, %cst_54 {dimension_numbers = #tpu.dot_dimension_numbers<[1], [0], [0], [1], [0, 0, 1, 1], [], []>} : vector<16x32xf32>, vector<32x8xf32>, vector<16x8xf32> -> vector<16x8xf32>
    %cst_55 = arith.constant dense<0.000000e+00> : vector<16x8xf32>
    %93 = tpu.matmul %65, %87, %cst_55 {dimension_numbers = #tpu.dot_dimension_numbers<[1], [0], [0], [1], [0, 0, 1, 1], [], []>} : vector<16x8xf32>, vector<8x8xf32>, vector<16x8xf32> -> vector<16x8xf32>
    %cst_56 = arith.constant dense<0.000000e+00> : vector<16x16xf32>
    %94 = tpu.matmul %92, %93, %cst_56 {dimension_numbers = #tpu.dot_dimension_numbers<[1], [1], [0], [0], [0, 0, 1, 0], [], []>} : vector<16x8xf32>, vector<16x8xf32>, vector<16x16xf32> -> vector<16x16xf32>
    %95 = arith.addf %94, %9 : vector<16x16xf32>
    %96 = arith.negf %95 : vector<16x16xf32>
    %97 = math.exp %96 : vector<16x16xf32>
    %cst_57 = arith.constant 1.000000e+00 : f32
    %98 = vector.broadcast %cst_57 : f32 to vector<16x16xf32>
    %99 = arith.addf %98, %97 : vector<16x16xf32>
    %100 = arith.divf %98, %99 : vector<16x16xf32>
    %cst_58 = arith.constant dense<0.000000e+00> : vector<16x16xf32>
    %101 = tpu.matmul %10, %100, %cst_58 {dimension_numbers = #tpu.dot_dimension_numbers<[1], [0], [0], [1], [0, 0, 1, 1], [], []>} : vector<16x16xf32>, vector<16x16xf32>, vector<16x16xf32> -> vector<16x16xf32>
    %cst_59 = arith.constant dense<0xFF800000> : vector<16xf32>
    %102 = vector.multi_reduction <maximumf>, %101, %cst_59 [0] : vector<16x16xf32> to vector<16xf32>
    %103 = vector.shape_cast %102 : vector<16xf32> to vector<1x16xf32>
    %104 = vector.broadcast %103 : vector<1x16xf32> to vector<16x16xf32>
    %105 = arith.subf %101, %104 : vector<16x16xf32>
    %106 = math.exp %105 : vector<16x16xf32>
    %cst_60 = arith.constant dense<0.000000e+00> : vector<16xf32>
    %107 = vector.multi_reduction <add>, %106, %cst_60 [0] : vector<16x16xf32> to vector<16xf32>
    %108 = vector.shape_cast %107 : vector<16xf32> to vector<1x16xf32>
    %109 = tpu.reciprocal %108 {approx = true} : vector<1x16xf32> -> vector<1x16xf32>
    %110 = vector.broadcast %109 : vector<1x16xf32> to vector<16x16xf32>
    %111 = arith.mulf %106, %110 : vector<16x16xf32>
    %cst_61 = arith.constant 0.000000e+00 : f32
    %112 = vector.broadcast %cst_61 : f32 to vector<32x256xf32>
    %c0_62 = arith.constant 0 : index
    %c0_63 = arith.constant 0 : index
    %c0_64 = arith.constant 0 : index
    %113 = vector.load %arg14[%c0_62, %c0_63, %c0_64] : memref<3x16x16xf32, #tpu.memory_space<vmem>>, vector<1x16x16xf32>
    %114 = vector.shape_cast %113 : vector<1x16x16xf32> to vector<16x16xf32>
    %115 = arith.mulf %114, %62 : vector<16x16xf32>
    %116 = vector.extract_strided_slice %0 {offsets = [0, 0], sizes = [16, 32], strides = [1, 1]} : vector<32x32xf32> to vector<16x32xf32>
    %cst_65 = arith.constant dense<0.000000e+00> : vector<16x32xf32>
    %117 = tpu.matmul %115, %116, %cst_65 {dimension_numbers = #tpu.dot_dimension_numbers<[0], [0], [1], [1], [0, 1, 1, 1], [], []>} : vector<16x16xf32>, vector<16x32xf32>, vector<16x32xf32> -> vector<16x32xf32>
    %c0_66 = arith.constant 0 : index
    %c0_67 = arith.constant 0 : index
    %c0_68 = arith.constant 0 : index
    %118 = vector.load %arg14[%c0_66, %c0_67, %c0_68] : memref<3x16x16xf32, #tpu.memory_space<vmem>>, vector<1x16x16xf32>
    %119 = vector.shape_cast %118 : vector<1x16x16xf32> to vector<16x16xf32>
    %120 = arith.mulf %119, %111 : vector<16x16xf32>
    %121 = vector.extract_strided_slice %0 {offsets = [16, 0], sizes = [16, 32], strides = [1, 1]} : vector<32x32xf32> to vector<16x32xf32>
    %cst_69 = arith.constant dense<0.000000e+00> : vector<16x32xf32>
    %122 = tpu.matmul %120, %121, %cst_69 {dimension_numbers = #tpu.dot_dimension_numbers<[0], [0], [1], [1], [0, 1, 1, 1], [], []>} : vector<16x16xf32>, vector<16x32xf32>, vector<16x32xf32> -> vector<16x32xf32>
    %123 = tpu.concatenate %117, %122 in 0 : vector<16x32xf32>, vector<16x32xf32> -> vector<32x32xf32>
    %124 = arith.truncf %123 : vector<32x32xf32> to vector<32x32xbf16>
    %c0_70 = arith.constant 0 : index
    %c0_71 = arith.constant 0 : index
    %c0_72 = arith.constant 0 : index
    %125 = vector.load %arg15[%c0_70, %c0_71, %c0_72] : memref<3x32x256xbf16, #tpu.memory_space<vmem>>, vector<1x32x256xbf16>
    %126 = vector.shape_cast %125 : vector<1x32x256xbf16> to vector<32x256xbf16>
    %cst_73 = arith.constant dense<0.000000e+00> : vector<32x256xf32>
    %127 = tpu.matmul %124, %126, %cst_73 {dimension_numbers = #tpu.dot_dimension_numbers<[1], [0], [0], [1], [0, 0, 1, 1], [], []>} : vector<32x32xbf16>, vector<32x256xbf16>, vector<32x256xf32> -> vector<32x256xf32>
    %128 = arith.addf %112, %127 : vector<32x256xf32>
    %c1_74 = arith.constant 1 : index
    %c0_75 = arith.constant 0 : index
    %c0_76 = arith.constant 0 : index
    %129 = vector.load %arg14[%c1_74, %c0_75, %c0_76] : memref<3x16x16xf32, #tpu.memory_space<vmem>>, vector<1x16x16xf32>
    %130 = vector.shape_cast %129 : vector<1x16x16xf32> to vector<16x16xf32>
    %131 = arith.mulf %130, %62 : vector<16x16xf32>
    %132 = vector.extract_strided_slice %0 {offsets = [0, 0], sizes = [16, 32], strides = [1, 1]} : vector<32x32xf32> to vector<16x32xf32>
    %cst_77 = arith.constant dense<0.000000e+00> : vector<16x32xf32>
    %133 = tpu.matmul %131, %132, %cst_77 {dimension_numbers = #tpu.dot_dimension_numbers<[0], [0], [1], [1], [0, 1, 1, 1], [], []>} : vector<16x16xf32>, vector<16x32xf32>, vector<16x32xf32> -> vector<16x32xf32>
    %c1_78 = arith.constant 1 : index
    %c0_79 = arith.constant 0 : index
    %c0_80 = arith.constant 0 : index
    %134 = vector.load %arg14[%c1_78, %c0_79, %c0_80] : memref<3x16x16xf32, #tpu.memory_space<vmem>>, vector<1x16x16xf32>
    %135 = vector.shape_cast %134 : vector<1x16x16xf32> to vector<16x16xf32>
    %136 = arith.mulf %135, %111 : vector<16x16xf32>
    %137 = vector.extract_strided_slice %0 {offsets = [16, 0], sizes = [16, 32], strides = [1, 1]} : vector<32x32xf32> to vector<16x32xf32>
    %cst_81 = arith.constant dense<0.000000e+00> : vector<16x32xf32>
    %138 = tpu.matmul %136, %137, %cst_81 {dimension_numbers = #tpu.dot_dimension_numbers<[0], [0], [1], [1], [0, 1, 1, 1], [], []>} : vector<16x16xf32>, vector<16x32xf32>, vector<16x32xf32> -> vector<16x32xf32>
    %139 = tpu.concatenate %133, %138 in 0 : vector<16x32xf32>, vector<16x32xf32> -> vector<32x32xf32>
    %140 = arith.truncf %139 : vector<32x32xf32> to vector<32x32xbf16>
    %c1_82 = arith.constant 1 : index
    %c0_83 = arith.constant 0 : index
    %c0_84 = arith.constant 0 : index
    %141 = vector.load %arg15[%c1_82, %c0_83, %c0_84] : memref<3x32x256xbf16, #tpu.memory_space<vmem>>, vector<1x32x256xbf16>
    %142 = vector.shape_cast %141 : vector<1x32x256xbf16> to vector<32x256xbf16>
    %cst_85 = arith.constant dense<0.000000e+00> : vector<32x256xf32>
    %143 = tpu.matmul %140, %142, %cst_85 {dimension_numbers = #tpu.dot_dimension_numbers<[1], [0], [0], [1], [0, 0, 1, 1], [], []>} : vector<32x32xbf16>, vector<32x256xbf16>, vector<32x256xf32> -> vector<32x256xf32>
    %144 = arith.addf %128, %143 : vector<32x256xf32>
    %c2 = arith.constant 2 : index
    %c0_86 = arith.constant 0 : index
    %c0_87 = arith.constant 0 : index
    %145 = vector.load %arg14[%c2, %c0_86, %c0_87] : memref<3x16x16xf32, #tpu.memory_space<vmem>>, vector<1x16x16xf32>
    %146 = vector.shape_cast %145 : vector<1x16x16xf32> to vector<16x16xf32>
    %147 = arith.mulf %146, %62 : vector<16x16xf32>
    %148 = vector.extract_strided_slice %0 {offsets = [0, 0], sizes = [16, 32], strides = [1, 1]} : vector<32x32xf32> to vector<16x32xf32>
    %cst_88 = arith.constant dense<0.000000e+00> : vector<16x32xf32>
    %149 = tpu.matmul %147, %148, %cst_88 {dimension_numbers = #tpu.dot_dimension_numbers<[0], [0], [1], [1], [0, 1, 1, 1], [], []>} : vector<16x16xf32>, vector<16x32xf32>, vector<16x32xf32> -> vector<16x32xf32>
    %c2_89 = arith.constant 2 : index
    %c0_90 = arith.constant 0 : index
    %c0_91 = arith.constant 0 : index
    %150 = vector.load %arg14[%c2_89, %c0_90, %c0_91] : memref<3x16x16xf32, #tpu.memory_space<vmem>>, vector<1x16x16xf32>
    %151 = vector.shape_cast %150 : vector<1x16x16xf32> to vector<16x16xf32>
    %152 = arith.mulf %151, %111 : vector<16x16xf32>
    %153 = vector.extract_strided_slice %0 {offsets = [16, 0], sizes = [16, 32], strides = [1, 1]} : vector<32x32xf32> to vector<16x32xf32>
    %cst_92 = arith.constant dense<0.000000e+00> : vector<16x32xf32>
    %154 = tpu.matmul %152, %153, %cst_92 {dimension_numbers = #tpu.dot_dimension_numbers<[0], [0], [1], [1], [0, 1, 1, 1], [], []>} : vector<16x16xf32>, vector<16x32xf32>, vector<16x32xf32> -> vector<16x32xf32>
    %155 = tpu.concatenate %149, %154 in 0 : vector<16x32xf32>, vector<16x32xf32> -> vector<32x32xf32>
    %156 = arith.truncf %155 : vector<32x32xf32> to vector<32x32xbf16>
    %c2_93 = arith.constant 2 : index
    %c0_94 = arith.constant 0 : index
    %c0_95 = arith.constant 0 : index
    %157 = vector.load %arg15[%c2_93, %c0_94, %c0_95] : memref<3x32x256xbf16, #tpu.memory_space<vmem>>, vector<1x32x256xbf16>
    %158 = vector.shape_cast %157 : vector<1x32x256xbf16> to vector<32x256xbf16>
    %cst_96 = arith.constant dense<0.000000e+00> : vector<32x256xf32>
    %159 = tpu.matmul %156, %158, %cst_96 {dimension_numbers = #tpu.dot_dimension_numbers<[1], [0], [0], [1], [0, 0, 1, 1], [], []>} : vector<32x32xbf16>, vector<32x256xbf16>, vector<32x256xf32> -> vector<32x256xf32>
    %160 = arith.addf %144, %159 : vector<32x256xf32>
    %cst_97 = arith.constant 0.000000e+00 : f32
    %161 = vector.broadcast %cst_97 : f32 to vector<32x256xf32>
    %162 = arith.maximumf %160, %161 : vector<32x256xf32>
    %163 = arith.truncf %162 : vector<32x256xf32> to vector<32x256xbf16>
    %c0_98 = arith.constant 0 : index
    %c0_99 = arith.constant 0 : index
    %164 = vector.load %arg16[%c0_98, %c0_99] : memref<256x256xbf16, #tpu.memory_space<vmem>>, vector<256x256xbf16>
    %cst_100 = arith.constant dense<0.000000e+00> : vector<32x256xf32>
    %165 = tpu.matmul %163, %164, %cst_100 {dimension_numbers = #tpu.dot_dimension_numbers<[1], [0], [0], [1], [0, 0, 1, 1], [], []>} : vector<32x256xbf16>, vector<256x256xbf16>, vector<32x256xf32> -> vector<32x256xf32>
    %c0_101 = arith.constant 0 : index
    %c0_102 = arith.constant 0 : index
    %166 = vector.load %arg17[%c0_101, %c0_102] : memref<1x256xf32, #tpu.memory_space<vmem>>, vector<1x256xf32>
    %167 = vector.broadcast %166 : vector<1x256xf32> to vector<32x256xf32>
    %168 = arith.addf %165, %167 : vector<32x256xf32>
    %169 = arith.truncf %0 : vector<32x32xf32> to vector<32x32xbf16>
    %c0_103 = arith.constant 0 : index
    %c0_104 = arith.constant 0 : index
    %170 = vector.load %arg18[%c0_103, %c0_104] : memref<32x256xbf16, #tpu.memory_space<vmem>>, vector<32x256xbf16>
    %cst_105 = arith.constant dense<0.000000e+00> : vector<32x256xf32>
    %171 = tpu.matmul %169, %170, %cst_105 {dimension_numbers = #tpu.dot_dimension_numbers<[1], [0], [0], [1], [0, 0, 1, 1], [], []>} : vector<32x32xbf16>, vector<32x256xbf16>, vector<32x256xf32> -> vector<32x256xf32>
    %c0_106 = arith.constant 0 : index
    %c0_107 = arith.constant 0 : index
    %172 = vector.load %arg19[%c0_106, %c0_107] : memref<1x256xf32, #tpu.memory_space<vmem>>, vector<1x256xf32>
    %173 = vector.broadcast %172 : vector<1x256xf32> to vector<32x256xf32>
    %174 = arith.addf %171, %173 : vector<32x256xf32>
    %175 = arith.addf %168, %174 : vector<32x256xf32>
    %cst_108 = arith.constant 0.000000e+00 : f32
    %176 = vector.broadcast %cst_108 : f32 to vector<32x256xf32>
    %177 = arith.maximumf %175, %176 : vector<32x256xf32>
    %c0_109 = arith.constant 0 : index
    %c0_110 = arith.constant 0 : index
    %178 = vector.load %arg20[%c0_109, %c0_110] : memref<256x256xf32, #tpu.memory_space<vmem>>, vector<256x256xf32>
    %cst_111 = arith.constant dense<0.000000e+00> : vector<32x256xf32>
    %179 = tpu.matmul %177, %178, %cst_111 {dimension_numbers = #tpu.dot_dimension_numbers<[1], [0], [0], [1], [0, 0, 1, 1], [], []>} : vector<32x256xf32>, vector<256x256xf32>, vector<32x256xf32> -> vector<32x256xf32>
    %180 = arith.mulf %177, %177 : vector<32x256xf32>
    %cst_112 = arith.constant dense<0.000000e+00> : vector<32x256xf32>
    %181 = tpu.matmul %180, %178, %cst_112 {dimension_numbers = #tpu.dot_dimension_numbers<[1], [0], [0], [1], [0, 0, 1, 1], [], []>} : vector<32x256xf32>, vector<256x256xf32>, vector<32x256xf32> -> vector<32x256xf32>
    %182 = arith.mulf %179, %179 : vector<32x256xf32>
    %183 = arith.subf %181, %182 : vector<32x256xf32>
    %cst_113 = arith.constant 9.99999974E-6 : f32
    %184 = vector.broadcast %cst_113 : f32 to vector<32x256xf32>
    %185 = arith.addf %183, %184 : vector<32x256xf32>
    %186 = math.rsqrt %185 : vector<32x256xf32>
    %187 = arith.subf %177, %179 : vector<32x256xf32>
    %188 = arith.mulf %187, %186 : vector<32x256xf32>
    %c0_114 = arith.constant 0 : index
    %c0_115 = arith.constant 0 : index
    %189 = vector.load %arg21[%c0_114, %c0_115] : memref<1x256xf32, #tpu.memory_space<vmem>>, vector<1x256xf32>
    %190 = vector.broadcast %189 : vector<1x256xf32> to vector<32x256xf32>
    %191 = arith.mulf %188, %190 : vector<32x256xf32>
    %c0_116 = arith.constant 0 : index
    %c0_117 = arith.constant 0 : index
    %192 = vector.load %arg22[%c0_116, %c0_117] : memref<1x256xf32, #tpu.memory_space<vmem>>, vector<1x256xf32>
    %193 = vector.broadcast %192 : vector<1x256xf32> to vector<32x256xf32>
    %194 = arith.addf %191, %193 : vector<32x256xf32>
    %c0_118 = arith.constant 0 : index
    %c0_119 = arith.constant 0 : index
    %195 = vector.load %arg23[%c0_118, %c0_119] : memref<32x256xf32, #tpu.memory_space<vmem>>, vector<32x256xf32>
    tpu.vector_store %arg23[%c0_118, %c0_119], %194 {strides = array<i32>} : memref<32x256xf32, #tpu.memory_space<vmem>>, vector<32x256xf32>,
    return
  }
  func.func @transform_0(%arg0: i32) -> (i32, i32) {
    %c0_i32 = arith.constant 0 : i32
    %c0_i32_0 = arith.constant 0 : i32
    return %arg0, %c0_i32 : i32, i32
  }
  func.func @transform_1(%arg0: i32) -> (i32, i32, i32) {
    %c0_i32 = arith.constant 0 : i32
    %c0_i32_0 = arith.constant 0 : i32
    %c0_i32_1 = arith.constant 0 : i32
    return %arg0, %c0_i32, %c0_i32_0 : i32, i32, i32
  }
  func.func @transform_2(%arg0: i32) -> (i32, i32) {
    %c0_i32 = arith.constant 0 : i32
    %c0_i32_0 = arith.constant 0 : i32
    %c0_i32_1 = arith.constant 0 : i32
    return %c0_i32, %c0_i32_0 : i32, i32
  }
  func.func @transform_3(%arg0: i32) -> (i32, i32) {
    %c0_i32 = arith.constant 0 : i32
    %c0_i32_0 = arith.constant 0 : i32
    %c0_i32_1 = arith.constant 0 : i32
    return %c0_i32, %c0_i32_0 : i32, i32
  }
  func.func @transform_4(%arg0: i32) -> (i32, i32) {
    %c0_i32 = arith.constant 0 : i32
    %c0_i32_0 = arith.constant 0 : i32
    %c0_i32_1 = arith.constant 0 : i32
    return %c0_i32, %c0_i32_0 : i32, i32
  }
  func.func @transform_5(%arg0: i32) -> (i32, i32) {
    %c0_i32 = arith.constant 0 : i32
    %c0_i32_0 = arith.constant 0 : i32
    %c0_i32_1 = arith.constant 0 : i32
    return %c0_i32, %c0_i32_0 : i32, i32
  }
  func.func @transform_6(%arg0: i32) -> (i32, i32) {
    %c0_i32 = arith.constant 0 : i32
    %c0_i32_0 = arith.constant 0 : i32
    %c0_i32_1 = arith.constant 0 : i32
    return %c0_i32, %c0_i32_0 : i32, i32
  }
  func.func @transform_7(%arg0: i32) -> (i32, i32) {
    %c0_i32 = arith.constant 0 : i32
    %c0_i32_0 = arith.constant 0 : i32
    %c0_i32_1 = arith.constant 0 : i32
    return %c0_i32, %c0_i32_0 : i32, i32
  }
  func.func @transform_8(%arg0: i32) -> (i32, i32) {
    %c0_i32 = arith.constant 0 : i32
    %c0_i32_0 = arith.constant 0 : i32
    %c0_i32_1 = arith.constant 0 : i32
    return %c0_i32, %c0_i32_0 : i32, i32
  }
  func.func @transform_9(%arg0: i32) -> (i32, i32) {
    %c0_i32 = arith.constant 0 : i32
    %c0_i32_0 = arith.constant 0 : i32
    %c0_i32_1 = arith.constant 0 : i32
    return %c0_i32, %c0_i32_0 : i32, i32
  }
  func.func @transform_10(%arg0: i32) -> (i32, i32) {
    %c0_i32 = arith.constant 0 : i32
    %c0_i32_0 = arith.constant 0 : i32
    %c0_i32_1 = arith.constant 0 : i32
    return %c0_i32, %c0_i32_0 : i32, i32
  }
  func.func @transform_11(%arg0: i32) -> (i32, i32) {
    %c0_i32 = arith.constant 0 : i32
    %c0_i32_0 = arith.constant 0 : i32
    %c0_i32_1 = arith.constant 0 : i32
    return %c0_i32, %c0_i32_0 : i32, i32
  }
  func.func @transform_12(%arg0: i32) -> (i32, i32) {
    %c0_i32 = arith.constant 0 : i32
    %c0_i32_0 = arith.constant 0 : i32
    %c0_i32_1 = arith.constant 0 : i32
    return %c0_i32, %c0_i32_0 : i32, i32
  }
  func.func @transform_13(%arg0: i32) -> (i32, i32, i32) {
    %c0_i32 = arith.constant 0 : i32
    %c0_i32_0 = arith.constant 0 : i32
    %c0_i32_1 = arith.constant 0 : i32
    %c0_i32_2 = arith.constant 0 : i32
    return %c0_i32, %c0_i32_0, %c0_i32_1 : i32, i32, i32
  }
  func.func @transform_14(%arg0: i32) -> (i32, i32, i32) {
    %c0_i32 = arith.constant 0 : i32
    %c0_i32_0 = arith.constant 0 : i32
    %c0_i32_1 = arith.constant 0 : i32
    %c0_i32_2 = arith.constant 0 : i32
    return %c0_i32, %c0_i32_0, %c0_i32_1 : i32, i32, i32
  }
  func.func @transform_15(%arg0: i32) -> (i32, i32) {
    %c0_i32 = arith.constant 0 : i32
    %c0_i32_0 = arith.constant 0 : i32
    %c0_i32_1 = arith.constant 0 : i32
    return %c0_i32, %c0_i32_0 : i32, i32
  }
  func.func @transform_16(%arg0: i32) -> (i32, i32) {
    %c0_i32 = arith.constant 0 : i32
    %c0_i32_0 = arith.constant 0 : i32
    %c0_i32_1 = arith.constant 0 : i32
    return %c0_i32, %c0_i32_0 : i32, i32
  }
  func.func @transform_17(%arg0: i32) -> (i32, i32) {
    %c0_i32 = arith.constant 0 : i32
    %c0_i32_0 = arith.constant 0 : i32
    %c0_i32_1 = arith.constant 0 : i32
    return %c0_i32, %c0_i32_0 : i32, i32
  }
  func.func @transform_18(%arg0: i32) -> (i32, i32) {
    %c0_i32 = arith.constant 0 : i32
    %c0_i32_0 = arith.constant 0 : i32
    %c0_i32_1 = arith.constant 0 : i32
    return %c0_i32, %c0_i32_0 : i32, i32
  }
  func.func @transform_19(%arg0: i32) -> (i32, i32) {
    %c0_i32 = arith.constant 0 : i32
    %c0_i32_0 = arith.constant 0 : i32
    %c0_i32_1 = arith.constant 0 : i32
    return %c0_i32, %c0_i32_0 : i32, i32
  }
  func.func @transform_20(%arg0: i32) -> (i32, i32) {
    %c0_i32 = arith.constant 0 : i32
    %c0_i32_0 = arith.constant 0 : i32
    %c0_i32_1 = arith.constant 0 : i32
    return %c0_i32, %c0_i32_0 : i32, i32
  }
  func.func @transform_21(%arg0: i32) -> (i32, i32) {
    %c0_i32 = arith.constant 0 : i32
    %c0_i32_0 = arith.constant 0 : i32
    %c0_i32_1 = arith.constant 0 : i32
    return %c0_i32, %c0_i32_0 : i32, i32
  }
  func.func @transform_22(%arg0: i32) -> (i32, i32) {
    %c0_i32 = arith.constant 0 : i32
    %c0_i32_0 = arith.constant 0 : i32
    return %arg0, %c0_i32 : i32, i32
  }
}

</mosaic_0001>

<llo_original>
// kernel: astgcn_block_forward.1
$region0: #{astgcn_block_forward.1}
  #allocation0 [shape = 'u32[]', space=smem, size = 0x4, offset = 0x4, fixed_abs, tag = 'smem constant byte address 0x4 - core index']
  #allocation1 [shape = 'u32[144,128]{1,0:T(1,128)}', space=vmem, size = 0x12000, scoped, tag = 'internal scratch']
  %s0 = inlined_call_operand.vmem [shape: f32[64,32], index: 0, kind: input, shape index: {}]
  %s1 = inlined_call_operand.vmem [shape: f32[4,4,128], index: 1, kind: input, shape index: {}]
  %s2 = inlined_call_operand.vmem [shape: f32[128,8], index: 2, kind: input, shape index: {}]
  %s3 = inlined_call_operand.vmem [shape: f32[4,16], index: 3, kind: input, shape index: {}]
  %s4 = inlined_call_operand.vmem [shape: f32[32,8], index: 4, kind: input, shape index: {}]
  %s5 = inlined_call_operand.vmem [shape: f32[8,8], index: 5, kind: input, shape index: {}]
  %s6 = inlined_call_operand.vmem [shape: f32[8,8], index: 6, kind: input, shape index: {}]
  %s7 = inlined_call_operand.vmem [shape: f32[1,8], index: 7, kind: input, shape index: {}]
  %s8 = inlined_call_operand.vmem [shape: f32[32,8], index: 8, kind: input, shape index: {}]
  %s9 = inlined_call_operand.vmem [shape: f32[8,32], index: 9, kind: input, shape index: {}]
  %s10 = inlined_call_operand.vmem [shape: f32[32,8], index: 10, kind: input, shape index: {}]
  %s11 = inlined_call_operand.vmem [shape: f32[16,16], index: 11, kind: input, shape index: {}]
  %s12 = inlined_call_operand.vmem [shape: f32[16,16], index: 12, kind: input, shape index: {}]
  %s13 = inlined_call_operand.vmem [shape: f32[3,16,16], index: 13, kind: input, shape index: {}]
  %s14 = inlined_call_operand.vmem [shape: bf16[3,32,256], index: 14, kind: input, shape index: {}]
  %s15 = inlined_call_operand.vmem [shape: bf16[256,256], index: 15, kind: input, shape index: {}]
  %s16 = inlined_call_operand.vmem [shape: f32[1,256], index: 16, kind: input, shape index: {}]
  %s17 = inlined_call_operand.vmem [shape: bf16[32,256], index: 17, kind: input, shape index: {}]
  %s18 = inlined_call_operand.vmem [shape: f32[1,256], index: 18, kind: input, shape index: {}]
  %s19 = inlined_call_operand.vmem [shape: f32[256,256], index: 19, kind: input, shape index: {}]
  %s20 = inlined_call_operand.vmem [shape: f32[1,256], index: 20, kind: input, shape index: {}]
  %s21 = inlined_call_operand.vmem [shape: f32[1,256], index: 21, kind: input, shape index: {}]
  %s22 = inlined_call_operand.vmem [shape: f32[64,256], index: 22, kind: output, shape index: {}]
  %s23 = sld [smem:[#allocation0]]
  $region121: #{astgcn_block_forward.1} parent=0
    _
  %s25 = ssub.s32 1, %s23
  %s26 = scalar_select 0, %s25, %s23
  loop: start=0, step=1, limit=4
  $region2: #{astgcn_block_forward.1} parent=0 // loop_pre_header
    _
  $region3: #{astgcn_block_forward.1} parent=0 // loop_header
    %s28 = sphi 0, %s32
    %p29 = scmp.ge.s32.totalorder %s28, 4
    %s38 = sphi 0, %s40
    %s41 = sphi 0, %s38
    %s42 = sphi 0, %s41
    %s58 = sphi 0, %s42
    %s64 = sphi 0, %s66
    %s67 = sphi 0, %s64
    %s68 = sphi 0, %s67
    %s84 = sphi 0, %s68
    %s88 = sphi 0, %s88
    %s90 = sphi 0, %s88
    %s91 = sphi 0, %s90
    %s105 = sphi 0, %s91
    %s109 = sphi 0, %s109
    %s111 = sphi 0, %s109
    %s112 = sphi 0, %s111
    %s126 = sphi 0, %s112
    %s130 = sphi 0, %s130
    %s132 = sphi 0, %s130
    %s133 = sphi 0, %s132
    %s147 = sphi 0, %s133
    %s151 = sphi 0, %s151
    %s153 = sphi 0, %s151
    %s154 = sphi 0, %s153
    %s168 = sphi 0, %s154
    %s172 = sphi 0, %s172
    %s174 = sphi 0, %s172
    %s175 = sphi 0, %s174
    %s189 = sphi 0, %s175
    %s193 = sphi 0, %s193
    %s195 = sphi 0, %s193
    %s196 = sphi 0, %s195
    %s210 = sphi 0, %s196
    %s214 = sphi 0, %s214
    %s216 = sphi 0, %s214
    %s217 = sphi 0, %s216
    %s231 = sphi 0, %s217
    %s235 = sphi 0, %s235
    %s237 = sphi 0, %s235
    %s238 = sphi 0, %s237
    %s252 = sphi 0, %s238
    %s256 = sphi 0, %s256
    %s258 = sphi 0, %s256
    %s259 = sphi 0, %s258
    %s273 = sphi 0, %s259
    %s277 = sphi 0, %s277
    %s279 = sphi 0, %s277
    %s280 = sphi 0, %s279
    %s294 = sphi 0, %s280
    %s298 = sphi 0, %s298
    %s300 = sphi 0, %s298
    %s301 = sphi 0, %s300
    %s315 = sphi 0, %s301
    %s319 = sphi 0, %s319
    %s321 = sphi 0, %s319
    %s322 = sphi 0, %s321
    %s336 = sphi 0, %s322
    %s340 = sphi 0, %s340
    %s342 = sphi 0, %s340
    %s343 = sphi 0, %s342
    %s357 = sphi 0, %s343
    %s361 = sphi 0, %s361
    %s363 = sphi 0, %s361
    %s364 = sphi 0, %s363
    %s378 = sphi 0, %s364
    %s382 = sphi 0, %s382
    %s384 = sphi 0, %s382
    %s385 = sphi 0, %s384
    %s399 = sphi 0, %s385
    %s403 = sphi 0, %s403
    %s405 = sphi 0, %s403
    %s406 = sphi 0, %s405
    %s420 = sphi 0, %s406
    %s424 = sphi 0, %s424
    %s426 = sphi 0, %s424
    %s427 = sphi 0, %s426
    %s441 = sphi 0, %s427
    %s445 = sphi 0, %s445
    %s447 = sphi 0, %s445
    %s448 = sphi 0, %s447
    %s462 = sphi 0, %s448
    %s466 = sphi 0, %s466
    %s468 = sphi 0, %s466
    %s469 = sphi 0, %s468
    %s483 = sphi 0, %s469
    %s487 = sphi 0, %s487
    %s489 = sphi 0, %s487
    %s490 = sphi 0, %s489
    %s504 = sphi 0, %s490
    %s510 = sphi 0, %s512
    %s513 = sphi 0, %s510
    %s514 = sphi 0, %s513
    %s530 = sphi 0, %s514
  $region4: #{astgcn_block_forward.1} parent=0 // loop_header_branch
    %31 = sbr.rel (%p29) target = $region8
  $region5: #{astgcn_block_forward.1} parent=0 // loop_body
    %s33 = ssub.s32 %s28, 1
    %s34 = ssub.s32 %s28, 2
    %s35 = sadd.s32 %s28, 1
    %s36 = ssub.s32 %s28, %s35
    %p37 = scmp.eq.s32.totalorder %s36, 0
    %s39 = sadd.s32 %s38, 1
    %s40 = scalar_select %p37, %s38, %s39
    %p43 = pneg %p37
    %p44 = scmp.eq.s32.totalorder %s28, 1
    %p45 = por %p43, %p44
    %p46 = scmp.ne.s32.totalorder %s38, %s41
    %p47 = scmp.eq.s32.totalorder %s28, 0
    %p48 = por %p46, %p47
    %p49 = scmp.ne.s32.totalorder %s38, %s41
    %p50 = scmp.eq.s32.totalorder %s33, 1
    %p51 = por %p49, %p50
    %p52 = scmp.ne.s32.totalorder %s41, %s42
    %p53 = scmp.eq.s32.totalorder %s33, 0
    %p54 = por %p52, %p53
    %p55 = scmp.ne.s32.totalorder %s41, %s42
    %p56 = scmp.eq.s32.totalorder %s34, 1
    %p57 = por %p55, %p56
    %p59 = scmp.ne.s32.totalorder %s42, %s58
    %p60 = scmp.eq.s32.totalorder %s34, 0
    %p61 = por %p59, %p60
    %s62 = ssub.s32 %s28, %s35
    %p63 = scmp.eq.s32.totalorder %s62, 0
    %s65 = sadd.s32 %s64, 1
    %s66 = scalar_select %p63, %s64, %s65
    %p69 = pneg %p63
    %p70 = scmp.eq.s32.totalorder %s28, 1
    %p71 = por %p69, %p70
    %p72 = scmp.ne.s32.totalorder %s64, %s67
    %p73 = scmp.eq.s32.totalorder %s28, 0
    %p74 = por %p72, %p73
    %p75 = scmp.ne.s32.totalorder %s64, %s67
    %p76 = scmp.eq.s32.totalorder %s33, 1
    %p77 = por %p75, %p76
    %p78 = scmp.ne.s32.totalorder %s67, %s68
    %p79 = scmp.eq.s32.totalorder %s33, 0
    %p80 = por %p78, %p79
    %p81 = scmp.ne.s32.totalorder %s67, %s68
    %p82 = scmp.eq.s32.totalorder %s34, 1
    %p83 = por %p81, %p82
    %p85 = scmp.ne.s32.totalorder %s68, %s84
    %p86 = scmp.eq.s32.totalorder %s34, 0
    %p87 = por %p85, %p86
    %s89 = sadd.s32 %s88, 1
    %p92 = scmp.eq.s32.totalorder %s28, 1
    %p93 = scmp.ne.s32.totalorder %s88, %s90
    %p94 = scmp.eq.s32.totalorder %s28, 0
    %p95 = por %p93, %p94
    %p96 = scmp.ne.s32.totalorder %s88, %s90
    %p97 = scmp.eq.s32.totalorder %s33, 1
    %p98 = por %p96, %p97
    %p99 = scmp.ne.s32.totalorder %s90, %s91
    %p100 = scmp.eq.s32.totalorder %s33, 0
    %p101 = por %p99, %p100
    %p102 = scmp.ne.s32.totalorder %s90, %s91
    %p103 = scmp.eq.s32.totalorder %s34, 1
    %p104 = por %p102, %p103
    %p106 = scmp.ne.s32.totalorder %s91, %s105
    %p107 = scmp.eq.s32.totalorder %s34, 0
    %p108 = por %p106, %p107
    %s110 = sadd.s32 %s109, 1
    %p113 = scmp.eq.s32.totalorder %s28, 1
    %p114 = scmp.ne.s32.totalorder %s109, %s111
    %p115 = scmp.eq.s32.totalorder %s28, 0
    %p116 = por %p114, %p115
    %p117 = scmp.ne.s32.totalorder %s109, %s111
    %p118 = scmp.eq.s32.totalorder %s33, 1
    %p119 = por %p117, %p118
    %p120 = scmp.ne.s32.totalorder %s111, %s112
    %p121 = scmp.eq.s32.totalorder %s33, 0
    %p122 = por %p120, %p121
    %p123 = scmp.ne.s32.totalorder %s111, %s112
    %p124 = scmp.eq.s32.totalorder %s34, 1
    %p125 = por %p123, %p124
    %p127 = scmp.ne.s32.totalorder %s112, %s126
    %p128 = scmp.eq.s32.totalorder %s34, 0
    %p129 = por %p127, %p128
    %s131 = sadd.s32 %s130, 1
    %p134 = scmp.eq.s32.totalorder %s28, 1
    %p135 = scmp.ne.s32.totalorder %s130, %s132
    %p136 = scmp.eq.s32.totalorder %s28, 0
    %p137 = por %p135, %p136
    %p138 = scmp.ne.s32.totalorder %s130, %s132
    %p139 = scmp.eq.s32.totalorder %s33, 1
    %p140 = por %p138, %p139
    %p141 = scmp.ne.s32.totalorder %s132, %s133
    %p142 = scmp.eq.s32.totalorder %s33, 0
    %p143 = por %p141, %p142
    %p144 = scmp.ne.s32.totalorder %s132, %s133
    %p145 = scmp.eq.s32.totalorder %s34, 1
    %p146 = por %p144, %p145
    %p148 = scmp.ne.s32.totalorder %s133, %s147
    %p149 = scmp.eq.s32.totalorder %s34, 0
    %p150 = por %p148, %p149
    %s152 = sadd.s32 %s151, 1
    %p155 = scmp.eq.s32.totalorder %s28, 1
    %p156 = scmp.ne.s32.totalorder %s151, %s153
    %p157 = scmp.eq.s32.totalorder %s28, 0
    %p158 = por %p156, %p157
    %p159 = scmp.ne.s32.totalorder %s151, %s153
    %p160 = scmp.eq.s32.totalorder %s33, 1
    %p161 = por %p159, %p160
    %p162 = scmp.ne.s32.totalorder %s153, %s154
    %p163 = scmp.eq.s32.totalorder %s33, 0
    %p164 = por %p162, %p163
    %p165 = scmp.ne.s32.totalorder %s153, %s154
    %p166 = scmp.eq.s32.totalorder %s34, 1
    %p167 = por %p165, %p166
    %p169 = scmp.ne.s32.totalorder %s154, %s168
    %p170 = scmp.eq.s32.totalorder %s34, 0
    %p171 = por %p169, %p170
    %s173 = sadd.s32 %s172, 1
    %p176 = scmp.eq.s32.totalorder %s28, 1
    %p177 = scmp.ne.s32.totalorder %s172, %s174
    %p178 = scmp.eq.s32.totalorder %s28, 0
    %p179 = por %p177, %p178
    %p180 = scmp.ne.s32.totalorder %s172, %s174
    %p181 = scmp.eq.s32.totalorder %s33, 1
    %p182 = por %p180, %p181
    %p183 = scmp.ne.s32.totalorder %s174, %s175
    %p184 = scmp.eq.s32.totalorder %s33, 0
    %p185 = por %p183, %p184
    %p186 = scmp.ne.s32.totalorder %s174, %s175
    %p187 = scmp.eq.s32.totalorder %s34, 1
    %p188 = por %p186, %p187
    %p190 = scmp.ne.s32.totalorder %s175, %s189
    %p191 = scmp.eq.s32.totalorder %s34, 0
    %p192 = por %p190, %p191
    %s194 = sadd.s32 %s193, 1
    %p197 = scmp.eq.s32.totalorder %s28, 1
    %p198 = scmp.ne.s32.totalorder %s193, %s195
    %p199 = scmp.eq.s32.totalorder %s28, 0
    %p200 = por %p198, %p199
    %p201 = scmp.ne.s32.totalorder %s193, %s195
    %p202 = scmp.eq.s32.totalorder %s33, 1
    %p203 = por %p201, %p202
    %p204 = scmp.ne.s32.totalorder %s195, %s196
    %p205 = scmp.eq.s32.totalorder %s33, 0
    %p206 = por %p204, %p205
    %p207 = scmp.ne.s32.totalorder %s195, %s196
    %p208 = scmp.eq.s32.totalorder %s34, 1
    %p209 = por %p207, %p208
    %p211 = scmp.ne.s32.totalorder %s196, %s210
    %p212 = scmp.eq.s32.totalorder %s34, 0
    %p213 = por %p211, %p212
    %s215 = sadd.s32 %s214, 1
    %p218 = scmp.eq.s32.totalorder %s28, 1
    %p219 = scmp.ne.s32.totalorder %s214, %s216
    %p220 = scmp.eq.s32.totalorder %s28, 0
    %p221 = por %p219, %p220
    %p222 = scmp.ne.s32.totalorder %s214, %s216
    %p223 = scmp.eq.s32.totalorder %s33, 1
    %p224 = por %p222, %p223
    %p225 = scmp.ne.s32.totalorder %s216, %s217
    %p226 = scmp.eq.s32.totalorder %s33, 0
    %p227 = por %p225, %p226
    %p228 = scmp.ne.s32.totalorder %s216, %s217
    %p229 = scmp.eq.s32.totalorder %s34, 1
    %p230 = por %p228, %p229
    %p232 = scmp.ne.s32.totalorder %s217, %s231
    %p233 = scmp.eq.s32.totalorder %s34, 0
    %p234 = por %p232, %p233
    %s236 = sadd.s32 %s235, 1
    %p239 = scmp.eq.s32.totalorder %s28, 1
    %p240 = scmp.ne.s32.totalorder %s235, %s237
    %p241 = scmp.eq.s32.totalorder %s28, 0
    %p242 = por %p240, %p241
    %p243 = scmp.ne.s32.totalorder %s235, %s237
    %p244 = scmp.eq.s32.totalorder %s33, 1
    %p245 = por %p243, %p244
    %p246 = scmp.ne.s32.totalorder %s237, %s238
    %p247 = scmp.eq.s32.totalorder %s33, 0
    %p248 = por %p246, %p247
    %p249 = scmp.ne.s32.totalorder %s237, %s238
    %p250 = scmp.eq.s32.totalorder %s34, 1
    %p251 = por %p249, %p250
    %p253 = scmp.ne.s32.totalorder %s238, %s252
    %p254 = scmp.eq.s32.totalorder %s34, 0
    %p255 = por %p253, %p254
    %s257 = sadd.s32 %s256, 1
    %p260 = scmp.eq.s32.totalorder %s28, 1
    %p261 = scmp.ne.s32.totalorder %s256, %s258
    %p262 = scmp.eq.s32.totalorder %s28, 0
    %p263 = por %p261, %p262
    %p264 = scmp.ne.s32.totalorder %s256, %s258
    %p265 = scmp.eq.s32.totalorder %s33, 1
    %p266 = por %p264, %p265
    %p267 = scmp.ne.s32.totalorder %s258, %s259
    %p268 = scmp.eq.s32.totalorder %s33, 0
    %p269 = por %p267, %p268
    %p270 = scmp.ne.s32.totalorder %s258, %s259
    %p271 = scmp.eq.s32.totalorder %s34, 1
    %p272 = por %p270, %p271
    %p274 = scmp.ne.s32.totalorder %s259, %s273
    %p275 = scmp.eq.s32.totalorder %s34, 0
    %p276 = por %p274, %p275
    %s278 = sadd.s32 %s277, 1
    %p281 = scmp.eq.s32.totalorder %s28, 1
    %p282 = scmp.ne.s32.totalorder %s277, %s279
    %p283 = scmp.eq.s32.totalorder %s28, 0
    %p284 = por %p282, %p283
    %p285 = scmp.ne.s32.totalorder %s277, %s279
    %p286 = scmp.eq.s32.totalorder %s33, 1
    %p287 = por %p285, %p286
    %p288 = scmp.ne.s32.totalorder %s279, %s280
    %p289 = scmp.eq.s32.totalorder %s33, 0
    %p290 = por %p288, %p289
    %p291 = scmp.ne.s32.totalorder %s279, %s280
    %p292 = scmp.eq.s32.totalorder %s34, 1
    %p293 = por %p291, %p292
    %p295 = scmp.ne.s32.totalorder %s280, %s294
    %p296 = scmp.eq.s32.totalorder %s34, 0
    %p297 = por %p295, %p296
    %s299 = sadd.s32 %s298, 1
    %p302 = scmp.eq.s32.totalorder %s28, 1
    %p303 = scmp.ne.s32.totalorder %s298, %s300
    %p304 = scmp.eq.s32.totalorder %s28, 0
    %p305 = por %p303, %p304
    %p306 = scmp.ne.s32.totalorder %s298, %s300
    %p307 = scmp.eq.s32.totalorder %s33, 1
    %p308 = por %p306, %p307
    %p309 = scmp.ne.s32.totalorder %s300, %s301
    %p310 = scmp.eq.s32.totalorder %s33, 0
    %p311 = por %p309, %p310
    %p312 = scmp.ne.s32.totalorder %s300, %s301
    %p313 = scmp.eq.s32.totalorder %s34, 1
    %p314 = por %p312, %p313
    %p316 = scmp.ne.s32.totalorder %s301, %s315
    %p317 = scmp.eq.s32.totalorder %s34, 0
    %p318 = por %p316, %p317
    %s320 = sadd.s32 %s319, 1
    %p323 = scmp.eq.s32.totalorder %s28, 1
    %p324 = scmp.ne.s32.totalorder %s319, %s321
    %p325 = scmp.eq.s32.totalorder %s28, 0
    %p326 = por %p324, %p325
    %p327 = scmp.ne.s32.totalorder %s319, %s321
    %p328 = scmp.eq.s32.totalorder %s33, 1
    %p329 = por %p327, %p328
    %p330 = scmp.ne.s32.totalorder %s321, %s322
    %p331 = scmp.eq.s32.totalorder %s33, 0
    %p332 = por %p330, %p331
    %p333 = scmp.ne.s32.totalorder %s321, %s322
    %p334 = scmp.eq.s32.totalorder %s34, 1
    %p335 = por %p333, %p334
    %p337 = scmp.ne.s32.totalorder %s322, %s336
    %p338 = scmp.eq.s32.totalorder %s34, 0
    %p339 = por %p337, %p338
    %s341 = sadd.s32 %s340, 1
    %p344 = scmp.eq.s32.totalorder %s28, 1
    %p345 = scmp.ne.s32.totalorder %s340, %s342
    %p346 = scmp.eq.s32.totalorder %s28, 0
    %p347 = por %p345, %p346
    %p348 = scmp.ne.s32.totalorder %s340, %s342
    %p349 = scmp.eq.s32.totalorder %s33, 1
    %p350 = por %p348, %p349
    %p351 = scmp.ne.s32.totalorder %s342, %s343
    %p352 = scmp.eq.s32.totalorder %s33, 0
    %p353 = por %p351, %p352
    %p354 = scmp.ne.s32.totalorder %s342, %s343
    %p355 = scmp.eq.s32.totalorder %s34, 1
    %p356 = por %p354, %p355
    %p358 = scmp.ne.s32.totalorder %s343, %s357
    %p359 = scmp.eq.s32.totalorder %s34, 0
    %p360 = por %p358, %p359
    %s362 = sadd.s32 %s361, 1
    %p365 = scmp.eq.s32.totalorder %s28, 1
    %p366 = scmp.ne.s32.totalorder %s361, %s363
    %p367 = scmp.eq.s32.totalorder %s28, 0
    %p368 = por %p366, %p367
    %p369 = scmp.ne.s32.totalorder %s361, %s363
    %p370 = scmp.eq.s32.totalorder %s33, 1
    %p371 = por %p369, %p370
    %p372 = scmp.ne.s32.totalorder %s363, %s364
    %p373 = scmp.eq.s32.totalorder %s33, 0
    %p374 = por %p372, %p373
    %p375 = scmp.ne.s32.totalorder %s363, %s364
    %p376 = scmp.eq.s32.totalorder %s34, 1
    %p377 = por %p375, %p376
    %p379 = scmp.ne.s32.totalorder %s364, %s378
    %p380 = scmp.eq.s32.totalorder %s34, 0
    %p381 = por %p379, %p380
    %s383 = sadd.s32 %s382, 1
    %p386 = scmp.eq.s32.totalorder %s28, 1
    %p387 = scmp.ne.s32.totalorder %s382, %s384
    %p388 = scmp.eq.s32.totalorder %s28, 0
    %p389 = por %p387, %p388
    %p390 = scmp.ne.s32.totalorder %s382, %s384
    %p391 = scmp.eq.s32.totalorder %s33, 1
    %p392 = por %p390, %p391
    %p393 = scmp.ne.s32.totalorder %s384, %s385
    %p394 = scmp.eq.s32.totalorder %s33, 0
    %p395 = por %p393, %p394
    %p396 = scmp.ne.s32.totalorder %s384, %s385
    %p397 = scmp.eq.s32.totalorder %s34, 1
    %p398 = por %p396, %p397
    %p400 = scmp.ne.s32.totalorder %s385, %s399
    %p401 = scmp.eq.s32.totalorder %s34, 0
    %p402 = por %p400, %p401
    %s404 = sadd.s32 %s403, 1
    %p407 = scmp.eq.s32.totalorder %s28, 1
    %p408 = scmp.ne.s32.totalorder %s403, %s405
    %p409 = scmp.eq.s32.totalorder %s28, 0
    %p410 = por %p408, %p409
    %p411 = scmp.ne.s32.totalorder %s403, %s405
    %p412 = scmp.eq.s32.totalorder %s33, 1
    %p413 = por %p411, %p412
    %p414 = scmp.ne.s32.totalorder %s405, %s406
    %p415 = scmp.eq.s32.totalorder %s33, 0
    %p416 = por %p414, %p415
    %p417 = scmp.ne.s32.totalorder %s405, %s406
    %p418 = scmp.eq.s32.totalorder %s34, 1
    %p419 = por %p417, %p418
    %p421 = scmp.ne.s32.totalorder %s406, %s420
    %p422 = scmp.eq.s32.totalorder %s34, 0
    %p423 = por %p421, %p422
    %s425 = sadd.s32 %s424, 1
    %p428 = scmp.eq.s32.totalorder %s28, 1
    %p429 = scmp.ne.s32.totalorder %s424, %s426
    %p430 = scmp.eq.s32.totalorder %s28, 0
    %p431 = por %p429, %p430
    %p432 = scmp.ne.s32.totalorder %s424, %s426
    %p433 = scmp.eq.s32.totalorder %s33, 1
    %p434 = por %p432, %p433
    %p435 = scmp.ne.s32.totalorder %s426, %s427
    %p436 = scmp.eq.s32.totalorder %s33, 0
    %p437 = por %p435, %p436
    %p438 = scmp.ne.s32.totalorder %s426, %s427
    %p439 = scmp.eq.s32.totalorder %s34, 1
    %p440 = por %p438, %p439
    %p442 = scmp.ne.s32.totalorder %s427, %s441
    %p443 = scmp.eq.s32.totalorder %s34, 0
    %p444 = por %p442, %p443
    %s446 = sadd.s32 %s445, 1
    %p449 = scmp.eq.s32.totalorder %s28, 1
    %p450 = scmp.ne.s32.totalorder %s445, %s447
    %p451 = scmp.eq.s32.totalorder %s28, 0
    %p452 = por %p450, %p451
    %p453 = scmp.ne.s32.totalorder %s445, %s447
    %p454 = scmp.eq.s32.totalorder %s33, 1
    %p455 = por %p453, %p454
    %p456 = scmp.ne.s32.totalorder %s447, %s448
    %p457 = scmp.eq.s32.totalorder %s33, 0
    %p458 = por %p456, %p457
    %p459 = scmp.ne.s32.totalorder %s447, %s448
    %p460 = scmp.eq.s32.totalorder %s34, 1
    %p461 = por %p459, %p460
    %p463 = scmp.ne.s32.totalorder %s448, %s462
    %p464 = scmp.eq.s32.totalorder %s34, 0
    %p465 = por %p463, %p464
    %s467 = sadd.s32 %s466, 1
    %p470 = scmp.eq.s32.totalorder %s28, 1
    %p471 = scmp.ne.s32.totalorder %s466, %s468
    %p472 = scmp.eq.s32.totalorder %s28, 0
    %p473 = por %p471, %p472
    %p474 = scmp.ne.s32.totalorder %s466, %s468
    %p475 = scmp.eq.s32.totalorder %s33, 1
    %p476 = por %p474, %p475
    %p477 = scmp.ne.s32.totalorder %s468, %s469
    %p478 = scmp.eq.s32.totalorder %s33, 0
    %p479 = por %p477, %p478
    %p480 = scmp.ne.s32.totalorder %s468, %s469
    %p481 = scmp.eq.s32.totalorder %s34, 1
    %p482 = por %p480, %p481
    %p484 = scmp.ne.s32.totalorder %s469, %s483
    %p485 = scmp.eq.s32.totalorder %s34, 0
    %p486 = por %p484, %p485
    %s488 = sadd.s32 %s487, 1
    %p491 = scmp.eq.s32.totalorder %s28, 1
    %p492 = scmp.ne.s32.totalorder %s487, %s489
    %p493 = scmp.eq.s32.totalorder %s28, 0
    %p494 = por %p492, %p493
    %p495 = scmp.ne.s32.totalorder %s487, %s489
    %p496 = scmp.eq.s32.totalorder %s33, 1
    %p497 = por %p495, %p496
    %p498 = scmp.ne.s32.totalorder %s489, %s490
    %p499 = scmp.eq.s32.totalorder %s33, 0
    %p500 = por %p498, %p499
    %p501 = scmp.ne.s32.totalorder %s489, %s490
    %p502 = scmp.eq.s32.totalorder %s34, 1
    %p503 = por %p501, %p502
    %p505 = scmp.ne.s32.totalorder %s490, %s504
    %p506 = scmp.eq.s32.totalorder %s34, 0
    %p507 = por %p505, %p506
    %s508 = ssub.s32 %s28, %s35
    %p509 = scmp.eq.s32.totalorder %s508, 0
    %s511 = sadd.s32 %s510, 1
    %s512 = scalar_select %p509, %s510, %s511
    %p515 = pneg %p509
    %p516 = scmp.eq.s32.totalorder %s28, 1
    %p517 = por %p515, %p516
    %p518 = scmp.ne.s32.totalorder %s510, %s513
    %p519 = scmp.eq.s32.totalorder %s28, 0
    %p520 = por %p518, %p519
    %p521 = scmp.ne.s32.totalorder %s510, %s513
    %p522 = scmp.eq.s32.totalorder %s33, 1
    %p523 = por %p521, %p522
    %p524 = scmp.ne.s32.totalorder %s513, %s514
    %p525 = scmp.eq.s32.totalorder %s33, 0
    %p526 = por %p524, %p525
    %p527 = scmp.ne.s32.totalorder %s513, %s514
    %p528 = scmp.eq.s32.totalorder %s34, 1
    %p529 = por %p527, %p528
    %p531 = scmp.ne.s32.totalorder %s514, %s530
    %p532 = scmp.eq.s32.totalorder %s34, 0
    %p533 = por %p531, %p532
    %p534 = scmp.le.s32.totalorder 1, %s28
    %p535 = scmp.lt.s32.totalorder %s28, 3
    %p536 = pnand %p534, %p535
    %p537 = pneg %p536
    // Predicated region
    $region9: #{astgcn_block_forward.1} parent=5 // pred_check
      _
    $region10: #{astgcn_block_forward.1} parent=5 // pred_check_branch
      %539 = sbr.rel (%p536) target = $region12
    $region11: #{astgcn_block_forward.1} parent=5 // pred_region
      %s540 = ssub.s32 %s28, 1
      // Predicated region
      $region13: #{astgcn_block_forward.1} parent=11 // pred_check
        %p541 = pneg %p101
      $region14: #{astgcn_block_forward.1} parent=11 // pred_check_branch
        %543 = sbr.rel (%p541) target = $region16
      $region15: #{astgcn_block_forward.1} parent=11 // pred_region
        _
      $region16: #{astgcn_block_forward.1} parent=11 // pred_fallthru
        _
      // Predicated region
      $region17: #{astgcn_block_forward.1} parent=11 // pred_check
        %p544 = pneg %p122
      $region18: #{astgcn_block_forward.1} parent=11 // pred_check_branch
        %546 = sbr.rel (%p544) target = $region20
      $region19: #{astgcn_block_forward.1} parent=11 // pred_region
        _
      $region20: #{astgcn_block_forward.1} parent=11 // pred_fallthru
        _
      // Predicated region
      $region21: #{astgcn_block_forward.1} parent=11 // pred_check
        %p547 = pneg %p143
      $region22: #{astgcn_block_forward.1} parent=11 // pred_check_branch
        %549 = sbr.rel (%p547) target = $region24
      $region23: #{astgcn_block_forward.1} parent=11 // pred_region
        _
      $region24: #{astgcn_block_forward.1} parent=11 // pred_fallthru
        _
      // Predicated region
      $region25: #{astgcn_block_forward.1} parent=11 // pred_check
        %p550 = pneg %p164
      $region26: #{astgcn_block_forward.1} parent=11 // pred_check_branch
        %552 = sbr.rel (%p550) target = $region28
      $region27: #{astgcn_block_forward.1} parent=11 // pred_region
        _
      $region28: #{astgcn_block_forward.1} parent=11 // pred_fallthru
        _
      // Predicated region
      $region29: #{astgcn_block_forward.1} parent=11 // pred_check
        %p553 = pneg %p185
      $region30: #{astgcn_block_forward.1} parent=11 // pred_check_branch
        %555 = sbr.rel (%p553) target = $region32
      $region31: #{astgcn_block_forward.1} parent=11 // pred_region
        _
      $region32: #{astgcn_block_forward.1} parent=11 // pred_fallthru
        _
      // Predicated region
      $region33: #{astgcn_block_forward.1} parent=11 // pred_check
        %p556 = pneg %p206
      $region34: #{astgcn_block_forward.1} parent=11 // pred_check_branch
        %558 = sbr.rel (%p556) target = $region36
      $region35: #{astgcn_block_forward.1} parent=11 // pred_region
        _
      $region36: #{astgcn_block_forward.1} parent=11 // pred_fallthru
        _
      // Predicated region
      $region37: #{astgcn_block_forward.1} parent=11 // pred_check
        %p559 = pneg %p227
      $region38: #{astgcn_block_forward.1} parent=11 // pred_check_branch
        %561 = sbr.rel (%p559) target = $region40
      $region39: #{astgcn_block_forward.1} parent=11 // pred_region
        _
      $region40: #{astgcn_block_forward.1} parent=11 // pred_fallthru
        _
      // Predicated region
      $region41: #{astgcn_block_forward.1} parent=11 // pred_check
        %p562 = pneg %p248
      $region42: #{astgcn_block_forward.1} parent=11 // pred_check_branch
        %564 = sbr.rel (%p562) target = $region44
      $region43: #{astgcn_block_forward.1} parent=11 // pred_region
        _
      $region44: #{astgcn_block_forward.1} parent=11 // pred_fallthru
        _
      // Predicated region
      $region45: #{astgcn_block_forward.1} parent=11 // pred_check
        %p565 = pneg %p269
      $region46: #{astgcn_block_forward.1} parent=11 // pred_check_branch
        %567 = sbr.rel (%p565) target = $region48
      $region47: #{astgcn_block_forward.1} parent=11 // pred_region
        _
      $region48: #{astgcn_block_forward.1} parent=11 // pred_fallthru
        _
      // Predicated region
      $region49: #{astgcn_block_forward.1} parent=11 // pred_check
        %p568 = pneg %p290
      $region50: #{astgcn_block_forward.1} parent=11 // pred_check_branch
        %570 = sbr.rel (%p568) target = $region52
      $region51: #{astgcn_block_forward.1} parent=11 // pred_region
        _
      $region52: #{astgcn_block_forward.1} parent=11 // pred_fallthru
        _
      // Predicated region
      $region53: #{astgcn_block_forward.1} parent=11 // pred_check
        %p571 = pneg %p311
      $region54: #{astgcn_block_forward.1} parent=11 // pred_check_branch
        %573 = sbr.rel (%p571) target = $region56
      $region55: #{astgcn_block_forward.1} parent=11 // pred_region
        _
      $region56: #{astgcn_block_forward.1} parent=11 // pred_fallthru
        _
      // Predicated region
      $region57: #{astgcn_block_forward.1} parent=11 // pred_check
        %p574 = pneg %p332
      $region58: #{astgcn_block_forward.1} parent=11 // pred_check_branch
        %576 = sbr.rel (%p574) target = $region60
      $region59: #{astgcn_block_forward.1} parent=11 // pred_region
        _
      $region60: #{astgcn_block_forward.1} parent=11 // pred_fallthru
        _
      // Predicated region
      $region61: #{astgcn_block_forward.1} parent=11 // pred_check
        %p577 = pneg %p353
      $region62: #{astgcn_block_forward.1} parent=11 // pred_check_branch
        %579 = sbr.rel (%p577) target = $region64
      $region63: #{astgcn_block_forward.1} parent=11 // pred_region
        _
      $region64: #{astgcn_block_forward.1} parent=11 // pred_fallthru
        _
      // Predicated region
      $region65: #{astgcn_block_forward.1} parent=11 // pred_check
        %p580 = pneg %p374
      $region66: #{astgcn_block_forward.1} parent=11 // pred_check_branch
        %582 = sbr.rel (%p580) target = $region68
      $region67: #{astgcn_block_forward.1} parent=11 // pred_region
        _
      $region68: #{astgcn_block_forward.1} parent=11 // pred_fallthru
        _
      // Predicated region
      $region69: #{astgcn_block_forward.1} parent=11 // pred_check
        %p583 = pneg %p395
      $region70: #{astgcn_block_forward.1} parent=11 // pred_check_branch
        %585 = sbr.rel (%p583) target = $region72
      $region71: #{astgcn_block_forward.1} parent=11 // pred_region
        _
      $region72: #{astgcn_block_forward.1} parent=11 // pred_fallthru
        _
      // Predicated region
      $region73: #{astgcn_block_forward.1} parent=11 // pred_check
        %p586 = pneg %p416
      $region74: #{astgcn_block_forward.1} parent=11 // pred_check_branch
        %588 = sbr.rel (%p586) target = $region76
      $region75: #{astgcn_block_forward.1} parent=11 // pred_region
        _
      $region76: #{astgcn_block_forward.1} parent=11 // pred_fallthru
        _
      // Predicated region
      $region77: #{astgcn_block_forward.1} parent=11 // pred_check
        %p589 = pneg %p437
      $region78: #{astgcn_block_forward.1} parent=11 // pred_check_branch
        %591 = sbr.rel (%p589) target = $region80
      $region79: #{astgcn_block_forward.1} parent=11 // pred_region
        _
      $region80: #{astgcn_block_forward.1} parent=11 // pred_fallthru
        _
      // Predicated region
      $region81: #{astgcn_block_forward.1} parent=11 // pred_check
        %p592 = pneg %p458
      $region82: #{astgcn_block_forward.1} parent=11 // pred_check_branch
        %594 = sbr.rel (%p592) target = $region84
      $region83: #{astgcn_block_forward.1} parent=11 // pred_region
        _
      $region84: #{astgcn_block_forward.1} parent=11 // pred_fallthru
        _
      // Predicated region
      $region85: #{astgcn_block_forward.1} parent=11 // pred_check
        %p595 = pneg %p479
      $region86: #{astgcn_block_forward.1} parent=11 // pred_check_branch
        %597 = sbr.rel (%p595) target = $region88
      $region87: #{astgcn_block_forward.1} parent=11 // pred_region
        _
      $region88: #{astgcn_block_forward.1} parent=11 // pred_fallthru
        _
      // Predicated region
      $region89: #{astgcn_block_forward.1} parent=11 // pred_check
        %p598 = pneg %p500
      $region90: #{astgcn_block_forward.1} parent=11 // pred_check_branch
        %600 = sbr.rel (%p598) target = $region92
      $region91: #{astgcn_block_forward.1} parent=11 // pred_region
        _
      $region92: #{astgcn_block_forward.1} parent=11 // pred_fallthru
        _
    $region12: #{astgcn_block_forward.1} parent=5 // pred_fallthru
      _
    %p601 = scmp.lt.s32.totalorder %s28, 2
    // Predicated region
    $region93: #{astgcn_block_forward.1} parent=5 // pred_check
      %p602 = pneg %p601
    $region94: #{astgcn_block_forward.1} parent=5 // pred_check_branch
      %604 = sbr.rel (%p602) target = $region96
    $region95: #{astgcn_block_forward.1} parent=5 // pred_region
      // Predicated region
      $region97: #{astgcn_block_forward.1} parent=95 // pred_check
        %p605 = pneg %p48
      $region98: #{astgcn_block_forward.1} parent=95 // pred_check_branch
        %607 = sbr.rel (%p605) target = $region100
      $region99: #{astgcn_block_forward.1} parent=95 // pred_region
        %s608 = smul.u32 4, %s28
        %p609 = scmp.lt.s32.totalorder %s608, 7
        %s610 = scalar_select %p609, %s608, 7
        %s611 = smul.addr %s610, 8
        %s612 = scalar_lea.vmem %s0, %s611
        %s613 = smul.u32 4, %s28
      $region100: #{astgcn_block_forward.1} parent=95 // pred_fallthru
        _
      // Predicated region
      $region101: #{astgcn_block_forward.1} parent=95 // pred_check
        %p614 = pneg %p74
      $region102: #{astgcn_block_forward.1} parent=95 // pred_check_branch
        %616 = sbr.rel (%p614) target = $region104
      $region103: #{astgcn_block_forward.1} parent=95 // pred_region
        %s617 = smul.u32 2, %s28
        %p618 = scmp.lt.s32.totalorder %s617, 3
        %s619 = scalar_select %p618, %s617, 3
        %s620 = smul.addr %s619, 4
        %s621 = scalar_lea.vmem %s1, %s620
        %s622 = smul.u32 2, %s28
      $region104: #{astgcn_block_forward.1} parent=95 // pred_fallthru
        _
    $region96: #{astgcn_block_forward.1} parent=5 // pred_fallthru
      _
    %p623 = scmp.le.s32.totalorder 1, %s28
    %p624 = scmp.lt.s32.totalorder %s28, 3
    %p625 = pnand %p623, %p624
    %p626 = pneg %p625
    // Predicated region
    $region105: #{astgcn_block_forward.1} parent=5 // pred_check
      _
    $region106: #{astgcn_block_forward.1} parent=5 // pred_check_branch
      %628 = sbr.rel (%p625) target = $region108
    $region107: #{astgcn_block_forward.1} parent=5 // pred_region
      %s629 = ssub.s32 %s28, 1
      %s630 = smul.u32 4, %s33
      %p631 = scmp.lt.s32.totalorder %s630, 7
      %s632 = scalar_select %p631, %s630, 7
      %s633 = smul.addr %s632, 8
      %s634 = scalar_lea.vmem %s0, %s633
      %p635 = pneg %p54
      %p636 = pneg %p51
      %s637 = smul.u32 2, %s33
      %p638 = scmp.lt.s32.totalorder %s637, 3
      %s639 = scalar_select %p638, %s637, 3
      %s640 = smul.addr %s639, 4
      %s641 = scalar_lea.vmem %s1, %s640
      %p642 = pneg %p80
      %p643 = pneg %p77
      %p644 = pneg %p101
      %p645 = pneg %p98
      %p646 = pneg %p122
      %p647 = pneg %p119
      %p648 = pneg %p143
      %p649 = pneg %p140
      %p650 = pneg %p164
      %p651 = pneg %p161
      %p652 = pneg %p185
      %p653 = pneg %p182
      %p654 = pneg %p206
      %p655 = pneg %p203
      %p656 = pneg %p227
      %p657 = pneg %p224
      %p658 = pneg %p248
      %p659 = pneg %p245
      %p660 = pneg %p269
      %p661 = pneg %p266
      %p662 = pneg %p290
      %p663 = pneg %p287
      %p664 = pneg %p311
      %p665 = pneg %p308
      %p666 = pneg %p332
      %p667 = pneg %p329
      %p668 = pneg %p353
      %p669 = pneg %p350
      %p670 = pneg %p374
      %p671 = pneg %p371
      %p672 = pneg %p395
      %p673 = pneg %p392
      %p674 = pneg %p416
      %p675 = pneg %p413
      %p676 = pneg %p437
      %p677 = pneg %p434
      %p678 = pneg %p458
      %p679 = pneg %p455
      %p680 = pneg %p479
      %p681 = pneg %p476
      %p682 = pneg %p500
      %p683 = pneg %p497
      %p684 = pneg %p526
      %p685 = pneg %p523
      %s686 = smul.u32 4, %s33
      %p687 = scmp.lt.s32.totalorder %s686, 7
      %s688 = scalar_select %p687, %s686, 7
      %s689 = smul.addr %s688, 2
      %s690 = smul.addr %s689, 8
      %s691 = scalar_lea.vmem %s22, %s690
      %s692 = smul.u32 4, %s33
      %p693 = scmp.lt.s32.totalorder %s692, 7
      %s694 = scalar_select %p693, %s692, 7
      %s695 = smul.addr %s694, 8
      %s696 = scalar_lea.vmem %s0, %s695
      %s697 = smul.u32 4, %s33
      %s698 = smul.u32 2, %s33
      %p699 = scmp.lt.s32.totalorder %s698, 3
      %s700 = scalar_select %p699, %s698, 3
      %s701 = smul.addr %s700, 4
      %s702 = scalar_lea.vmem %s1, %s701
      %s703 = smul.u32 2, %s33
      %s704 = smul.u32 4, %s33
      %p705 = scmp.lt.s32.totalorder %s704, 7
      %s706 = scalar_select %p705, %s704, 7
      %s707 = smul.addr %s706, 2
      %s708 = smul.addr %s707, 8
      %s709 = scalar_lea.vmem %s22, %s708
      %s710 = smul.u32 4, %s33
      %v712 = vld [vmem:[%s696] sm:$0xff]
      %v713 = vld [vmem:[%s696 + $0x8] sm:$0xff]
      %v714 = vld [vmem:[%s696 + $0x10] sm:$0xff]
      %v715 = vld [vmem:[%s696 + $0x18] sm:$0xff]
      %v716 = vld [vmem:[%s4] sm:$0xff]
      %v717 = vld [vmem:[%s4 + $0x8] sm:$0xff]
      %v718 = vld [vmem:[%s4 + $0x10] sm:$0xff]
      %v719 = vld [vmem:[%s4 + $0x18] sm:$0xff]
      %vm720 = vcmask 261120
      %v722 = vsel %vm720, %v712, 0
      %v725 = vsel %vm720, %v713, 0
      %v728 = vsel %vm720, %v714, 0
      %v731 = vsel %vm720, %v715, 0
      %733 = vmatprep.subr.mxu0 0.0
      %734 = vmatpush1.msra.mxu0 %v716
      %735 = vmatprep.subr.mxu0 0.0
      %736 = vmatpush1.msra.mxu0 %v717
      %737 = vmatprep.subr.mxu0 0.0
      %738 = vmatpush1.msra.mxu0 %v718
      %739 = vmatprep.subr.mxu0 0.0
      %740 = vmatpush1.msra.mxu0 %v719
      %741 = vmatprep.subr.mxu0 0.0
      %742 = vmatpush1.msra.mxu0 0.0
      %743 = vmatprep.subr.mxu0 0.0
      %744 = vmatpush1.msra.mxu0 0.0
      %745 = vmatprep.subr.mxu0 0.0
      %746 = vmatpush1.msra.mxu0 0.0
      %747 = vmatprep.subr.mxu0 0.0
      %748 = vmatpush1.msra.mxu0 0.0
      %749 = vmatprep.subr.mxu0 0.0
      %750 = vmatpush1.msra.mxu0 0.0
      %751 = vmatprep.subr.mxu0 0.0
      %752 = vmatpush1.msra.mxu0 0.0
      %753 = vmatprep.subr.mxu0 0.0
      %754 = vmatpush1.msra.mxu0 0.0
      %755 = vmatprep.subr.mxu0 0.0
      %756 = vmatpush1.msra.mxu0 0.0
      %757 = vmatprep.subr.mxu0 0.0
      %758 = vmatpush1.msra.mxu0 0.0
      %759 = vmatprep.subr.mxu0 0.0
      %760 = vmatpush1.msra.mxu0 0.0
      %761 = vmatprep.subr.mxu0 0.0
      %762 = vmatpush1.msra.mxu0 0.0
      %763 = vmatprep.subr.mxu0 0.0
      %764 = vmatpush1.msra.mxu0 0.0
      %765 = vmatprep.subr.mxu0 0.0
      %766 = vmatpush1.msra.mxu0 0.0
      %767 = vmatprep.subr.mxu0 0.0
      %768 = vmatpush1.msra.mxu0 0.0
      %769 = vmatprep.subr.mxu0 0.0
      %770 = vmatpush1.msra.mxu0 0.0
      %771 = vmatprep.subr.mxu0 0.0
      %772 = vmatpush1.msra.mxu0 0.0
      %773 = vmatprep.subr.mxu0 0.0
      %774 = vmatpush1.msra.mxu0 0.0
      %775 = vmatprep.subr.mxu0 0.0
      %776 = vmatpush1.msra.mxu0 0.0
      %777 = vmatprep.subr.mxu0 0.0
      %778 = vmatpush1.msra.mxu0 0.0
      %779 = vmatprep.subr.mxu0 0.0
      %780 = vmatpush1.msra.mxu0 0.0
      %781 = vmatprep.subr.mxu0 0.0
      %782 = vmatpush1.msra.mxu0 0.0
      %783 = vmatprep.subr.mxu0 0.0
      %784 = vmatpush1.msra.mxu0 0.0
      %785 = vmatprep.subr.mxu0 0.0
      %786 = vmatpush1.msra.mxu0 0.0
      %787 = vmatprep.subr.mxu0 0.0
      %788 = vmatpush1.msra.mxu0 0.0
      %789 = vmatprep.subr.mxu0 0.0
      %790 = vmatpush1.msra.mxu0 0.0
      %791 = vmatprep.subr.mxu0 0.0
      %792 = vmatpush1.msra.mxu0 0.0
      %793 = vmatprep.subr.mxu0 0.0
      %794 = vmatpush1.msra.mxu0 0.0
      %795 = vmatprep.subr.mxu0 0.0
      %796 = vmatpush1.msra.mxu0 0.0
      %797 = vmatprep.mubr.f32.mxu0 0.0
      %798 = vmatmul.mubr.f32.gmra.mrb[0].mxu0 %v722
      %v799 = vpop.f32.mrb[0].mxu0
      %v800 = vadd.f32 0.0, %v799
      %v801 = vpop.f32.mrb[0].mxu0
      %802 = vmatprep.mubr.f32.mxu0 0.0
      %803 = vmatmul.mubr.f32.gmra.mrb[0].mxu0 %v725
      %v804 = vpop.f32.mrb[0].mxu0
      %v805 = vadd.f32 0.0, %v804
      %v806 = vpop.f32.mrb[0].mxu0
      %807 = vmatprep.mubr.f32.mxu0 0.0
      %808 = vmatmul.mubr.f32.gmra.mrb[0].mxu0 %v728
      %v809 = vpop.f32.mrb[0].mxu0
      %v810 = vadd.f32 0.0, %v809
      %v811 = vpop.f32.mrb[0].mxu0
      %812 = vmatprep.mubr.f32.mxu0 0.0
      %813 = vmatmul.mubr.f32.gmra.mrb[0].mxu0 %v731
      %v814 = vpop.f32.mrb[0].mxu0
      %v815 = vadd.f32 0.0, %v814
      %v816 = vpop.f32.mrb[0].mxu0
      %817 = vdwg.mxu0
      %v818 = vld [vmem:[%s10] sm:$0xff]
      %v819 = vld [vmem:[%s10 + $0x8] sm:$0xff]
      %v820 = vld [vmem:[%s10 + $0x10] sm:$0xff]
      %v821 = vld [vmem:[%s10 + $0x18] sm:$0xff]
      %822 = vmatprep.subr.mxu0 0.0
      %823 = vmatpush1.msra.mxu0 %v818
      %824 = vmatprep.subr.mxu0 0.0
      %825 = vmatpush1.msra.mxu0 %v819
      %826 = vmatprep.subr.mxu0 0.0
      %827 = vmatpush1.msra.mxu0 %v820
      %828 = vmatprep.subr.mxu0 0.0
      %829 = vmatpush1.msra.mxu0 %v821
      %830 = vmatprep.subr.mxu0 0.0
      %831 = vmatpush1.msra.mxu0 0.0
      %832 = vmatprep.subr.mxu0 0.0
      %833 = vmatpush1.msra.mxu0 0.0
      %834 = vmatprep.subr.mxu0 0.0
      %835 = vmatpush1.msra.mxu0 0.0
      %836 = vmatprep.subr.mxu0 0.0
      %837 = vmatpush1.msra.mxu0 0.0
      %838 = vmatprep.subr.mxu0 0.0
      %839 = vmatpush1.msra.mxu0 0.0
      %840 = vmatprep.subr.mxu0 0.0
      %841 = vmatpush1.msra.mxu0 0.0
      %842 = vmatprep.subr.mxu0 0.0
      %843 = vmatpush1.msra.mxu0 0.0
      %844 = vmatprep.subr.mxu0 0.0
      %845 = vmatpush1.msra.mxu0 0.0
      %846 = vmatprep.subr.mxu0 0.0
      %847 = vmatpush1.msra.mxu0 0.0
      %848 = vmatprep.subr.mxu0 0.0
      %849 = vmatpush1.msra.mxu0 0.0
      %850 = vmatprep.subr.mxu0 0.0
      %851 = vmatpush1.msra.mxu0 0.0
      %852 = vmatprep.subr.mxu0 0.0
      %853 = vmatpush1.msra.mxu0 0.0
      %854 = vmatprep.subr.mxu0 0.0
      %855 = vmatpush1.msra.mxu0 0.0
      %856 = vmatprep.subr.mxu0 0.0
      %857 = vmatpush1.msra.mxu0 0.0
      %858 = vmatprep.subr.mxu0 0.0
      %859 = vmatpush1.msra.mxu0 0.0
      %860 = vmatprep.subr.mxu0 0.0
      %861 = vmatpush1.msra.mxu0 0.0
      %862 = vmatprep.subr.mxu0 0.0
      %863 = vmatpush1.msra.mxu0 0.0
      %864 = vmatprep.subr.mxu0 0.0
      %865 = vmatpush1.msra.mxu0 0.0
      %866 = vmatprep.subr.mxu0 0.0
      %867 = vmatpush1.msra.mxu0 0.0
      %868 = vmatprep.subr.mxu0 0.0
      %869 = vmatpush1.msra.mxu0 0.0
      %870 = vmatprep.subr.mxu0 0.0
      %871 = vmatpush1.msra.mxu0 0.0
      %872 = vmatprep.subr.mxu0 0.0
      %873 = vmatpush1.msra.mxu0 0.0
      %874 = vmatprep.subr.mxu0 0.0
      %875 = vmatpush1.msra.mxu0 0.0
      %876 = vmatprep.subr.mxu0 0.0
      %877 = vmatpush1.msra.mxu0 0.0
      %878 = vmatprep.subr.mxu0 0.0
      %879 = vmatpush1.msra.mxu0 0.0
      %880 = vmatprep.subr.mxu0 0.0
      %881 = vmatpush1.msra.mxu0 0.0
      %882 = vmatprep.subr.mxu0 0.0
      %883 = vmatpush1.msra.mxu0 0.0
      %884 = vmatprep.subr.mxu0 0.0
      %885 = vmatpush1.msra.mxu0 0.0
      %886 = vmatprep.mubr.f32.mxu0 0.0
      %887 = vmatmul.mubr.f32.gmra.mrb[0].mxu0 %v722
      %v888 = vpop.f32.mrb[0].mxu0
      %v889 = vadd.f32 0.0, %v888
      %v890 = vpop.f32.mrb[0].mxu0
      %891 = vmatprep.mubr.f32.mxu0 0.0
      %892 = vmatmul.mubr.f32.gmra.mrb[0].mxu0 %v725
      %v893 = vpop.f32.mrb[0].mxu0
      %v894 = vadd.f32 0.0, %v893
      %v895 = vpop.f32.mrb[0].mxu0
      %896 = vmatprep.mubr.f32.mxu0 0.0
      %897 = vmatmul.mubr.f32.gmra.mrb[0].mxu0 %v728
      %v898 = vpop.f32.mrb[0].mxu0
      %v899 = vadd.f32 0.0, %v898
      %v900 = vpop.f32.mrb[0].mxu0
      %901 = vmatprep.mubr.f32.mxu0 0.0
      %902 = vmatmul.mubr.f32.gmra.mrb[0].mxu0 %v731
      %v903 = vpop.f32.mrb[0].mxu0
      %v904 = vadd.f32 0.0, %v903
      %v905 = vpop.f32.mrb[0].mxu0
      %906 = vdwg.mxu0
      %v907 = vld [vmem:[%s3] sm:$0xf]
      %v908 = vld [vmem:[%s5] sm:$0xff]
      %v909 = vld [vmem:[%s6] sm:$0xff]
      %v910 = vld [vmem:[%s7] sm:$0x1]
      %v911 = vld [vmem:[%s11] sm:$0xff]
      %v912 = vld [vmem:[%s11 + $0x8] sm:$0xff]
      %v913 = vld [vmem:[%s12] sm:$0xff]
      %v914 = vld [vmem:[%s12 + $0x8] sm:$0xff]
      %v915 = vld [vmem:[%s9] sm:$0xff]
      %v916 = vld [vmem:[%s8] sm:$0xff]
      %v917 = vld [vmem:[%s8 + $0x8] sm:$0xff]
      %v918 = vld [vmem:[%s8 + $0x10] sm:$0xff]
      %v919 = vld [vmem:[%s8 + $0x18] sm:$0xff]
      %v920 = vld [vmem:[%s2] sm:$0xff]
      %v921 = vld [vmem:[%s2 + $0x8] sm:$0xff]
      %v922 = vld [vmem:[%s2 + $0x10] sm:$0xff]
      %v923 = vld [vmem:[%s2 + $0x18] sm:$0xff]
      %v924 = vld [vmem:[%s2 + $0x20] sm:$0xff]
      %v925 = vld [vmem:[%s2 + $0x28] sm:$0xff]
      %v926 = vld [vmem:[%s2 + $0x30] sm:$0xff]
      %v927 = vld [vmem:[%s2 + $0x38] sm:$0xff]
      %v928 = vld [vmem:[%s2 + $0x40] sm:$0xff]
      %v929 = vld [vmem:[%s2 + $0x48] sm:$0xff]
      %v930 = vld [vmem:[%s2 + $0x50] sm:$0xff]
      %v931 = vld [vmem:[%s2 + $0x58] sm:$0xff]
      %v932 = vld [vmem:[%s2 + $0x60] sm:$0xff]
      %v933 = vld [vmem:[%s2 + $0x68] sm:$0xff]
      %v934 = vld [vmem:[%s2 + $0x70] sm:$0xff]
      %v935 = vld [vmem:[%s2 + $0x78] sm:$0xff]
      %v936 = vld [vmem:[%s702] sm:$0xf]
      %937 = vmatprep.subr.mxu0 0.0
      %938 = vmatpush1.msra.mxu0 %v920
      %939 = vmatprep.subr.mxu0 0.0
      %940 = vmatpush1.msra.mxu0 %v921
      %941 = vmatprep.subr.mxu0 0.0
      %942 = vmatpush1.msra.mxu0 %v922
      %943 = vmatprep.subr.mxu0 0.0
      %944 = vmatpush1.msra.mxu0 %v923
      %945 = vmatprep.subr.mxu0 0.0
      %946 = vmatpush1.msra.mxu0 %v924
      %947 = vmatprep.subr.mxu0 0.0
      %948 = vmatpush1.msra.mxu0 %v925
      %949 = vmatprep.subr.mxu0 0.0
      %950 = vmatpush1.msra.mxu0 %v926
      %951 = vmatprep.subr.mxu0 0.0
      %952 = vmatpush1.msra.mxu0 %v927
      %953 = vmatprep.subr.mxu0 0.0
      %954 = vmatpush1.msra.mxu0 %v928
      %955 = vmatprep.subr.mxu0 0.0
      %956 = vmatpush1.msra.mxu0 %v929
      %957 = vmatprep.subr.mxu0 0.0
      %958 = vmatpush1.msra.mxu0 %v930
      %959 = vmatprep.subr.mxu0 0.0
      %960 = vmatpush1.msra.mxu0 %v931
      %961 = vmatprep.subr.mxu0 0.0
      %962 = vmatpush1.msra.mxu0 %v932
      %963 = vmatprep.subr.mxu0 0.0
      %964 = vmatpush1.msra.mxu0 %v933
      %965 = vmatprep.subr.mxu0 0.0
      %966 = vmatpush1.msra.mxu0 %v934
      %967 = vmatprep.subr.mxu0 0.0
      %968 = vmatpush1.msra.mxu0 %v935
      %969 = vmatprep.subr.mxu0 0.0
      %970 = vmatpush1.msra.mxu0 0.0
      %971 = vmatprep.subr.mxu0 0.0
      %972 = vmatpush1.msra.mxu0 0.0
      %973 = vmatprep.subr.mxu0 0.0
      %974 = vmatpush1.msra.mxu0 0.0
      %975 = vmatprep.subr.mxu0 0.0
      %976 = vmatpush1.msra.mxu0 0.0
      %977 = vmatprep.subr.mxu0 0.0
      %978 = vmatpush1.msra.mxu0 0.0
      %979 = vmatprep.subr.mxu0 0.0
      %980 = vmatpush1.msra.mxu0 0.0
      %981 = vmatprep.subr.mxu0 0.0
      %982 = vmatpush1.msra.mxu0 0.0
      %983 = vmatprep.subr.mxu0 0.0
      %984 = vmatpush1.msra.mxu0 0.0
      %985 = vmatprep.subr.mxu0 0.0
      %986 = vmatpush1.msra.mxu0 0.0
      %987 = vmatprep.subr.mxu0 0.0
      %988 = vmatpush1.msra.mxu0 0.0
      %989 = vmatprep.subr.mxu0 0.0
      %990 = vmatpush1.msra.mxu0 0.0
      %991 = vmatprep.subr.mxu0 0.0
      %992 = vmatpush1.msra.mxu0 0.0
      %993 = vmatprep.subr.mxu0 0.0
      %994 = vmatpush1.msra.mxu0 0.0
      %995 = vmatprep.subr.mxu0 0.0
      %996 = vmatpush1.msra.mxu0 0.0
      %997 = vmatprep.subr.mxu0 0.0
      %998 = vmatpush1.msra.mxu0 0.0
      %999 = vmatprep.subr.mxu0 0.0
      %1000 = vmatpush1.msra.mxu0 0.0
      %1001 = vmatprep.mubr.f32.mxu0 0.0
      %1002 = vmatmul.mubr.f32.gmra.mrb[0].mxu0 %v936
      %v1003 = vpop.f32.mrb[0].mxu0
      %v1004 = vadd.f32 0.0, %v1003
      %v1005 = vpop.f32.mrb[0].mxu0
      %1006 = vdwg.mxu0
      %vm1007 = vcmask 130048
      %v1009 = vsel %vm1007, %v907, 0
      %1011 = vmatprep.subr.mxu0 0.0
      %1012 = vmatpush1.msra.mxu0 %v800
      %1013 = vmatprep.subr.mxu0 0.0
      %1014 = vmatpush1.msra.mxu0 %v805
      %1015 = vmatprep.subr.mxu0 0.0
      %1016 = vmatpush1.msra.mxu0 0.0
      %1017 = vmatprep.subr.mxu0 0.0
      %1018 = vmatpush1.msra.mxu0 0.0
      %1019 = vmatprep.subr.mxu0 0.0
      %1020 = vmatpush1.msra.mxu0 0.0
      %1021 = vmatprep.subr.mxu0 0.0
      %1022 = vmatpush1.msra.mxu0 0.0
      %1023 = vmatprep.subr.mxu0 0.0
      %1024 = vmatpush1.msra.mxu0 0.0
      %1025 = vmatprep.subr.mxu0 0.0
      %1026 = vmatpush1.msra.mxu0 0.0
      %1027 = vmatprep.subr.mxu0 0.0
      %1028 = vmatpush1.msra.mxu0 0.0
      %1029 = vmatprep.subr.mxu0 0.0
      %1030 = vmatpush1.msra.mxu0 0.0
      %1031 = vmatprep.subr.mxu0 0.0
      %1032 = vmatpush1.msra.mxu0 0.0
      %1033 = vmatprep.subr.mxu0 0.0
      %1034 = vmatpush1.msra.mxu0 0.0
      %1035 = vmatprep.subr.mxu0 0.0
      %1036 = vmatpush1.msra.mxu0 0.0
      %1037 = vmatprep.subr.mxu0 0.0
      %1038 = vmatpush1.msra.mxu0 0.0
      %1039 = vmatprep.subr.mxu0 0.0
      %1040 = vmatpush1.msra.mxu0 0.0
      %1041 = vmatprep.subr.mxu0 0.0
      %1042 = vmatpush1.msra.mxu0 0.0
      %1043 = vmatprep.subr.mxu0 0.0
      %1044 = vmatpush1.msra.mxu0 0.0
      %1045 = vmatprep.subr.mxu0 0.0
      %1046 = vmatpush1.msra.mxu0 0.0
      %1047 = vmatprep.subr.mxu0 0.0
      %1048 = vmatpush1.msra.mxu0 0.0
      %1049 = vmatprep.subr.mxu0 0.0
      %1050 = vmatpush1.msra.mxu0 0.0
      %1051 = vmatprep.subr.mxu0 0.0
      %1052 = vmatpush1.msra.mxu0 0.0
      %1053 = vmatprep.subr.mxu0 0.0
      %1054 = vmatpush1.msra.mxu0 0.0
      %1055 = vmatprep.subr.mxu0 0.0
      %1056 = vmatpush1.msra.mxu0 0.0
      %1057 = vmatprep.subr.mxu0 0.0
      %1058 = vmatpush1.msra.mxu0 0.0
      %1059 = vmatprep.subr.mxu0 0.0
      %1060 = vmatpush1.msra.mxu0 0.0
      %1061 = vmatprep.subr.mxu0 0.0
      %1062 = vmatpush1.msra.mxu0 0.0
      %1063 = vmatprep.subr.mxu0 0.0
      %1064 = vmatpush1.msra.mxu0 0.0
      %1065 = vmatprep.subr.mxu0 0.0
      %1066 = vmatpush1.msra.mxu0 0.0
      %1067 = vmatprep.subr.mxu0 0.0
      %1068 = vmatpush1.msra.mxu0 0.0
      %1069 = vmatprep.subr.mxu0 0.0
      %1070 = vmatpush1.msra.mxu0 0.0
      %1071 = vmatprep.subr.mxu0 0.0
      %1072 = vmatpush1.msra.mxu0 0.0
      %1073 = vmatprep.subr.mxu0 0.0
      %1074 = vmatpush1.msra.mxu0 0.0
      %1075 = vmatprep.mubr.f32.mxu0 0.0
      %1076 = vmatmul.mubr.f32.gmra.mrb[0].mxu0 %v1009
      %v1077 = vpop.f32.mrb[0].mxu0
      %v1078 = vadd.f32 0.0, %v1077
      %v1079 = vpop.f32.mrb[0].mxu0
      %1080 = vdwg.mxu0
      %1081 = vxpose.xlu0.b32.start [1/16] %v1004, 128
      %1082 = vxpose.xlu0.b32.cont [2/16] 0.0, 128
      %1083 = vxpose.xlu0.b32.cont [3/16] 0.0, 128
      %1084 = vxpose.xlu0.b32.cont [4/16] 0.0, 128
      %1085 = vxpose.xlu0.b32.cont [5/16] 0.0, 128
      %1086 = vxpose.xlu0.b32.cont [6/16] 0.0, 128
      %1087 = vxpose.xlu0.b32.cont [7/16] 0.0, 128
      %1088 = vxpose.xlu0.b32.cont [8/16] 0.0, 128
      %1089 = vxpose.xlu0.b32.cont [9/16] 0.0, 128
      %1090 = vxpose.xlu0.b32.cont [10/16] 0.0, 128
      %1091 = vxpose.xlu0.b32.cont [11/16] 0.0, 128
      %1092 = vxpose.xlu0.b32.cont [12/16] 0.0, 128
      %1093 = vxpose.xlu0.b32.cont [13/16] 0.0, 128
      %1094 = vxpose.xlu0.b32.cont [14/16] 0.0, 128
      %1095 = vxpose.xlu0.b32.cont [15/16] 0.0, 128
      %1096 = vxpose.xlu0.b32.end [16/16] 0.0, 128
      %v1097 = vpop.trf.xlu0
      %v1098 = vpop.trf.xlu0
      %v1099 = vpop.trf.xlu0
      %v1100 = vpop.trf.xlu0
      %v1101 = vpop.trf.xlu0
      %v1102 = vpop.trf.xlu0
      %v1103 = vpop.trf.xlu0
      %v1104 = vpop.trf.xlu0
      %v1105 = vpop.trf.xlu0
      %v1106 = vpop.trf.xlu0
      %v1107 = vpop.trf.xlu0
      %v1108 = vpop.trf.xlu0
      %v1109 = vpop.trf.xlu0
      %v1110 = vpop.trf.xlu0
      %v1111 = vpop.trf.xlu0
      %v1112 = vpop.trf.xlu0
      %vm1113 = vcmask 31744
      %v1115 = vsel %vm1113, %v1097, 0
      %vm1117 = vcmask 1043456
      %v1119 = vsel %vm1117, %v1078, 0
      %1121 = vmatprep.subr.mxu0 0.0
      %1122 = vmatpush1.msra.mxu0 %v1119
      %1123 = vmatprep.subr.mxu0 0.0
      %1124 = vmatpush1.msra.mxu0 0.0
      %1125 = vmatprep.subr.mxu0 0.0
      %1126 = vmatpush1.msra.mxu0 0.0
      %1127 = vmatprep.subr.mxu0 0.0
      %1128 = vmatpush1.msra.mxu0 0.0
      %1129 = vmatprep.subr.mxu0 0.0
      %1130 = vmatpush1.msra.mxu0 0.0
      %1131 = vmatprep.subr.mxu0 0.0
      %1132 = vmatpush1.msra.mxu0 0.0
      %1133 = vmatprep.subr.mxu0 0.0
      %1134 = vmatpush1.msra.mxu0 0.0
      %1135 = vmatprep.subr.mxu0 0.0
      %1136 = vmatpush1.msra.mxu0 0.0
      %1137 = vmatprep.subr.mxu0 0.0
      %1138 = vmatpush1.msra.mxu0 0.0
      %1139 = vmatprep.subr.mxu0 0.0
      %1140 = vmatpush1.msra.mxu0 0.0
      %1141 = vmatprep.subr.mxu0 0.0
      %1142 = vmatpush1.msra.mxu0 0.0
      %1143 = vmatprep.subr.mxu0 0.0
      %1144 = vmatpush1.msra.mxu0 0.0
      %1145 = vmatprep.subr.mxu0 0.0
      %1146 = vmatpush1.msra.mxu0 0.0
      %1147 = vmatprep.subr.mxu0 0.0
      %1148 = vmatpush1.msra.mxu0 0.0
      %1149 = vmatprep.subr.mxu0 0.0
      %1150 = vmatpush1.msra.mxu0 0.0
      %1151 = vmatprep.subr.mxu0 0.0
      %1152 = vmatpush1.msra.mxu0 0.0
      %1153 = vmatprep.subr.mxu0 0.0
      %1154 = vmatpush1.msra.mxu0 0.0
      %1155 = vmatprep.subr.mxu0 0.0
      %1156 = vmatpush1.msra.mxu0 0.0
      %1157 = vmatprep.subr.mxu0 0.0
      %1158 = vmatpush1.msra.mxu0 0.0
      %1159 = vmatprep.subr.mxu0 0.0
      %1160 = vmatpush1.msra.mxu0 0.0
      %1161 = vmatprep.subr.mxu0 0.0
      %1162 = vmatpush1.msra.mxu0 0.0
      %1163 = vmatprep.subr.mxu0 0.0
      %1164 = vmatpush1.msra.mxu0 0.0
      %1165 = vmatprep.subr.mxu0 0.0
      %1166 = vmatpush1.msra.mxu0 0.0
      %1167 = vmatprep.subr.mxu0 0.0
      %1168 = vmatpush1.msra.mxu0 0.0
      %1169 = vmatprep.subr.mxu0 0.0
      %1170 = vmatpush1.msra.mxu0 0.0
      %1171 = vmatprep.subr.mxu0 0.0
      %1172 = vmatpush1.msra.mxu0 0.0
      %1173 = vmatprep.subr.mxu0 0.0
      %1174 = vmatpush1.msra.mxu0 0.0
      %1175 = vmatprep.subr.mxu0 0.0
      %1176 = vmatpush1.msra.mxu0 0.0
      %1177 = vmatprep.subr.mxu0 0.0
      %1178 = vmatpush1.msra.mxu0 0.0
      %1179 = vmatprep.subr.mxu0 0.0
      %1180 = vmatpush1.msra.mxu0 0.0
      %1181 = vmatprep.subr.mxu0 0.0
      %1182 = vmatpush1.msra.mxu0 0.0
      %1183 = vmatprep.subr.mxu0 0.0
      %1184 = vmatpush1.msra.mxu0 0.0
      %1185 = vmatprep.mubr.f32.mxu0 0.0
      %1186 = vmatmul.mubr.f32.gmra.mrb[0].mxu0 %v1115
      %v1187 = vpop.f32.mrb[0].mxu0
      %v1188 = vadd.f32 %v908, %v1187
      %v1189 = vpop.f32.mrb[0].mxu0
      %1190 = vdwg.mxu0
      %v1191 = vxor.u32 %v1188, 2147483648
      %v1192 = vmul.f32 %v1191, 1.442695
      %v1193 = vpow.pop %v1192
      %v1194 = vadd.f32 %v1193, 1.0
      %v1195 = vrcp.pop %v1194
      %v1196 = vmul.f32 1.0, %v1195
      %vm1197 = vcmask 64512
      %v1199 = vsel %vm1197, %v909, 0
      %1201 = vmatprep.subr.mxu0 0.0
      %1202 = vmatpush1.msra.mxu0 %v1196
      %1203 = vmatprep.subr.mxu0 0.0
      %1204 = vmatpush1.msra.mxu0 0.0
      %1205 = vmatprep.subr.mxu0 0.0
      %1206 = vmatpush1.msra.mxu0 0.0
      %1207 = vmatprep.subr.mxu0 0.0
      %1208 = vmatpush1.msra.mxu0 0.0
      %1209 = vmatprep.subr.mxu0 0.0
      %1210 = vmatpush1.msra.mxu0 0.0
      %1211 = vmatprep.subr.mxu0 0.0
      %1212 = vmatpush1.msra.mxu0 0.0
      %1213 = vmatprep.subr.mxu0 0.0
      %1214 = vmatpush1.msra.mxu0 0.0
      %1215 = vmatprep.subr.mxu0 0.0
      %1216 = vmatpush1.msra.mxu0 0.0
      %1217 = vmatprep.subr.mxu0 0.0
      %1218 = vmatpush1.msra.mxu0 0.0
      %1219 = vmatprep.subr.mxu0 0.0
      %1220 = vmatpush1.msra.mxu0 0.0
      %1221 = vmatprep.subr.mxu0 0.0
      %1222 = vmatpush1.msra.mxu0 0.0
      %1223 = vmatprep.subr.mxu0 0.0
      %1224 = vmatpush1.msra.mxu0 0.0
      %1225 = vmatprep.subr.mxu0 0.0
      %1226 = vmatpush1.msra.mxu0 0.0
      %1227 = vmatprep.subr.mxu0 0.0
      %1228 = vmatpush1.msra.mxu0 0.0
      %1229 = vmatprep.subr.mxu0 0.0
      %1230 = vmatpush1.msra.mxu0 0.0
      %1231 = vmatprep.subr.mxu0 0.0
      %1232 = vmatpush1.msra.mxu0 0.0
      %1233 = vmatprep.subr.mxu0 0.0
      %1234 = vmatpush1.msra.mxu0 0.0
      %1235 = vmatprep.subr.mxu0 0.0
      %1236 = vmatpush1.msra.mxu0 0.0
      %1237 = vmatprep.subr.mxu0 0.0
      %1238 = vmatpush1.msra.mxu0 0.0
      %1239 = vmatprep.subr.mxu0 0.0
      %1240 = vmatpush1.msra.mxu0 0.0
      %1241 = vmatprep.subr.mxu0 0.0
      %1242 = vmatpush1.msra.mxu0 0.0
      %1243 = vmatprep.subr.mxu0 0.0
      %1244 = vmatpush1.msra.mxu0 0.0
      %1245 = vmatprep.subr.mxu0 0.0
      %1246 = vmatpush1.msra.mxu0 0.0
      %1247 = vmatprep.subr.mxu0 0.0
      %1248 = vmatpush1.msra.mxu0 0.0
      %1249 = vmatprep.subr.mxu0 0.0
      %1250 = vmatpush1.msra.mxu0 0.0
      %1251 = vmatprep.subr.mxu0 0.0
      %1252 = vmatpush1.msra.mxu0 0.0
      %1253 = vmatprep.subr.mxu0 0.0
      %1254 = vmatpush1.msra.mxu0 0.0
      %1255 = vmatprep.subr.mxu0 0.0
      %1256 = vmatpush1.msra.mxu0 0.0
      %1257 = vmatprep.subr.mxu0 0.0
      %1258 = vmatpush1.msra.mxu0 0.0
      %1259 = vmatprep.subr.mxu0 0.0
      %1260 = vmatpush1.msra.mxu0 0.0
      %1261 = vmatprep.subr.mxu0 0.0
      %1262 = vmatpush1.msra.mxu0 0.0
      %1263 = vmatprep.subr.mxu0 0.0
      %1264 = vmatpush1.msra.mxu0 0.0
      %1265 = vmatprep.mubr.f32.mxu0 0.0
      %1266 = vmatmul.mubr.f32.gmra.mrb[0].mxu0 %v1199
      %v1267 = vpop.f32.mrb[0].mxu0
      %v1268 = vadd.f32 0.0, %v1267
      %v1269 = vpop.f32.mrb[0].mxu0
      %1270 = vdwg.mxu0
      %v1271 = vsel %vm1197, %v1268, -inf
      %v1272 = vrot.slane %v1271, 4
      %v1273 = vmax.f32 %v1271, %v1272
      %v1274 = vrot.slane %v1273, 2
      %v1275 = vmax.f32 %v1273, %v1274
      %v1276 = vrot.slane %v1275, 1
      %v1277 = vmax.f32 %v1275, %v1276
      %v1278 = vsub.f32 %v1268, %v1277
      %v1279 = vmul.f32 %v1278, 1.442695
      %v1280 = vpow.pop %v1279
      %v1281 = vsel %vm1197, %v1280, 0.0
      %v1282 = vrot.slane %v1281, 4
      %v1283 = vadd.f32 %v1281, %v1282
      %v1284 = vrot.slane %v1283, 2
      %v1285 = vadd.f32 %v1283, %v1284
      %v1286 = vrot.slane %v1285, 1
      %v1287 = vadd.f32 %v1285, %v1286
      %v1288 = vrcp.pop %v1287
      %v1289 = vmul.f32 %v1280, %v1288
      %v1291 = vsel %vm1197, %v910, 0
      %v1294 = vsel %vm1197, %v1289, 0
      %1296 = vmatprep.subr.mxu0 0.0
      %1297 = vmatpush1.xpose.msra.mxu0 %v1294
      %1298 = vmatprep.subr.mxu0 0.0
      %1299 = vmatpush1.xpose.msra.mxu0 0.0
      %1300 = vmatprep.subr.mxu0 0.0
      %1301 = vmatpush1.xpose.msra.mxu0 0.0
      %1302 = vmatprep.subr.mxu0 0.0
      %1303 = vmatpush1.xpose.msra.mxu0 0.0
      %1304 = vmatprep.subr.mxu0 0.0
      %1305 = vmatpush1.xpose.msra.mxu0 0.0
      %1306 = vmatprep.subr.mxu0 0.0
      %1307 = vmatpush1.xpose.msra.mxu0 0.0
      %1308 = vmatprep.subr.mxu0 0.0
      %1309 = vmatpush1.xpose.msra.mxu0 0.0
      %1310 = vmatprep.subr.mxu0 0.0
      %1311 = vmatpush1.xpose.msra.mxu0 0.0
      %1312 = vmatprep.subr.mxu0 0.0
      %1313 = vmatpush1.xpose.msra.mxu0 0.0
      %1314 = vmatprep.subr.mxu0 0.0
      %1315 = vmatpush1.xpose.msra.mxu0 0.0
      %1316 = vmatprep.subr.mxu0 0.0
      %1317 = vmatpush1.xpose.msra.mxu0 0.0
      %1318 = vmatprep.subr.mxu0 0.0
      %1319 = vmatpush1.xpose.msra.mxu0 0.0
      %1320 = vmatprep.subr.mxu0 0.0
      %1321 = vmatpush1.xpose.msra.mxu0 0.0
      %1322 = vmatprep.subr.mxu0 0.0
      %1323 = vmatpush1.xpose.msra.mxu0 0.0
      %1324 = vmatprep.subr.mxu0 0.0
      %1325 = vmatpush1.xpose.msra.mxu0 0.0
      %1326 = vmatprep.subr.mxu0 0.0
      %1327 = vmatpush1.xpose.msra.mxu0 0.0
      %1328 = vmatprep.subr.mxu0 0.0
      %1329 = vmatpush1.xpose.msra.mxu0 0.0
      %1330 = vmatprep.subr.mxu0 0.0
      %1331 = vmatpush1.xpose.msra.mxu0 0.0
      %1332 = vmatprep.subr.mxu0 0.0
      %1333 = vmatpush1.xpose.msra.mxu0 0.0
      %1334 = vmatprep.subr.mxu0 0.0
      %1335 = vmatpush1.xpose.msra.mxu0 0.0
      %1336 = vmatprep.subr.mxu0 0.0
      %1337 = vmatpush1.xpose.msra.mxu0 0.0
      %1338 = vmatprep.subr.mxu0 0.0
      %1339 = vmatpush1.xpose.msra.mxu0 0.0
      %1340 = vmatprep.subr.mxu0 0.0
      %1341 = vmatpush1.xpose.msra.mxu0 0.0
      %1342 = vmatprep.subr.mxu0 0.0
      %1343 = vmatpush1.xpose.msra.mxu0 0.0
      %1344 = vmatprep.subr.mxu0 0.0
      %1345 = vmatpush1.xpose.msra.mxu0 0.0
      %1346 = vmatprep.subr.mxu0 0.0
      %1347 = vmatpush1.xpose.msra.mxu0 0.0
      %1348 = vmatprep.subr.mxu0 0.0
      %1349 = vmatpush1.xpose.msra.mxu0 0.0
      %1350 = vmatprep.subr.mxu0 0.0
      %1351 = vmatpush1.xpose.msra.mxu0 0.0
      %1352 = vmatprep.subr.mxu0 0.0
      %1353 = vmatpush1.xpose.msra.mxu0 0.0
      %1354 = vmatprep.subr.mxu0 0.0
      %1355 = vmatpush1.xpose.msra.mxu0 0.0
      %1356 = vmatprep.subr.mxu0 0.0
      %1357 = vmatpush1.xpose.msra.mxu0 0.0
      %1358 = vmatprep.subr.mxu0 0.0
      %1359 = vmatpush1.xpose.msra.mxu0 0.0
      %1360 = vmatprep.mubr.f32.mxu0 0.0
      %1361 = vmatmul.mubr.f32.gmra.mrb[0].mxu0 %v1291
      %v1362 = vpop.f32.mrb[0].mxu0
      %v1363 = vadd.f32 0.0, %v1362
      %v1364 = vpop.f32.mrb[0].mxu0
      %1365 = vdwg.mxu0
      %v1367 = vsel %vm1197, %v1363, 0
      %1369 = vmatprep.subr.mxu0 0.0
      %1370 = vmatpush1.msra.mxu0 %v915
      %1371 = vmatprep.subr.mxu0 0.0
      %1372 = vmatpush1.msra.mxu0 0.0
      %1373 = vmatprep.subr.mxu0 0.0
      %1374 = vmatpush1.msra.mxu0 0.0
      %1375 = vmatprep.subr.mxu0 0.0
      %1376 = vmatpush1.msra.mxu0 0.0
      %1377 = vmatprep.subr.mxu0 0.0
      %1378 = vmatpush1.msra.mxu0 0.0
      %1379 = vmatprep.subr.mxu0 0.0
      %1380 = vmatpush1.msra.mxu0 0.0
      %1381 = vmatprep.subr.mxu0 0.0
      %1382 = vmatpush1.msra.mxu0 0.0
      %1383 = vmatprep.subr.mxu0 0.0
      %1384 = vmatpush1.msra.mxu0 0.0
      %1385 = vmatprep.subr.mxu0 0.0
      %1386 = vmatpush1.msra.mxu0 0.0
      %1387 = vmatprep.subr.mxu0 0.0
      %1388 = vmatpush1.msra.mxu0 0.0
      %1389 = vmatprep.subr.mxu0 0.0
      %1390 = vmatpush1.msra.mxu0 0.0
      %1391 = vmatprep.subr.mxu0 0.0
      %1392 = vmatpush1.msra.mxu0 0.0
      %1393 = vmatprep.subr.mxu0 0.0
      %1394 = vmatpush1.msra.mxu0 0.0
      %1395 = vmatprep.subr.mxu0 0.0
      %1396 = vmatpush1.msra.mxu0 0.0
      %1397 = vmatprep.subr.mxu0 0.0
      %1398 = vmatpush1.msra.mxu0 0.0
      %1399 = vmatprep.subr.mxu0 0.0
      %1400 = vmatpush1.msra.mxu0 0.0
      %1401 = vmatprep.subr.mxu0 0.0
      %1402 = vmatpush1.msra.mxu0 0.0
      %1403 = vmatprep.subr.mxu0 0.0
      %1404 = vmatpush1.msra.mxu0 0.0
      %1405 = vmatprep.subr.mxu0 0.0
      %1406 = vmatpush1.msra.mxu0 0.0
      %1407 = vmatprep.subr.mxu0 0.0
      %1408 = vmatpush1.msra.mxu0 0.0
      %1409 = vmatprep.subr.mxu0 0.0
      %1410 = vmatpush1.msra.mxu0 0.0
      %1411 = vmatprep.subr.mxu0 0.0
      %1412 = vmatpush1.msra.mxu0 0.0
      %1413 = vmatprep.subr.mxu0 0.0
      %1414 = vmatpush1.msra.mxu0 0.0
      %1415 = vmatprep.subr.mxu0 0.0
      %1416 = vmatpush1.msra.mxu0 0.0
      %1417 = vmatprep.subr.mxu0 0.0
      %1418 = vmatpush1.msra.mxu0 0.0
      %1419 = vmatprep.subr.mxu0 0.0
      %1420 = vmatpush1.msra.mxu0 0.0
      %1421 = vmatprep.subr.mxu0 0.0
      %1422 = vmatpush1.msra.mxu0 0.0
      %1423 = vmatprep.subr.mxu0 0.0
      %1424 = vmatpush1.msra.mxu0 0.0
      %1425 = vmatprep.subr.mxu0 0.0
      %1426 = vmatpush1.msra.mxu0 0.0
      %1427 = vmatprep.subr.mxu0 0.0
      %1428 = vmatpush1.msra.mxu0 0.0
      %1429 = vmatprep.subr.mxu0 0.0
      %1430 = vmatpush1.msra.mxu0 0.0
      %1431 = vmatprep.subr.mxu0 0.0
      %1432 = vmatpush1.msra.mxu0 0.0
      %1433 = vmatprep.mubr.f32.mxu0 0.0
      %1434 = vmatmul.mubr.f32.gmra.mrb[0].mxu0 %v1367
      %v1435 = vpop.f32.mrb[0].mxu0
      %v1436 = vadd.f32 0.0, %v1435
      %v1437 = vpop.f32.mrb[0].mxu0
      %1438 = vdwg.mxu0
      %v1439 = vlaneseq
      %v1440 = vshrl.u32 %v1439, 7
      %v1441 = vsub.s32 0, %v1440
      %v1442 = vrot.slane %v1436, %v1441
      %v1443 = vmul.f32 %v712, %v1442
      %v1444 = vmul.f32 %v713, %v1442
      %v1446 = vsel %vm720, %v1443, 0
      %v1449 = vsel %vm720, %v1444, 0
      %1451 = vmatprep.subr.mxu0 0.0
      %1452 = vmatpush1.msra.mxu0 %v916
      %1453 = vmatprep.subr.mxu0 0.0
      %1454 = vmatpush1.msra.mxu0 %v917
      %1455 = vmatprep.subr.mxu0 0.0
      %1456 = vmatpush1.msra.mxu0 %v918
      %1457 = vmatprep.subr.mxu0 0.0
      %1458 = vmatpush1.msra.mxu0 %v919
      %1459 = vmatprep.subr.mxu0 0.0
      %1460 = vmatpush1.msra.mxu0 0.0
      %1461 = vmatprep.subr.mxu0 0.0
      %1462 = vmatpush1.msra.mxu0 0.0
      %1463 = vmatprep.subr.mxu0 0.0
      %1464 = vmatpush1.msra.mxu0 0.0
      %1465 = vmatprep.subr.mxu0 0.0
      %1466 = vmatpush1.msra.mxu0 0.0
      %1467 = vmatprep.subr.mxu0 0.0
      %1468 = vmatpush1.msra.mxu0 0.0
      %1469 = vmatprep.subr.mxu0 0.0
      %1470 = vmatpush1.msra.mxu0 0.0
      %1471 = vmatprep.subr.mxu0 0.0
      %1472 = vmatpush1.msra.mxu0 0.0
      %1473 = vmatprep.subr.mxu0 0.0
      %1474 = vmatpush1.msra.mxu0 0.0
      %1475 = vmatprep.subr.mxu0 0.0
      %1476 = vmatpush1.msra.mxu0 0.0
      %1477 = vmatprep.subr.mxu0 0.0
      %1478 = vmatpush1.msra.mxu0 0.0
      %1479 = vmatprep.subr.mxu0 0.0
      %1480 = vmatpush1.msra.mxu0 0.0
      %1481 = vmatprep.subr.mxu0 0.0
      %1482 = vmatpush1.msra.mxu0 0.0
      %1483 = vmatprep.subr.mxu0 0.0
      %1484 = vmatpush1.msra.mxu0 0.0
      %1485 = vmatprep.subr.mxu0 0.0
      %1486 = vmatpush1.msra.mxu0 0.0
      %1487 = vmatprep.subr.mxu0 0.0
      %1488 = vmatpush1.msra.mxu0 0.0
      %1489 = vmatprep.subr.mxu0 0.0
      %1490 = vmatpush1.msra.mxu0 0.0
      %1491 = vmatprep.subr.mxu0 0.0
      %1492 = vmatpush1.msra.mxu0 0.0
      %1493 = vmatprep.subr.mxu0 0.0
      %1494 = vmatpush1.msra.mxu0 0.0
      %1495 = vmatprep.subr.mxu0 0.0
      %1496 = vmatpush1.msra.mxu0 0.0
      %1497 = vmatprep.subr.mxu0 0.0
      %1498 = vmatpush1.msra.mxu0 0.0
      %1499 = vmatprep.subr.mxu0 0.0
      %1500 = vmatpush1.msra.mxu0 0.0
      %1501 = vmatprep.subr.mxu0 0.0
      %1502 = vmatpush1.msra.mxu0 0.0
      %1503 = vmatprep.subr.mxu0 0.0
      %1504 = vmatpush1.msra.mxu0 0.0
      %1505 = vmatprep.subr.mxu0 0.0
      %1506 = vmatpush1.msra.mxu0 0.0
      %1507 = vmatprep.subr.mxu0 0.0
      %1508 = vmatpush1.msra.mxu0 0.0
      %1509 = vmatprep.subr.mxu0 0.0
      %1510 = vmatpush1.msra.mxu0 0.0
      %1511 = vmatprep.subr.mxu0 0.0
      %1512 = vmatpush1.msra.mxu0 0.0
      %1513 = vmatprep.subr.mxu0 0.0
      %1514 = vmatpush1.msra.mxu0 0.0
      %1515 = vmatprep.mubr.f32.mxu0 0.0
      %1516 = vmatmul.mubr.f32.gmra.mrb[0].mxu0 %v1446
      %v1517 = vpop.f32.mrb[0].mxu0
      %v1518 = vadd.f32 0.0, %v1517
      %v1519 = vpop.f32.mrb[0].mxu0
      %1520 = vmatprep.mubr.f32.mxu0 0.0
      %1521 = vmatmul.mubr.f32.gmra.mrb[0].mxu0 %v1449
      %v1522 = vpop.f32.mrb[0].mxu0
      %v1523 = vadd.f32 0.0, %v1522
      %v1524 = vpop.f32.mrb[0].mxu0
      %1525 = vdwg.mxu0
      %v1527 = vsel %vm1197, %v889, 0
      %v1530 = vsel %vm1197, %v894, 0
      %1532 = vmatprep.subr.mxu0 0.0
      %1533 = vmatpush1.msra.mxu0 %v1289
      %1534 = vmatprep.subr.mxu0 0.0
      %1535 = vmatpush1.msra.mxu0 0.0
      %1536 = vmatprep.subr.mxu0 0.0
      %1537 = vmatpush1.msra.mxu0 0.0
      %1538 = vmatprep.subr.mxu0 0.0
      %1539 = vmatpush1.msra.mxu0 0.0
      %1540 = vmatprep.subr.mxu0 0.0
      %1541 = vmatpush1.msra.mxu0 0.0
      %1542 = vmatprep.subr.mxu0 0.0
      %1543 = vmatpush1.msra.mxu0 0.0
      %1544 = vmatprep.subr.mxu0 0.0
      %1545 = vmatpush1.msra.mxu0 0.0
      %1546 = vmatprep.subr.mxu0 0.0
      %1547 = vmatpush1.msra.mxu0 0.0
      %1548 = vmatprep.subr.mxu0 0.0
      %1549 = vmatpush1.msra.mxu0 0.0
      %1550 = vmatprep.subr.mxu0 0.0
      %1551 = vmatpush1.msra.mxu0 0.0
      %1552 = vmatprep.subr.mxu0 0.0
      %1553 = vmatpush1.msra.mxu0 0.0
      %1554 = vmatprep.subr.mxu0 0.0
      %1555 = vmatpush1.msra.mxu0 0.0
      %1556 = vmatprep.subr.mxu0 0.0
      %1557 = vmatpush1.msra.mxu0 0.0
      %1558 = vmatprep.subr.mxu0 0.0
      %1559 = vmatpush1.msra.mxu0 0.0
      %1560 = vmatprep.subr.mxu0 0.0
      %1561 = vmatpush1.msra.mxu0 0.0
      %1562 = vmatprep.subr.mxu0 0.0
      %1563 = vmatpush1.msra.mxu0 0.0
      %1564 = vmatprep.subr.mxu0 0.0
      %1565 = vmatpush1.msra.mxu0 0.0
      %1566 = vmatprep.subr.mxu0 0.0
      %1567 = vmatpush1.msra.mxu0 0.0
      %1568 = vmatprep.subr.mxu0 0.0
      %1569 = vmatpush1.msra.mxu0 0.0
      %1570 = vmatprep.subr.mxu0 0.0
      %1571 = vmatpush1.msra.mxu0 0.0
      %1572 = vmatprep.subr.mxu0 0.0
      %1573 = vmatpush1.msra.mxu0 0.0
      %1574 = vmatprep.subr.mxu0 0.0
      %1575 = vmatpush1.msra.mxu0 0.0
      %1576 = vmatprep.subr.mxu0 0.0
      %1577 = vmatpush1.msra.mxu0 0.0
      %1578 = vmatprep.subr.mxu0 0.0
      %1579 = vmatpush1.msra.mxu0 0.0
      %1580 = vmatprep.subr.mxu0 0.0
      %1581 = vmatpush1.msra.mxu0 0.0
      %1582 = vmatprep.subr.mxu0 0.0
      %1583 = vmatpush1.msra.mxu0 0.0
      %1584 = vmatprep.subr.mxu0 0.0
      %1585 = vmatpush1.msra.mxu0 0.0
      %1586 = vmatprep.subr.mxu0 0.0
      %1587 = vmatpush1.msra.mxu0 0.0
      %1588 = vmatprep.subr.mxu0 0.0
      %1589 = vmatpush1.msra.mxu0 0.0
      %1590 = vmatprep.subr.mxu0 0.0
      %1591 = vmatpush1.msra.mxu0 0.0
      %1592 = vmatprep.subr.mxu0 0.0
      %1593 = vmatpush1.msra.mxu0 0.0
      %1594 = vmatprep.subr.mxu0 0.0
      %1595 = vmatpush1.msra.mxu0 0.0
      %1596 = vmatprep.mubr.f32.mxu0 0.0
      %1597 = vmatmul.mubr.f32.gmra.mrb[0].mxu0 %v1527
      %v1598 = vpop.f32.mrb[0].mxu0
      %v1599 = vadd.f32 0.0, %v1598
      %v1600 = vpop.f32.mrb[0].mxu0
      %1601 = vmatprep.mubr.f32.mxu0 0.0
      %1602 = vmatmul.mubr.f32.gmra.mrb[0].mxu0 %v1530
      %v1603 = vpop.f32.mrb[0].mxu0
      %v1604 = vadd.f32 0.0, %v1603
      %v1605 = vpop.f32.mrb[0].mxu0
      %1606 = vdwg.mxu0
      %v1608 = vsel %vm1197, %v1518, 0
      %v1611 = vsel %vm1197, %v1523, 0
      %v1614 = vsel %vm1197, %v1599, 0
      %v1617 = vsel %vm1197, %v1604, 0
      %1619 = vmatprep.subr.mxu0 0.0
      %1620 = vmatpush1.xpose.msra.mxu0 %v1614
      %1621 = vmatprep.subr.mxu0 0.0
      %1622 = vmatpush1.xpose.msra.mxu0 %v1617
      %1623 = vmatprep.subr.mxu0 0.0
      %1624 = vmatpush1.xpose.msra.mxu0 0.0
      %1625 = vmatprep.subr.mxu0 0.0
      %1626 = vmatpush1.xpose.msra.mxu0 0.0
      %1627 = vmatprep.subr.mxu0 0.0
      %1628 = vmatpush1.xpose.msra.mxu0 0.0
      %1629 = vmatprep.subr.mxu0 0.0
      %1630 = vmatpush1.xpose.msra.mxu0 0.0
      %1631 = vmatprep.subr.mxu0 0.0
      %1632 = vmatpush1.xpose.msra.mxu0 0.0
      %1633 = vmatprep.subr.mxu0 0.0
      %1634 = vmatpush1.xpose.msra.mxu0 0.0
      %1635 = vmatprep.subr.mxu0 0.0
      %1636 = vmatpush1.xpose.msra.mxu0 0.0
      %1637 = vmatprep.subr.mxu0 0.0
      %1638 = vmatpush1.xpose.msra.mxu0 0.0
      %1639 = vmatprep.subr.mxu0 0.0
      %1640 = vmatpush1.xpose.msra.mxu0 0.0
      %1641 = vmatprep.subr.mxu0 0.0
      %1642 = vmatpush1.xpose.msra.mxu0 0.0
      %1643 = vmatprep.subr.mxu0 0.0
      %1644 = vmatpush1.xpose.msra.mxu0 0.0
      %1645 = vmatprep.subr.mxu0 0.0
      %1646 = vmatpush1.xpose.msra.mxu0 0.0
      %1647 = vmatprep.subr.mxu0 0.0
      %1648 = vmatpush1.xpose.msra.mxu0 0.0
      %1649 = vmatprep.subr.mxu0 0.0
      %1650 = vmatpush1.xpose.msra.mxu0 0.0
      %1651 = vmatprep.subr.mxu0 0.0
      %1652 = vmatpush1.xpose.msra.mxu0 0.0
      %1653 = vmatprep.subr.mxu0 0.0
      %1654 = vmatpush1.xpose.msra.mxu0 0.0
      %1655 = vmatprep.subr.mxu0 0.0
      %1656 = vmatpush1.xpose.msra.mxu0 0.0
      %1657 = vmatprep.subr.mxu0 0.0
      %1658 = vmatpush1.xpose.msra.mxu0 0.0
      %1659 = vmatprep.subr.mxu0 0.0
      %1660 = vmatpush1.xpose.msra.mxu0 0.0
      %1661 = vmatprep.subr.mxu0 0.0
      %1662 = vmatpush1.xpose.msra.mxu0 0.0
      %1663 = vmatprep.subr.mxu0 0.0
      %1664 = vmatpush1.xpose.msra.mxu0 0.0
      %1665 = vmatprep.subr.mxu0 0.0
      %1666 = vmatpush1.xpose.msra.mxu0 0.0
      %1667 = vmatprep.subr.mxu0 0.0
      %1668 = vmatpush1.xpose.msra.mxu0 0.0
      %1669 = vmatprep.subr.mxu0 0.0
      %1670 = vmatpush1.xpose.msra.mxu0 0.0
      %1671 = vmatprep.subr.mxu0 0.0
      %1672 = vmatpush1.xpose.msra.mxu0 0.0
      %1673 = vmatprep.subr.mxu0 0.0
      %1674 = vmatpush1.xpose.msra.mxu0 0.0
      %1675 = vmatprep.subr.mxu0 0.0
      %1676 = vmatpush1.xpose.msra.mxu0 0.0
      %1677 = vmatprep.subr.mxu0 0.0
      %1678 = vmatpush1.xpose.msra.mxu0 0.0
      %1679 = vmatprep.subr.mxu0 0.0
      %1680 = vmatpush1.xpose.msra.mxu0 0.0
      %1681 = vmatprep.subr.mxu0 0.0
      %1682 = vmatpush1.xpose.msra.mxu0 0.0
      %1683 = vmatprep.mubr.f32.mxu0 0.0
      %1684 = vmatmul.mubr.f32.gmra.mrb[0].mxu0 %v1608
      %v1685 = vpop.f32.mrb[0].mxu0
      %v1686 = vadd.f32 %v911, %v1685
      %v1687 = vpop.f32.mrb[0].mxu0
      %1688 = vmatprep.mubr.f32.mxu0 0.0
      %1689 = vmatmul.mubr.f32.gmra.mrb[0].mxu0 %v1611
      %v1690 = vpop.f32.mrb[0].mxu0
      %v1691 = vadd.f32 %v912, %v1690
      %v1692 = vpop.f32.mrb[0].mxu0
      %1693 = vdwg.mxu0
      %v1694 = vxor.u32 %v1686, 2147483648
      %v1695 = vxor.u32 %v1691, 2147483648
      %v1696 = vmul.f32 %v1694, 1.442695
      %v1697 = vpow.pop %v1696
      %v1698 = vmul.f32 %v1695, 1.442695
      %v1699 = vpow.pop %v1698
      %v1700 = vadd.f32 %v1697, 1.0
      %v1701 = vadd.f32 %v1699, 1.0
      %v1702 = vrcp.pop %v1700
      %v1703 = vmul.f32 1.0, %v1702
      %v1704 = vrcp.pop %v1701
      %v1705 = vmul.f32 1.0, %v1704
      %v1707 = vsel %vm1007, %v913, 0
      %v1710 = vsel %vm1007, %v914, 0
      %1712 = vmatprep.subr.mxu0 0.0
      %1713 = vmatpush1.msra.mxu0 %v1703
      %1714 = vmatprep.subr.mxu0 0.0
      %1715 = vmatpush1.msra.mxu0 %v1705
      %1716 = vmatprep.subr.mxu0 0.0
      %1717 = vmatpush1.msra.mxu0 0.0
      %1718 = vmatprep.subr.mxu0 0.0
      %1719 = vmatpush1.msra.mxu0 0.0
      %1720 = vmatprep.subr.mxu0 0.0
      %1721 = vmatpush1.msra.mxu0 0.0
      %1722 = vmatprep.subr.mxu0 0.0
      %1723 = vmatpush1.msra.mxu0 0.0
      %1724 = vmatprep.subr.mxu0 0.0
      %1725 = vmatpush1.msra.mxu0 0.0
      %1726 = vmatprep.subr.mxu0 0.0
      %1727 = vmatpush1.msra.mxu0 0.0
      %1728 = vmatprep.subr.mxu0 0.0
      %1729 = vmatpush1.msra.mxu0 0.0
      %1730 = vmatprep.subr.mxu0 0.0
      %1731 = vmatpush1.msra.mxu0 0.0
      %1732 = vmatprep.subr.mxu0 0.0
      %1733 = vmatpush1.msra.mxu0 0.0
      %1734 = vmatprep.subr.mxu0 0.0
      %1735 = vmatpush1.msra.mxu0 0.0
      %1736 = vmatprep.subr.mxu0 0.0
      %1737 = vmatpush1.msra.mxu0 0.0
      %1738 = vmatprep.subr.mxu0 0.0
      %1739 = vmatpush1.msra.mxu0 0.0
      %1740 = vmatprep.subr.mxu0 0.0
      %1741 = vmatpush1.msra.mxu0 0.0
      %1742 = vmatprep.subr.mxu0 0.0
      %1743 = vmatpush1.msra.mxu0 0.0
      %1744 = vmatprep.subr.mxu0 0.0
      %1745 = vmatpush1.msra.mxu0 0.0
      %1746 = vmatprep.subr.mxu0 0.0
      %1747 = vmatpush1.msra.mxu0 0.0
      %1748 = vmatprep.subr.mxu0 0.0
      %1749 = vmatpush1.msra.mxu0 0.0
      %1750 = vmatprep.subr.mxu0 0.0
      %1751 = vmatpush1.msra.mxu0 0.0
      %1752 = vmatprep.subr.mxu0 0.0
      %1753 = vmatpush1.msra.mxu0 0.0
      %1754 = vmatprep.subr.mxu0 0.0
      %1755 = vmatpush1.msra.mxu0 0.0
      %1756 = vmatprep.subr.mxu0 0.0
      %1757 = vmatpush1.msra.mxu0 0.0
      %1758 = vmatprep.subr.mxu0 0.0
      %1759 = vmatpush1.msra.mxu0 0.0
      %1760 = vmatprep.subr.mxu0 0.0
      %1761 = vmatpush1.msra.mxu0 0.0
      %1762 = vmatprep.subr.mxu0 0.0
      %1763 = vmatpush1.msra.mxu0 0.0
      %1764 = vmatprep.subr.mxu0 0.0
      %1765 = vmatpush1.msra.mxu0 0.0
      %1766 = vmatprep.subr.mxu0 0.0
      %1767 = vmatpush1.msra.mxu0 0.0
      %1768 = vmatprep.subr.mxu0 0.0
      %1769 = vmatpush1.msra.mxu0 0.0
      %1770 = vmatprep.subr.mxu0 0.0
      %1771 = vmatpush1.msra.mxu0 0.0
      %1772 = vmatprep.subr.mxu0 0.0
      %1773 = vmatpush1.msra.mxu0 0.0
      %1774 = vmatprep.subr.mxu0 0.0
      %1775 = vmatpush1.msra.mxu0 0.0
      %1776 = vmatprep.mubr.f32.mxu0 0.0
      %1777 = vmatmul.mubr.f32.gmra.mrb[0].mxu0 %v1707
      %v1778 = vpop.f32.mrb[0].mxu0
      %v1779 = vadd.f32 0.0, %v1778
      %v1780 = vpop.f32.mrb[0].mxu0
      %1781 = vmatprep.mubr.f32.mxu0 0.0
      %1782 = vmatmul.mubr.f32.gmra.mrb[0].mxu0 %v1710
      %v1783 = vpop.f32.mrb[0].mxu0
      %v1784 = vadd.f32 0.0, %v1783
      %v1785 = vpop.f32.mrb[0].mxu0
      %1786 = vdwg.mxu0
      %v1787 = vsel %vm1007, %v1779, -inf
      %v1788 = vsel %vm1007, %v1784, -inf
      %v1789 = vmax.f32 %v1787, %v1788
      %v1790 = vrot.slane %v1789, 4
      %v1791 = vmax.f32 %v1789, %v1790
      %v1792 = vrot.slane %v1791, 2
      %v1793 = vmax.f32 %v1791, %v1792
      %v1794 = vrot.slane %v1793, 1
      %v1795 = vmax.f32 %v1793, %v1794
      %v1796 = vsub.f32 %v1779, %v1795
      %v1797 = vsub.f32 %v1784, %v1795
      %v1798 = vmul.f32 %v1796, 1.442695
      %v1799 = vpow.pop %v1798
      %v1800 = vmul.f32 %v1797, 1.442695
      %v1801 = vpow.pop %v1800
      %v1802 = vsel %vm1007, %v1799, 0.0
      %v1803 = vsel %vm1007, %v1801, 0.0
      %v1804 = vadd.f32 %v1802, %v1803
      %v1805 = vrot.slane %v1804, 4
      %v1806 = vadd.f32 %v1804, %v1805
      %v1807 = vrot.slane %v1806, 2
      %v1808 = vadd.f32 %v1806, %v1807
      %v1809 = vrot.slane %v1808, 1
      %v1810 = vadd.f32 %v1808, %v1809
      %v1811 = vrcp.pop %v1810
      %v1812 = vmul.f32 %v1799, %v1811
      %v1813 = vmul.f32 %v1801, %v1811
      %s1814 = scalar_lea.vmem %s702, 4
      %v1815 = vld [vmem:[%s1814] sm:$0xf]
      %1816 = vmatprep.subr.mxu0 0.0
      %1817 = vmatpush1.msra.mxu0 %v920
      %1818 = vmatprep.subr.mxu0 0.0
      %1819 = vmatpush1.msra.mxu0 %v921
      %1820 = vmatprep.subr.mxu0 0.0
      %1821 = vmatpush1.msra.mxu0 %v922
      %1822 = vmatprep.subr.mxu0 0.0
      %1823 = vmatpush1.msra.mxu0 %v923
      %1824 = vmatprep.subr.mxu0 0.0
      %1825 = vmatpush1.msra.mxu0 %v924
      %1826 = vmatprep.subr.mxu0 0.0
      %1827 = vmatpush1.msra.mxu0 %v925
      %1828 = vmatprep.subr.mxu0 0.0
      %1829 = vmatpush1.msra.mxu0 %v926
      %1830 = vmatprep.subr.mxu0 0.0
      %1831 = vmatpush1.msra.mxu0 %v927
      %1832 = vmatprep.subr.mxu0 0.0
      %1833 = vmatpush1.msra.mxu0 %v928
      %1834 = vmatprep.subr.mxu0 0.0
      %1835 = vmatpush1.msra.mxu0 %v929
      %1836 = vmatprep.subr.mxu0 0.0
      %1837 = vmatpush1.msra.mxu0 %v930
      %1838 = vmatprep.subr.mxu0 0.0
      %1839 = vmatpush1.msra.mxu0 %v931
      %1840 = vmatprep.subr.mxu0 0.0
      %1841 = vmatpush1.msra.mxu0 %v932
      %1842 = vmatprep.subr.mxu0 0.0
      %1843 = vmatpush1.msra.mxu0 %v933
      %1844 = vmatprep.subr.mxu0 0.0
      %1845 = vmatpush1.msra.mxu0 %v934
      %1846 = vmatprep.subr.mxu0 0.0
      %1847 = vmatpush1.msra.mxu0 %v935
      %1848 = vmatprep.subr.mxu0 0.0
      %1849 = vmatpush1.msra.mxu0 0.0
      %1850 = vmatprep.subr.mxu0 0.0
      %1851 = vmatpush1.msra.mxu0 0.0
      %1852 = vmatprep.subr.mxu0 0.0
      %1853 = vmatpush1.msra.mxu0 0.0
      %1854 = vmatprep.subr.mxu0 0.0
      %1855 = vmatpush1.msra.mxu0 0.0
      %1856 = vmatprep.subr.mxu0 0.0
      %1857 = vmatpush1.msra.mxu0 0.0
      %1858 = vmatprep.subr.mxu0 0.0
      %1859 = vmatpush1.msra.mxu0 0.0
      %1860 = vmatprep.subr.mxu0 0.0
      %1861 = vmatpush1.msra.mxu0 0.0
      %1862 = vmatprep.subr.mxu0 0.0
      %1863 = vmatpush1.msra.mxu0 0.0
      %1864 = vmatprep.subr.mxu0 0.0
      %1865 = vmatpush1.msra.mxu0 0.0
      %1866 = vmatprep.subr.mxu0 0.0
      %1867 = vmatpush1.msra.mxu0 0.0
      %1868 = vmatprep.subr.mxu0 0.0
      %1869 = vmatpush1.msra.mxu0 0.0
      %1870 = vmatprep.subr.mxu0 0.0
      %1871 = vmatpush1.msra.mxu0 0.0
      %1872 = vmatprep.subr.mxu0 0.0
      %1873 = vmatpush1.msra.mxu0 0.0
      %1874 = vmatprep.subr.mxu0 0.0
      %1875 = vmatpush1.msra.mxu0 0.0
      %1876 = vmatprep.subr.mxu0 0.0
      %1877 = vmatpush1.msra.mxu0 0.0
      %1878 = vmatprep.subr.mxu0 0.0
      %1879 = vmatpush1.msra.mxu0 0.0
      %1880 = vmatprep.mubr.f32.mxu0 0.0
      %1881 = vmatmul.mubr.f32.gmra.mrb[0].mxu0 %v1815
      %v1882 = vpop.f32.mrb[0].mxu0
      %v1883 = vadd.f32 0.0, %v1882
      %v1884 = vpop.f32.mrb[0].mxu0
      %1885 = vdwg.mxu0
      %1886 = vmatprep.subr.mxu0 0.0
      %1887 = vmatpush1.msra.mxu0 %v810
      %1888 = vmatprep.subr.mxu0 0.0
      %1889 = vmatpush1.msra.mxu0 %v815
      %1890 = vmatprep.subr.mxu0 0.0
      %1891 = vmatpush1.msra.mxu0 0.0
      %1892 = vmatprep.subr.mxu0 0.0
      %1893 = vmatpush1.msra.mxu0 0.0
      %1894 = vmatprep.subr.mxu0 0.0
      %1895 = vmatpush1.msra.mxu0 0.0
      %1896 = vmatprep.subr.mxu0 0.0
      %1897 = vmatpush1.msra.mxu0 0.0
      %1898 = vmatprep.subr.mxu0 0.0
      %1899 = vmatpush1.msra.mxu0 0.0
      %1900 = vmatprep.subr.mxu0 0.0
      %1901 = vmatpush1.msra.mxu0 0.0
      %1902 = vmatprep.subr.mxu0 0.0
      %1903 = vmatpush1.msra.mxu0 0.0
      %1904 = vmatprep.subr.mxu0 0.0
      %1905 = vmatpush1.msra.mxu0 0.0
      %1906 = vmatprep.subr.mxu0 0.0
      %1907 = vmatpush1.msra.mxu0 0.0
      %1908 = vmatprep.subr.mxu0 0.0
      %1909 = vmatpush1.msra.mxu0 0.0
      %1910 = vmatprep.subr.mxu0 0.0
      %1911 = vmatpush1.msra.mxu0 0.0
      %1912 = vmatprep.subr.mxu0 0.0
      %1913 = vmatpush1.msra.mxu0 0.0
      %1914 = vmatprep.subr.mxu0 0.0
      %1915 = vmatpush1.msra.mxu0 0.0
      %1916 = vmatprep.subr.mxu0 0.0
      %1917 = vmatpush1.msra.mxu0 0.0
      %1918 = vmatprep.subr.mxu0 0.0
      %1919 = vmatpush1.msra.mxu0 0.0
      %1920 = vmatprep.subr.mxu0 0.0
      %1921 = vmatpush1.msra.mxu0 0.0
      %1922 = vmatprep.subr.mxu0 0.0
      %1923 = vmatpush1.msra.mxu0 0.0
      %1924 = vmatprep.subr.mxu0 0.0
      %1925 = vmatpush1.msra.mxu0 0.0
      %1926 = vmatprep.subr.mxu0 0.0
      %1927 = vmatpush1.msra.mxu0 0.0
      %1928 = vmatprep.subr.mxu0 0.0
      %1929 = vmatpush1.msra.mxu0 0.0
      %1930 = vmatprep.subr.mxu0 0.0
      %1931 = vmatpush1.msra.mxu0 0.0
      %1932 = vmatprep.subr.mxu0 0.0
      %1933 = vmatpush1.msra.mxu0 0.0
      %1934 = vmatprep.subr.mxu0 0.0
      %1935 = vmatpush1.msra.mxu0 0.0
      %1936 = vmatprep.subr.mxu0 0.0
      %1937 = vmatpush1.msra.mxu0 0.0
      %1938 = vmatprep.subr.mxu0 0.0
      %1939 = vmatpush1.msra.mxu0 0.0
      %1940 = vmatprep.subr.mxu0 0.0
      %1941 = vmatpush1.msra.mxu0 0.0
      %1942 = vmatprep.subr.mxu0 0.0
      %1943 = vmatpush1.msra.mxu0 0.0
      %1944 = vmatprep.subr.mxu0 0.0
      %1945 = vmatpush1.msra.mxu0 0.0
      %1946 = vmatprep.subr.mxu0 0.0
      %1947 = vmatpush1.msra.mxu0 0.0
      %1948 = vmatprep.subr.mxu0 0.0
      %1949 = vmatpush1.msra.mxu0 0.0
      %1950 = vmatprep.mubr.f32.mxu0 0.0
      %1951 = vmatmul.mubr.f32.gmra.mrb[0].mxu0 %v1009
      %v1952 = vpop.f32.mrb[0].mxu0
      %v1953 = vadd.f32 0.0, %v1952
      %v1954 = vpop.f32.mrb[0].mxu0
      %1955 = vdwg.mxu0
      %1956 = vxpose.xlu0.b32.start [1/16] %v1883, 128
      %1957 = vxpose.xlu0.b32.cont [2/16] 0.0, 128
      %1958 = vxpose.xlu0.b32.cont [3/16] 0.0, 128
      %1959 = vxpose.xlu0.b32.cont [4/16] 0.0, 128
      %1960 = vxpose.xlu0.b32.cont [5/16] 0.0, 128
      %1961 = vxpose.xlu0.b32.cont [6/16] 0.0, 128
      %1962 = vxpose.xlu0.b32.cont [7/16] 0.0, 128
      %1963 = vxpose.xlu0.b32.cont [8/16] 0.0, 128
      %1964 = vxpose.xlu0.b32.cont [9/16] 0.0, 128
      %1965 = vxpose.xlu0.b32.cont [10/16] 0.0, 128
      %1966 = vxpose.xlu0.b32.cont [11/16] 0.0, 128
      %1967 = vxpose.xlu0.b32.cont [12/16] 0.0, 128
      %1968 = vxpose.xlu0.b32.cont [13/16] 0.0, 128
      %1969 = vxpose.xlu0.b32.cont [14/16] 0.0, 128
      %1970 = vxpose.xlu0.b32.cont [15/16] 0.0, 128
      %1971 = vxpose.xlu0.b32.end [16/16] 0.0, 128
      %v1972 = vpop.trf.xlu0
      %v1973 = vpop.trf.xlu0
      %v1974 = vpop.trf.xlu0
      %v1975 = vpop.trf.xlu0
      %v1976 = vpop.trf.xlu0
      %v1977 = vpop.trf.xlu0
      %v1978 = vpop.trf.xlu0
      %v1979 = vpop.trf.xlu0
      %v1980 = vpop.trf.xlu0
      %v1981 = vpop.trf.xlu0
      %v1982 = vpop.trf.xlu0
      %v1983 = vpop.trf.xlu0
      %v1984 = vpop.trf.xlu0
      %v1985 = vpop.trf.xlu0
      %v1986 = vpop.trf.xlu0
      %v1987 = vpop.trf.xlu0
      %v1989 = vsel %vm1113, %v1972, 0
      %v1992 = vsel %vm1117, %v1953, 0
      %1994 = vmatprep.subr.mxu0 0.0
      %1995 = vmatpush1.msra.mxu0 %v1992
      %1996 = vmatprep.subr.mxu0 0.0
      %1997 = vmatpush1.msra.mxu0 0.0
      %1998 = vmatprep.subr.mxu0 0.0
      %1999 = vmatpush1.msra.mxu0 0.0
      %2000 = vmatprep.subr.mxu0 0.0
      %2001 = vmatpush1.msra.mxu0 0.0
      %2002 = vmatprep.subr.mxu0 0.0
      %2003 = vmatpush1.msra.mxu0 0.0
      %2004 = vmatprep.subr.mxu0 0.0
      %2005 = vmatpush1.msra.mxu0 0.0
      %2006 = vmatprep.subr.mxu0 0.0
      %2007 = vmatpush1.msra.mxu0 0.0
      %2008 = vmatprep.subr.mxu0 0.0
      %2009 = vmatpush1.msra.mxu0 0.0
      %2010 = vmatprep.subr.mxu0 0.0
      %2011 = vmatpush1.msra.mxu0 0.0
      %2012 = vmatprep.subr.mxu0 0.0
      %2013 = vmatpush1.msra.mxu0 0.0
      %2014 = vmatprep.subr.mxu0 0.0
      %2015 = vmatpush1.msra.mxu0 0.0
      %2016 = vmatprep.subr.mxu0 0.0
      %2017 = vmatpush1.msra.mxu0 0.0
      %2018 = vmatprep.subr.mxu0 0.0
      %2019 = vmatpush1.msra.mxu0 0.0
      %2020 = vmatprep.subr.mxu0 0.0
      %2021 = vmatpush1.msra.mxu0 0.0
      %2022 = vmatprep.subr.mxu0 0.0
      %2023 = vmatpush1.msra.mxu0 0.0
      %2024 = vmatprep.subr.mxu0 0.0
      %2025 = vmatpush1.msra.mxu0 0.0
      %2026 = vmatprep.subr.mxu0 0.0
      %2027 = vmatpush1.msra.mxu0 0.0
      %2028 = vmatprep.subr.mxu0 0.0
      %2029 = vmatpush1.msra.mxu0 0.0
      %2030 = vmatprep.subr.mxu0 0.0
      %2031 = vmatpush1.msra.mxu0 0.0
      %2032 = vmatprep.subr.mxu0 0.0
      %2033 = vmatpush1.msra.mxu0 0.0
      %2034 = vmatprep.subr.mxu0 0.0
      %2035 = vmatpush1.msra.mxu0 0.0
      %2036 = vmatprep.subr.mxu0 0.0
      %2037 = vmatpush1.msra.mxu0 0.0
      %2038 = vmatprep.subr.mxu0 0.0
      %2039 = vmatpush1.msra.mxu0 0.0
      %2040 = vmatprep.subr.mxu0 0.0
      %2041 = vmatpush1.msra.mxu0 0.0
      %2042 = vmatprep.subr.mxu0 0.0
      %2043 = vmatpush1.msra.mxu0 0.0
      %2044 = vmatprep.subr.mxu0 0.0
      %2045 = vmatpush1.msra.mxu0 0.0
      %2046 = vmatprep.subr.mxu0 0.0
      %2047 = vmatpush1.msra.mxu0 0.0
      %2048 = vmatprep.subr.mxu0 0.0
      %2049 = vmatpush1.msra.mxu0 0.0
      %2050 = vmatprep.subr.mxu0 0.0
      %2051 = vmatpush1.msra.mxu0 0.0
      %2052 = vmatprep.subr.mxu0 0.0
      %2053 = vmatpush1.msra.mxu0 0.0
      %2054 = vmatprep.subr.mxu0 0.0
      %2055 = vmatpush1.msra.mxu0 0.0
      %2056 = vmatprep.subr.mxu0 0.0
      %2057 = vmatpush1.msra.mxu0 0.0
      %2058 = vmatprep.mubr.f32.mxu0 0.0
      %2059 = vmatmul.mubr.f32.gmra.mrb[0].mxu0 %v1989
      %v2060 = vpop.f32.mrb[0].mxu0
      %v2061 = vadd.f32 %v908, %v2060
      %v2062 = vpop.f32.mrb[0].mxu0
      %2063 = vdwg.mxu0
      %v2064 = vxor.u32 %v2061, 2147483648
      %v2065 = vmul.f32 %v2064, 1.442695
      %v2066 = vpow.pop %v2065
      %v2067 = vadd.f32 %v2066, 1.0
      %v2068 = vrcp.pop %v2067
      %v2069 = vmul.f32 1.0, %v2068
      %2070 = vmatprep.subr.mxu0 0.0
      %2071 = vmatpush1.msra.mxu0 %v2069
      %2072 = vmatprep.subr.mxu0 0.0
      %2073 = vmatpush1.msra.mxu0 0.0
      %2074 = vmatprep.subr.mxu0 0.0
      %2075 = vmatpush1.msra.mxu0 0.0
      %2076 = vmatprep.subr.mxu0 0.0
      %2077 = vmatpush1.msra.mxu0 0.0
      %2078 = vmatprep.subr.mxu0 0.0
      %2079 = vmatpush1.msra.mxu0 0.0
      %2080 = vmatprep.subr.mxu0 0.0
      %2081 = vmatpush1.msra.mxu0 0.0
      %2082 = vmatprep.subr.mxu0 0.0
      %2083 = vmatpush1.msra.mxu0 0.0
      %2084 = vmatprep.subr.mxu0 0.0
      %2085 = vmatpush1.msra.mxu0 0.0
      %2086 = vmatprep.subr.mxu0 0.0
      %2087 = vmatpush1.msra.mxu0 0.0
      %2088 = vmatprep.subr.mxu0 0.0
      %2089 = vmatpush1.msra.mxu0 0.0
      %2090 = vmatprep.subr.mxu0 0.0
      %2091 = vmatpush1.msra.mxu0 0.0
      %2092 = vmatprep.subr.mxu0 0.0
      %2093 = vmatpush1.msra.mxu0 0.0
      %2094 = vmatprep.subr.mxu0 0.0
      %2095 = vmatpush1.msra.mxu0 0.0
      %2096 = vmatprep.subr.mxu0 0.0
      %2097 = vmatpush1.msra.mxu0 0.0
      %2098 = vmatprep.subr.mxu0 0.0
      %2099 = vmatpush1.msra.mxu0 0.0
      %2100 = vmatprep.subr.mxu0 0.0
      %2101 = vmatpush1.msra.mxu0 0.0
      %2102 = vmatprep.subr.mxu0 0.0
      %2103 = vmatpush1.msra.mxu0 0.0
      %2104 = vmatprep.subr.mxu0 0.0
      %2105 = vmatpush1.msra.mxu0 0.0
      %2106 = vmatprep.subr.mxu0 0.0
      %2107 = vmatpush1.msra.mxu0 0.0
      %2108 = vmatprep.subr.mxu0 0.0
      %2109 = vmatpush1.msra.mxu0 0.0
      %2110 = vmatprep.subr.mxu0 0.0
      %2111 = vmatpush1.msra.mxu0 0.0
      %2112 = vmatprep.subr.mxu0 0.0
      %2113 = vmatpush1.msra.mxu0 0.0
      %2114 = vmatprep.subr.mxu0 0.0
      %2115 = vmatpush1.msra.mxu0 0.0
      %2116 = vmatprep.subr.mxu0 0.0
      %2117 = vmatpush1.msra.mxu0 0.0
      %2118 = vmatprep.subr.mxu0 0.0
      %2119 = vmatpush1.msra.mxu0 0.0
      %2120 = vmatprep.subr.mxu0 0.0
      %2121 = vmatpush1.msra.mxu0 0.0
      %2122 = vmatprep.subr.mxu0 0.0
      %2123 = vmatpush1.msra.mxu0 0.0
      %2124 = vmatprep.subr.mxu0 0.0
      %2125 = vmatpush1.msra.mxu0 0.0
      %2126 = vmatprep.subr.mxu0 0.0
      %2127 = vmatpush1.msra.mxu0 0.0
      %2128 = vmatprep.subr.mxu0 0.0
      %2129 = vmatpush1.msra.mxu0 0.0
      %2130 = vmatprep.subr.mxu0 0.0
      %2131 = vmatpush1.msra.mxu0 0.0
      %2132 = vmatprep.subr.mxu0 0.0
      %2133 = vmatpush1.msra.mxu0 0.0
      %2134 = vmatprep.mubr.f32.mxu0 0.0
      %2135 = vmatmul.mubr.f32.gmra.mrb[0].mxu0 %v1199
      %v2136 = vpop.f32.mrb[0].mxu0
      %v2137 = vadd.f32 0.0, %v2136
      %v2138 = vpop.f32.mrb[0].mxu0
      %2139 = vdwg.mxu0
      %v2140 = vsel %vm1197, %v2137, -inf
      %v2141 = vrot.slane %v2140, 4
      %v2142 = vmax.f32 %v2140, %v2141
      %v2143 = vrot.slane %v2142, 2
      %v2144 = vmax.f32 %v2142, %v2143
      %v2145 = vrot.slane %v2144, 1
      %v2146 = vmax.f32 %v2144, %v2145
      %v2147 = vsub.f32 %v2137, %v2146
      %v2148 = vmul.f32 %v2147, 1.442695
      %v2149 = vpow.pop %v2148
      %v2150 = vsel %vm1197, %v2149, 0.0
      %v2151 = vrot.slane %v2150, 4
      %v2152 = vadd.f32 %v2150, %v2151
      %v2153 = vrot.slane %v2152, 2
      %v2154 = vadd.f32 %v2152, %v2153
      %v2155 = vrot.slane %v2154, 1
      %v2156 = vadd.f32 %v2154, %v2155
      %v2157 = vrcp.pop %v2156
      %v2158 = vmul.f32 %v2149, %v2157
      %v2160 = vsel %vm1197, %v2158, 0
      %2162 = vmatprep.subr.mxu0 0.0
      %2163 = vmatpush1.xpose.msra.mxu0 %v2160
      %2164 = vmatprep.subr.mxu0 0.0
      %2165 = vmatpush1.xpose.msra.mxu0 0.0
      %2166 = vmatprep.subr.mxu0 0.0
      %2167 = vmatpush1.xpose.msra.mxu0 0.0
      %2168 = vmatprep.subr.mxu0 0.0
      %2169 = vmatpush1.xpose.msra.mxu0 0.0
      %2170 = vmatprep.subr.mxu0 0.0
      %2171 = vmatpush1.xpose.msra.mxu0 0.0
      %2172 = vmatprep.subr.mxu0 0.0
      %2173 = vmatpush1.xpose.msra.mxu0 0.0
      %2174 = vmatprep.subr.mxu0 0.0
      %2175 = vmatpush1.xpose.msra.mxu0 0.0
      %2176 = vmatprep.subr.mxu0 0.0
      %2177 = vmatpush1.xpose.msra.mxu0 0.0
      %2178 = vmatprep.subr.mxu0 0.0
      %2179 = vmatpush1.xpose.msra.mxu0 0.0
      %2180 = vmatprep.subr.mxu0 0.0
      %2181 = vmatpush1.xpose.msra.mxu0 0.0
      %2182 = vmatprep.subr.mxu0 0.0
      %2183 = vmatpush1.xpose.msra.mxu0 0.0
      %2184 = vmatprep.subr.mxu0 0.0
      %2185 = vmatpush1.xpose.msra.mxu0 0.0
      %2186 = vmatprep.subr.mxu0 0.0
      %2187 = vmatpush1.xpose.msra.mxu0 0.0
      %2188 = vmatprep.subr.mxu0 0.0
      %2189 = vmatpush1.xpose.msra.mxu0 0.0
      %2190 = vmatprep.subr.mxu0 0.0
      %2191 = vmatpush1.xpose.msra.mxu0 0.0
      %2192 = vmatprep.subr.mxu0 0.0
      %2193 = vmatpush1.xpose.msra.mxu0 0.0
      %2194 = vmatprep.subr.mxu0 0.0
      %2195 = vmatpush1.xpose.msra.mxu0 0.0
      %2196 = vmatprep.subr.mxu0 0.0
      %2197 = vmatpush1.xpose.msra.mxu0 0.0
      %2198 = vmatprep.subr.mxu0 0.0
      %2199 = vmatpush1.xpose.msra.mxu0 0.0
      %2200 = vmatprep.subr.mxu0 0.0
      %2201 = vmatpush1.xpose.msra.mxu0 0.0
      %2202 = vmatprep.subr.mxu0 0.0
      %2203 = vmatpush1.xpose.msra.mxu0 0.0
      %2204 = vmatprep.subr.mxu0 0.0
      %2205 = vmatpush1.xpose.msra.mxu0 0.0
      %2206 = vmatprep.subr.mxu0 0.0
      %2207 = vmatpush1.xpose.msra.mxu0 0.0
      %2208 = vmatprep.subr.mxu0 0.0
      %2209 = vmatpush1.xpose.msra.mxu0 0.0
      %2210 = vmatprep.subr.mxu0 0.0
      %2211 = vmatpush1.xpose.msra.mxu0 0.0
      %2212 = vmatprep.subr.mxu0 0.0
      %2213 = vmatpush1.xpose.msra.mxu0 0.0
      %2214 = vmatprep.subr.mxu0 0.0
      %2215 = vmatpush1.xpose.msra.mxu0 0.0
      %2216 = vmatprep.subr.mxu0 0.0
      %2217 = vmatpush1.xpose.msra.mxu0 0.0
      %2218 = vmatprep.subr.mxu0 0.0
      %2219 = vmatpush1.xpose.msra.mxu0 0.0
      %2220 = vmatprep.subr.mxu0 0.0
      %2221 = vmatpush1.xpose.msra.mxu0 0.0
      %2222 = vmatprep.subr.mxu0 0.0
      %2223 = vmatpush1.xpose.msra.mxu0 0.0
      %2224 = vmatprep.subr.mxu0 0.0
      %2225 = vmatpush1.xpose.msra.mxu0 0.0
      %2226 = vmatprep.mubr.f32.mxu0 0.0
      %2227 = vmatmul.mubr.f32.gmra.mrb[0].mxu0 %v1291
      %v2228 = vpop.f32.mrb[0].mxu0
      %v2229 = vadd.f32 0.0, %v2228
      %v2230 = vpop.f32.mrb[0].mxu0
      %2231 = vdwg.mxu0
      %v2233 = vsel %vm1197, %v2229, 0
      %2235 = vmatprep.subr.mxu0 0.0
      %2236 = vmatpush1.msra.mxu0 %v915
      %2237 = vmatprep.subr.mxu0 0.0
      %2238 = vmatpush1.msra.mxu0 0.0
      %2239 = vmatprep.subr.mxu0 0.0
      %2240 = vmatpush1.msra.mxu0 0.0
      %2241 = vmatprep.subr.mxu0 0.0
      %2242 = vmatpush1.msra.mxu0 0.0
      %2243 = vmatprep.subr.mxu0 0.0
      %2244 = vmatpush1.msra.mxu0 0.0
      %2245 = vmatprep.subr.mxu0 0.0
      %2246 = vmatpush1.msra.mxu0 0.0
      %2247 = vmatprep.subr.mxu0 0.0
      %2248 = vmatpush1.msra.mxu0 0.0
      %2249 = vmatprep.subr.mxu0 0.0
      %2250 = vmatpush1.msra.mxu0 0.0
      %2251 = vmatprep.subr.mxu0 0.0
      %2252 = vmatpush1.msra.mxu0 0.0
      %2253 = vmatprep.subr.mxu0 0.0
      %2254 = vmatpush1.msra.mxu0 0.0
      %2255 = vmatprep.subr.mxu0 0.0
      %2256 = vmatpush1.msra.mxu0 0.0
      %2257 = vmatprep.subr.mxu0 0.0
      %2258 = vmatpush1.msra.mxu0 0.0
      %2259 = vmatprep.subr.mxu0 0.0
      %2260 = vmatpush1.msra.mxu0 0.0
      %2261 = vmatprep.subr.mxu0 0.0
      %2262 = vmatpush1.msra.mxu0 0.0
      %2263 = vmatprep.subr.mxu0 0.0
      %2264 = vmatpush1.msra.mxu0 0.0
      %2265 = vmatprep.subr.mxu0 0.0
      %2266 = vmatpush1.msra.mxu0 0.0
      %2267 = vmatprep.subr.mxu0 0.0
      %2268 = vmatpush1.msra.mxu0 0.0
      %2269 = vmatprep.subr.mxu0 0.0
      %2270 = vmatpush1.msra.mxu0 0.0
      %2271 = vmatprep.subr.mxu0 0.0
      %2272 = vmatpush1.msra.mxu0 0.0
      %2273 = vmatprep.subr.mxu0 0.0
      %2274 = vmatpush1.msra.mxu0 0.0
      %2275 = vmatprep.subr.mxu0 0.0
      %2276 = vmatpush1.msra.mxu0 0.0
      %2277 = vmatprep.subr.mxu0 0.0
      %2278 = vmatpush1.msra.mxu0 0.0
      %2279 = vmatprep.subr.mxu0 0.0
      %2280 = vmatpush1.msra.mxu0 0.0
      %2281 = vmatprep.subr.mxu0 0.0
      %2282 = vmatpush1.msra.mxu0 0.0
      %2283 = vmatprep.subr.mxu0 0.0
      %2284 = vmatpush1.msra.mxu0 0.0
      %2285 = vmatprep.subr.mxu0 0.0
      %2286 = vmatpush1.msra.mxu0 0.0
      %2287 = vmatprep.subr.mxu0 0.0
      %2288 = vmatpush1.msra.mxu0 0.0
      %2289 = vmatprep.subr.mxu0 0.0
      %2290 = vmatpush1.msra.mxu0 0.0
      %2291 = vmatprep.subr.mxu0 0.0
      %2292 = vmatpush1.msra.mxu0 0.0
      %2293 = vmatprep.subr.mxu0 0.0
      %2294 = vmatpush1.msra.mxu0 0.0
      %2295 = vmatprep.subr.mxu0 0.0
      %2296 = vmatpush1.msra.mxu0 0.0
      %2297 = vmatprep.subr.mxu0 0.0
      %2298 = vmatpush1.msra.mxu0 0.0
      %2299 = vmatprep.mubr.f32.mxu0 0.0
      %2300 = vmatmul.mubr.f32.gmra.mrb[0].mxu0 %v2233
      %v2301 = vpop.f32.mrb[0].mxu0
      %v2302 = vadd.f32 0.0, %v2301
      %v2303 = vpop.f32.mrb[0].mxu0
      %2304 = vdwg.mxu0
      %v2305 = vlaneseq
      %v2306 = vshrl.u32 %v2305, 7
      %v2307 = vsub.s32 0, %v2306
      %v2308 = vrot.slane %v2302, %v2307
      %v2309 = vmul.f32 %v714, %v2308
      %v2310 = vmul.f32 %v715, %v2308
      %v2312 = vsel %vm720, %v2309, 0
      %v2315 = vsel %vm720, %v2310, 0
      %2317 = vmatprep.subr.mxu0 0.0
      %2318 = vmatpush1.msra.mxu0 %v916
      %2319 = vmatprep.subr.mxu0 0.0
      %2320 = vmatpush1.msra.mxu0 %v917
      %2321 = vmatprep.subr.mxu0 0.0
      %2322 = vmatpush1.msra.mxu0 %v918
      %2323 = vmatprep.subr.mxu0 0.0
      %2324 = vmatpush1.msra.mxu0 %v919
      %2325 = vmatprep.subr.mxu0 0.0
      %2326 = vmatpush1.msra.mxu0 0.0
      %2327 = vmatprep.subr.mxu0 0.0
      %2328 = vmatpush1.msra.mxu0 0.0
      %2329 = vmatprep.subr.mxu0 0.0
      %2330 = vmatpush1.msra.mxu0 0.0
      %2331 = vmatprep.subr.mxu0 0.0
      %2332 = vmatpush1.msra.mxu0 0.0
      %2333 = vmatprep.subr.mxu0 0.0
      %2334 = vmatpush1.msra.mxu0 0.0
      %2335 = vmatprep.subr.mxu0 0.0
      %2336 = vmatpush1.msra.mxu0 0.0
      %2337 = vmatprep.subr.mxu0 0.0
      %2338 = vmatpush1.msra.mxu0 0.0
      %2339 = vmatprep.subr.mxu0 0.0
      %2340 = vmatpush1.msra.mxu0 0.0
      %2341 = vmatprep.subr.mxu0 0.0
      %2342 = vmatpush1.msra.mxu0 0.0
      %2343 = vmatprep.subr.mxu0 0.0
      %2344 = vmatpush1.msra.mxu0 0.0
      %2345 = vmatprep.subr.mxu0 0.0
      %2346 = vmatpush1.msra.mxu0 0.0
      %2347 = vmatprep.subr.mxu0 0.0
      %2348 = vmatpush1.msra.mxu0 0.0
      %2349 = vmatprep.subr.mxu0 0.0
      %2350 = vmatpush1.msra.mxu0 0.0
      %2351 = vmatprep.subr.mxu0 0.0
      %2352 = vmatpush1.msra.mxu0 0.0
      %2353 = vmatprep.subr.mxu0 0.0
      %2354 = vmatpush1.msra.mxu0 0.0
      %2355 = vmatprep.subr.mxu0 0.0
      %2356 = vmatpush1.msra.mxu0 0.0
      %2357 = vmatprep.subr.mxu0 0.0
      %2358 = vmatpush1.msra.mxu0 0.0
      %2359 = vmatprep.subr.mxu0 0.0
      %2360 = vmatpush1.msra.mxu0 0.0
      %2361 = vmatprep.subr.mxu0 0.0
      %2362 = vmatpush1.msra.mxu0 0.0
      %2363 = vmatprep.subr.mxu0 0.0
      %2364 = vmatpush1.msra.mxu0 0.0
      %2365 = vmatprep.subr.mxu0 0.0
      %2366 = vmatpush1.msra.mxu0 0.0
      %2367 = vmatprep.subr.mxu0 0.0
      %2368 = vmatpush1.msra.mxu0 0.0
      %2369 = vmatprep.subr.mxu0 0.0
      %2370 = vmatpush1.msra.mxu0 0.0
      %2371 = vmatprep.subr.mxu0 0.0
      %2372 = vmatpush1.msra.mxu0 0.0
      %2373 = vmatprep.subr.mxu0 0.0
      %2374 = vmatpush1.msra.mxu0 0.0
      %2375 = vmatprep.subr.mxu0 0.0
      %2376 = vmatpush1.msra.mxu0 0.0
      %2377 = vmatprep.subr.mxu0 0.0
      %2378 = vmatpush1.msra.mxu0 0.0
      %2379 = vmatprep.subr.mxu0 0.0
      %2380 = vmatpush1.msra.mxu0 0.0
      %2381 = vmatprep.mubr.f32.mxu0 0.0
      %2382 = vmatmul.mubr.f32.gmra.mrb[0].mxu0 %v2312
      %v2383 = vpop.f32.mrb[0].mxu0
      %v2384 = vadd.f32 0.0, %v2383
      %v2385 = vpop.f32.mrb[0].mxu0
      %2386 = vmatprep.mubr.f32.mxu0 0.0
      %2387 = vmatmul.mubr.f32.gmra.mrb[0].mxu0 %v2315
      %v2388 = vpop.f32.mrb[0].mxu0
      %v2389 = vadd.f32 0.0, %v2388
      %v2390 = vpop.f32.mrb[0].mxu0
      %2391 = vdwg.mxu0
      %v2393 = vsel %vm1197, %v899, 0
      %v2396 = vsel %vm1197, %v904, 0
      %2398 = vmatprep.subr.mxu0 0.0
      %2399 = vmatpush1.msra.mxu0 %v2158
      %2400 = vmatprep.subr.mxu0 0.0
      %2401 = vmatpush1.msra.mxu0 0.0
      %2402 = vmatprep.subr.mxu0 0.0
      %2403 = vmatpush1.msra.mxu0 0.0
      %2404 = vmatprep.subr.mxu0 0.0
      %2405 = vmatpush1.msra.mxu0 0.0
      %2406 = vmatprep.subr.mxu0 0.0
      %2407 = vmatpush1.msra.mxu0 0.0
      %2408 = vmatprep.subr.mxu0 0.0
      %2409 = vmatpush1.msra.mxu0 0.0
      %2410 = vmatprep.subr.mxu0 0.0
      %2411 = vmatpush1.msra.mxu0 0.0
      %2412 = vmatprep.subr.mxu0 0.0
      %2413 = vmatpush1.msra.mxu0 0.0
      %2414 = vmatprep.subr.mxu0 0.0
      %2415 = vmatpush1.msra.mxu0 0.0
      %2416 = vmatprep.subr.mxu0 0.0
      %2417 = vmatpush1.msra.mxu0 0.0
      %2418 = vmatprep.subr.mxu0 0.0
      %2419 = vmatpush1.msra.mxu0 0.0
      %2420 = vmatprep.subr.mxu0 0.0
      %2421 = vmatpush1.msra.mxu0 0.0
      %2422 = vmatprep.subr.mxu0 0.0
      %2423 = vmatpush1.msra.mxu0 0.0
      %2424 = vmatprep.subr.mxu0 0.0
      %2425 = vmatpush1.msra.mxu0 0.0
      %2426 = vmatprep.subr.mxu0 0.0
      %2427 = vmatpush1.msra.mxu0 0.0
      %2428 = vmatprep.subr.mxu0 0.0
      %2429 = vmatpush1.msra.mxu0 0.0
      %2430 = vmatprep.subr.mxu0 0.0
      %2431 = vmatpush1.msra.mxu0 0.0
      %2432 = vmatprep.subr.mxu0 0.0
      %2433 = vmatpush1.msra.mxu0 0.0
      %2434 = vmatprep.subr.mxu0 0.0
      %2435 = vmatpush1.msra.mxu0 0.0
      %2436 = vmatprep.subr.mxu0 0.0
      %2437 = vmatpush1.msra.mxu0 0.0
      %2438 = vmatprep.subr.mxu0 0.0
      %2439 = vmatpush1.msra.mxu0 0.0
      %2440 = vmatprep.subr.mxu0 0.0
      %2441 = vmatpush1.msra.mxu0 0.0
      %2442 = vmatprep.subr.mxu0 0.0
      %2443 = vmatpush1.msra.mxu0 0.0
      %2444 = vmatprep.subr.mxu0 0.0
      %2445 = vmatpush1.msra.mxu0 0.0
      %2446 = vmatprep.subr.mxu0 0.0
      %2447 = vmatpush1.msra.mxu0 0.0
      %2448 = vmatprep.subr.mxu0 0.0
      %2449 = vmatpush1.msra.mxu0 0.0
      %2450 = vmatprep.subr.mxu0 0.0
      %2451 = vmatpush1.msra.mxu0 0.0
      %2452 = vmatprep.subr.mxu0 0.0
      %2453 = vmatpush1.msra.mxu0 0.0
      %2454 = vmatprep.subr.mxu0 0.0
      %2455 = vmatpush1.msra.mxu0 0.0
      %2456 = vmatprep.subr.mxu0 0.0
      %2457 = vmatpush1.msra.mxu0 0.0
      %2458 = vmatprep.subr.mxu0 0.0
      %2459 = vmatpush1.msra.mxu0 0.0
      %2460 = vmatprep.subr.mxu0 0.0
      %2461 = vmatpush1.msra.mxu0 0.0
      %2462 = vmatprep.mubr.f32.mxu0 0.0
      %2463 = vmatmul.mubr.f32.gmra.mrb[0].mxu0 %v2393
      %v2464 = vpop.f32.mrb[0].mxu0
      %v2465 = vadd.f32 0.0, %v2464
      %v2466 = vpop.f32.mrb[0].mxu0
      %2467 = vmatprep.mubr.f32.mxu0 0.0
      %2468 = vmatmul.mubr.f32.gmra.mrb[0].mxu0 %v2396
      %v2469 = vpop.f32.mrb[0].mxu0
      %v2470 = vadd.f32 0.0, %v2469
      %v2471 = vpop.f32.mrb[0].mxu0
      %2472 = vdwg.mxu0
      %v2474 = vsel %vm1197, %v2384, 0
      %v2477 = vsel %vm1197, %v2389, 0
      %v2480 = vsel %vm1197, %v2465, 0
      %v2483 = vsel %vm1197, %v2470, 0
      %2485 = vmatprep.subr.mxu0 0.0
      %2486 = vmatpush1.xpose.msra.mxu0 %v2480
      %2487 = vmatprep.subr.mxu0 0.0
      %2488 = vmatpush1.xpose.msra.mxu0 %v2483
      %2489 = vmatprep.subr.mxu0 0.0
      %2490 = vmatpush1.xpose.msra.mxu0 0.0
      %2491 = vmatprep.subr.mxu0 0.0
      %2492 = vmatpush1.xpose.msra.mxu0 0.0
      %2493 = vmatprep.subr.mxu0 0.0
      %2494 = vmatpush1.xpose.msra.mxu0 0.0
      %2495 = vmatprep.subr.mxu0 0.0
      %2496 = vmatpush1.xpose.msra.mxu0 0.0
      %2497 = vmatprep.subr.mxu0 0.0
      %2498 = vmatpush1.xpose.msra.mxu0 0.0
      %2499 = vmatprep.subr.mxu0 0.0
      %2500 = vmatpush1.xpose.msra.mxu0 0.0
      %2501 = vmatprep.subr.mxu0 0.0
      %2502 = vmatpush1.xpose.msra.mxu0 0.0
      %2503 = vmatprep.subr.mxu0 0.0
      %2504 = vmatpush1.xpose.msra.mxu0 0.0
      %2505 = vmatprep.subr.mxu0 0.0
      %2506 = vmatpush1.xpose.msra.mxu0 0.0
      %2507 = vmatprep.subr.mxu0 0.0
      %2508 = vmatpush1.xpose.msra.mxu0 0.0
      %2509 = vmatprep.subr.mxu0 0.0
      %2510 = vmatpush1.xpose.msra.mxu0 0.0
      %2511 = vmatprep.subr.mxu0 0.0
      %2512 = vmatpush1.xpose.msra.mxu0 0.0
      %2513 = vmatprep.subr.mxu0 0.0
      %2514 = vmatpush1.xpose.msra.mxu0 0.0
      %2515 = vmatprep.subr.mxu0 0.0
      %2516 = vmatpush1.xpose.msra.mxu0 0.0
      %2517 = vmatprep.subr.mxu0 0.0
      %2518 = vmatpush1.xpose.msra.mxu0 0.0
      %2519 = vmatprep.subr.mxu0 0.0
      %2520 = vmatpush1.xpose.msra.mxu0 0.0
      %2521 = vmatprep.subr.mxu0 0.0
      %2522 = vmatpush1.xpose.msra.mxu0 0.0
      %2523 = vmatprep.subr.mxu0 0.0
      %2524 = vmatpush1.xpose.msra.mxu0 0.0
      %2525 = vmatprep.subr.mxu0 0.0
      %2526 = vmatpush1.xpose.msra.mxu0 0.0
      %2527 = vmatprep.subr.mxu0 0.0
      %2528 = vmatpush1.xpose.msra.mxu0 0.0
      %2529 = vmatprep.subr.mxu0 0.0
      %2530 = vmatpush1.xpose.msra.mxu0 0.0
      %2531 = vmatprep.subr.mxu0 0.0
      %2532 = vmatpush1.xpose.msra.mxu0 0.0
      %2533 = vmatprep.subr.mxu0 0.0
      %2534 = vmatpush1.xpose.msra.mxu0 0.0
      %2535 = vmatprep.subr.mxu0 0.0
      %2536 = vmatpush1.xpose.msra.mxu0 0.0
      %2537 = vmatprep.subr.mxu0 0.0
      %2538 = vmatpush1.xpose.msra.mxu0 0.0
      %2539 = vmatprep.subr.mxu0 0.0
      %2540 = vmatpush1.xpose.msra.mxu0 0.0
      %2541 = vmatprep.subr.mxu0 0.0
      %2542 = vmatpush1.xpose.msra.mxu0 0.0
      %2543 = vmatprep.subr.mxu0 0.0
      %2544 = vmatpush1.xpose.msra.mxu0 0.0
      %2545 = vmatprep.subr.mxu0 0.0
      %2546 = vmatpush1.xpose.msra.mxu0 0.0
      %2547 = vmatprep.subr.mxu0 0.0
      %2548 = vmatpush1.xpose.msra.mxu0 0.0
      %2549 = vmatprep.mubr.f32.mxu0 0.0
      %2550 = vmatmul.mubr.f32.gmra.mrb[0].mxu0 %v2474
      %v2551 = vpop.f32.mrb[0].mxu0
      %v2552 = vadd.f32 %v911, %v2551
      %v2553 = vpop.f32.mrb[0].mxu0
      %2554 = vmatprep.mubr.f32.mxu0 0.0
      %2555 = vmatmul.mubr.f32.gmra.mrb[0].mxu0 %v2477
      %v2556 = vpop.f32.mrb[0].mxu0
      %v2557 = vadd.f32 %v912, %v2556
      %v2558 = vpop.f32.mrb[0].mxu0
      %2559 = vdwg.mxu0
      %v2560 = vxor.u32 %v2552, 2147483648
      %v2561 = vxor.u32 %v2557, 2147483648
      %v2562 = vmul.f32 %v2560, 1.442695
      %v2563 = vpow.pop %v2562
      %v2564 = vmul.f32 %v2561, 1.442695
      %v2565 = vpow.pop %v2564
      %v2566 = vadd.f32 %v2563, 1.0
      %v2567 = vadd.f32 %v2565, 1.0
      %v2568 = vrcp.pop %v2566
      %v2569 = vmul.f32 1.0, %v2568
      %v2570 = vrcp.pop %v2567
      %v2571 = vmul.f32 1.0, %v2570
      %2572 = vmatprep.subr.mxu0 0.0
      %2573 = vmatpush1.msra.mxu0 %v2569
      %2574 = vmatprep.subr.mxu0 0.0
      %2575 = vmatpush1.msra.mxu0 %v2571
      %2576 = vmatprep.subr.mxu0 0.0
      %2577 = vmatpush1.msra.mxu0 0.0
      %2578 = vmatprep.subr.mxu0 0.0
      %2579 = vmatpush1.msra.mxu0 0.0
      %2580 = vmatprep.subr.mxu0 0.0
      %2581 = vmatpush1.msra.mxu0 0.0
      %2582 = vmatprep.subr.mxu0 0.0
      %2583 = vmatpush1.msra.mxu0 0.0
      %2584 = vmatprep.subr.mxu0 0.0
      %2585 = vmatpush1.msra.mxu0 0.0
      %2586 = vmatprep.subr.mxu0 0.0
      %2587 = vmatpush1.msra.mxu0 0.0
      %2588 = vmatprep.subr.mxu0 0.0
      %2589 = vmatpush1.msra.mxu0 0.0
      %2590 = vmatprep.subr.mxu0 0.0
      %2591 = vmatpush1.msra.mxu0 0.0
      %2592 = vmatprep.subr.mxu0 0.0
      %2593 = vmatpush1.msra.mxu0 0.0
      %2594 = vmatprep.subr.mxu0 0.0
      %2595 = vmatpush1.msra.mxu0 0.0
      %2596 = vmatprep.subr.mxu0 0.0
      %2597 = vmatpush1.msra.mxu0 0.0
      %2598 = vmatprep.subr.mxu0 0.0
      %2599 = vmatpush1.msra.mxu0 0.0
      %2600 = vmatprep.subr.mxu0 0.0
      %2601 = vmatpush1.msra.mxu0 0.0
      %2602 = vmatprep.subr.mxu0 0.0
      %2603 = vmatpush1.msra.mxu0 0.0
      %2604 = vmatprep.subr.mxu0 0.0
      %2605 = vmatpush1.msra.mxu0 0.0
      %2606 = vmatprep.subr.mxu0 0.0
      %2607 = vmatpush1.msra.mxu0 0.0
      %2608 = vmatprep.subr.mxu0 0.0
      %2609 = vmatpush1.msra.mxu0 0.0
      %2610 = vmatprep.subr.mxu0 0.0
      %2611 = vmatpush1.msra.mxu0 0.0
      %2612 = vmatprep.subr.mxu0 0.0
      %2613 = vmatpush1.msra.mxu0 0.0
      %2614 = vmatprep.subr.mxu0 0.0
      %2615 = vmatpush1.msra.mxu0 0.0
      %2616 = vmatprep.subr.mxu0 0.0
      %2617 = vmatpush1.msra.mxu0 0.0
      %2618 = vmatprep.subr.mxu0 0.0
      %2619 = vmatpush1.msra.mxu0 0.0
      %2620 = vmatprep.subr.mxu0 0.0
      %2621 = vmatpush1.msra.mxu0 0.0
      %2622 = vmatprep.subr.mxu0 0.0
      %2623 = vmatpush1.msra.mxu0 0.0
      %2624 = vmatprep.subr.mxu0 0.0
      %2625 = vmatpush1.msra.mxu0 0.0
      %2626 = vmatprep.subr.mxu0 0.0
      %2627 = vmatpush1.msra.mxu0 0.0
      %2628 = vmatprep.subr.mxu0 0.0
      %2629 = vmatpush1.msra.mxu0 0.0
      %2630 = vmatprep.subr.mxu0 0.0
      %2631 = vmatpush1.msra.mxu0 0.0
      %2632 = vmatprep.subr.mxu0 0.0
      %2633 = vmatpush1.msra.mxu0 0.0
      %2634 = vmatprep.subr.mxu0 0.0
      %2635 = vmatpush1.msra.mxu0 0.0
      %2636 = vmatprep.mubr.f32.mxu0 0.0
      %2637 = vmatmul.mubr.f32.gmra.mrb[0].mxu0 %v1707
      %v2638 = vpop.f32.mrb[0].mxu0
      %v2639 = vadd.f32 0.0, %v2638
      %v2640 = vpop.f32.mrb[0].mxu0
      %2641 = vmatprep.mubr.f32.mxu0 0.0
      %2642 = vmatmul.mubr.f32.gmra.mrb[0].mxu0 %v1710
      %v2643 = vpop.f32.mrb[0].mxu0
      %v2644 = vadd.f32 0.0, %v2643
      %v2645 = vpop.f32.mrb[0].mxu0
      %2646 = vdwg.mxu0
      %v2647 = vsel %vm1007, %v2639, -inf
      %v2648 = vsel %vm1007, %v2644, -inf
      %v2649 = vmax.f32 %v2647, %v2648
      %v2650 = vrot.slane %v2649, 4
      %v2651 = vmax.f32 %v2649, %v2650
      %v2652 = vrot.slane %v2651, 2
      %v2653 = vmax.f32 %v2651, %v2652
      %v2654 = vrot.slane %v2653, 1
      %v2655 = vmax.f32 %v2653, %v2654
      %v2656 = vsub.f32 %v2639, %v2655
      %v2657 = vsub.f32 %v2644, %v2655
      %v2658 = vmul.f32 %v2656, 1.442695
      %v2659 = vpow.pop %v2658
      %v2660 = vmul.f32 %v2657, 1.442695
      %v2661 = vpow.pop %v2660
      %v2662 = vsel %vm1007, %v2659, 0.0
      %v2663 = vsel %vm1007, %v2661, 0.0
      %v2664 = vadd.f32 %v2662, %v2663
      %v2665 = vrot.slane %v2664, 4
      %v2666 = vadd.f32 %v2664, %v2665
      %v2667 = vrot.slane %v2666, 2
      %v2668 = vadd.f32 %v2666, %v2667
      %v2669 = vrot.slane %v2668, 1
      %v2670 = vadd.f32 %v2668, %v2669
      %v2671 = vrcp.pop %v2670
      %v2672 = vmul.f32 %v2659, %v2671
      %v2673 = vmul.f32 %v2661, %v2671
      %v2674 = vld [vmem:[%s13] sm:$0xff]
      %v2675 = vld [vmem:[%s13 + $0x8] sm:$0xff]
      %v2676 = vmul.f32 %v2674, %v1812
      %v2677 = vmul.f32 %v2675, %v1813
      %2678 = vxpose.xlu0.b32.start [1/16] %v2676, 128
      %2679 = vxpose.xlu0.b32.cont [2/16] %v2677, 128
      %2680 = vxpose.xlu0.b32.cont [3/16] 0.0, 128
      %2681 = vxpose.xlu0.b32.cont [4/16] 0.0, 128
      %2682 = vxpose.xlu0.b32.cont [5/16] 0.0, 128
      %2683 = vxpose.xlu0.b32.cont [6/16] 0.0, 128
      %2684 = vxpose.xlu0.b32.cont [7/16] 0.0, 128
      %2685 = vxpose.xlu0.b32.cont [8/16] 0.0, 128
      %2686 = vxpose.xlu0.b32.cont [9/16] 0.0, 128
      %2687 = vxpose.xlu0.b32.cont [10/16] 0.0, 128
      %2688 = vxpose.xlu0.b32.cont [11/16] 0.0, 128
      %2689 = vxpose.xlu0.b32.cont [12/16] 0.0, 128
      %2690 = vxpose.xlu0.b32.cont [13/16] 0.0, 128
      %2691 = vxpose.xlu0.b32.cont [14/16] 0.0, 128
      %2692 = vxpose.xlu0.b32.cont [15/16] 0.0, 128
      %2693 = vxpose.xlu0.b32.end [16/16] 0.0, 128
      %v2694 = vpop.trf.xlu0
      %v2695 = vpop.trf.xlu0
      %v2696 = vpop.trf.xlu0
      %v2697 = vpop.trf.xlu0
      %v2698 = vpop.trf.xlu0
      %v2699 = vpop.trf.xlu0
      %v2700 = vpop.trf.xlu0
      %v2701 = vpop.trf.xlu0
      %v2702 = vpop.trf.xlu0
      %v2703 = vpop.trf.xlu0
      %v2704 = vpop.trf.xlu0
      %v2705 = vpop.trf.xlu0
      %v2706 = vpop.trf.xlu0
      %v2707 = vpop.trf.xlu0
      %v2708 = vpop.trf.xlu0
      %v2709 = vpop.trf.xlu0
      %v2711 = vsel %vm1007, %v2694, 0
      %v2714 = vsel %vm1007, %v2695, 0
      %2716 = vmatprep.subr.mxu0 0.0
      %2717 = vmatpush1.msra.mxu0 %v712
      %2718 = vmatprep.subr.mxu0 0.0
      %2719 = vmatpush1.msra.mxu0 %v713
      %2720 = vmatprep.subr.mxu0 0.0
      %2721 = vmatpush1.msra.mxu0 0.0
      %2722 = vmatprep.subr.mxu0 0.0
      %2723 = vmatpush1.msra.mxu0 0.0
      %2724 = vmatprep.subr.mxu0 0.0
      %2725 = vmatpush1.msra.mxu0 0.0
      %2726 = vmatprep.subr.mxu0 0.0
      %2727 = vmatpush1.msra.mxu0 0.0
      %2728 = vmatprep.subr.mxu0 0.0
      %2729 = vmatpush1.msra.mxu0 0.0
      %2730 = vmatprep.subr.mxu0 0.0
      %2731 = vmatpush1.msra.mxu0 0.0
      %2732 = vmatprep.subr.mxu0 0.0
      %2733 = vmatpush1.msra.mxu0 0.0
      %2734 = vmatprep.subr.mxu0 0.0
      %2735 = vmatpush1.msra.mxu0 0.0
      %2736 = vmatprep.subr.mxu0 0.0
      %2737 = vmatpush1.msra.mxu0 0.0
      %2738 = vmatprep.subr.mxu0 0.0
      %2739 = vmatpush1.msra.mxu0 0.0
      %2740 = vmatprep.subr.mxu0 0.0
      %2741 = vmatpush1.msra.mxu0 0.0
      %2742 = vmatprep.subr.mxu0 0.0
      %2743 = vmatpush1.msra.mxu0 0.0
      %2744 = vmatprep.subr.mxu0 0.0
      %2745 = vmatpush1.msra.mxu0 0.0
      %2746 = vmatprep.subr.mxu0 0.0
      %2747 = vmatpush1.msra.mxu0 0.0
      %2748 = vmatprep.subr.mxu0 0.0
      %2749 = vmatpush1.msra.mxu0 0.0
      %2750 = vmatprep.subr.mxu0 0.0
      %2751 = vmatpush1.msra.mxu0 0.0
      %2752 = vmatprep.subr.mxu0 0.0
      %2753 = vmatpush1.msra.mxu0 0.0
      %2754 = vmatprep.subr.mxu0 0.0
      %2755 = vmatpush1.msra.mxu0 0.0
      %2756 = vmatprep.subr.mxu0 0.0
      %2757 = vmatpush1.msra.mxu0 0.0
      %2758 = vmatprep.subr.mxu0 0.0
      %2759 = vmatpush1.msra.mxu0 0.0
      %2760 = vmatprep.subr.mxu0 0.0
      %2761 = vmatpush1.msra.mxu0 0.0
      %2762 = vmatprep.subr.mxu0 0.0
      %2763 = vmatpush1.msra.mxu0 0.0
      %2764 = vmatprep.subr.mxu0 0.0
      %2765 = vmatpush1.msra.mxu0 0.0
      %2766 = vmatprep.subr.mxu0 0.0
      %2767 = vmatpush1.msra.mxu0 0.0
      %2768 = vmatprep.subr.mxu0 0.0
      %2769 = vmatpush1.msra.mxu0 0.0
      %2770 = vmatprep.subr.mxu0 0.0
      %2771 = vmatpush1.msra.mxu0 0.0
      %2772 = vmatprep.subr.mxu0 0.0
      %2773 = vmatpush1.msra.mxu0 0.0
      %2774 = vmatprep.subr.mxu0 0.0
      %2775 = vmatpush1.msra.mxu0 0.0
      %2776 = vmatprep.subr.mxu0 0.0
      %2777 = vmatpush1.msra.mxu0 0.0
      %2778 = vmatprep.subr.mxu0 0.0
      %2779 = vmatpush1.msra.mxu0 0.0
      %2780 = vmatprep.mubr.f32.mxu0 0.0
      %2781 = vmatmul.mubr.f32.gmra.mrb[0].mxu0 %v2711
      %v2782 = vpop.f32.mrb[0].mxu0
      %v2783 = vadd.f32 0.0, %v2782
      %v2784 = vpop.f32.mrb[0].mxu0
      %2785 = vmatprep.mubr.f32.mxu0 0.0
      %2786 = vmatmul.mubr.f32.gmra.mrb[0].mxu0 %v2714
      %v2787 = vpop.f32.mrb[0].mxu0
      %v2788 = vadd.f32 0.0, %v2787
      %v2789 = vpop.f32.mrb[0].mxu0
      %2790 = vdwg.mxu0
      %v2791 = vmul.f32 %v2674, %v2672
      %v2792 = vmul.f32 %v2675, %v2673
      %2793 = vxpose.xlu0.b32.start [1/16] %v2791, 128
      %2794 = vxpose.xlu0.b32.cont [2/16] %v2792, 128
      %2795 = vxpose.xlu0.b32.cont [3/16] 0.0, 128
      %2796 = vxpose.xlu0.b32.cont [4/16] 0.0, 128
      %2797 = vxpose.xlu0.b32.cont [5/16] 0.0, 128
      %2798 = vxpose.xlu0.b32.cont [6/16] 0.0, 128
      %2799 = vxpose.xlu0.b32.cont [7/16] 0.0, 128
      %2800 = vxpose.xlu0.b32.cont [8/16] 0.0, 128
      %2801 = vxpose.xlu0.b32.cont [9/16] 0.0, 128
      %2802 = vxpose.xlu0.b32.cont [10/16] 0.0, 128
      %2803 = vxpose.xlu0.b32.cont [11/16] 0.0, 128
      %2804 = vxpose.xlu0.b32.cont [12/16] 0.0, 128
      %2805 = vxpose.xlu0.b32.cont [13/16] 0.0, 128
      %2806 = vxpose.xlu0.b32.cont [14/16] 0.0, 128
      %2807 = vxpose.xlu0.b32.cont [15/16] 0.0, 128
      %2808 = vxpose.xlu0.b32.end [16/16] 0.0, 128
      %v2809 = vpop.trf.xlu0
      %v2810 = vpop.trf.xlu0
      %v2811 = vpop.trf.xlu0
      %v2812 = vpop.trf.xlu0
      %v2813 = vpop.trf.xlu0
      %v2814 = vpop.trf.xlu0
      %v2815 = vpop.trf.xlu0
      %v2816 = vpop.trf.xlu0
      %v2817 = vpop.trf.xlu0
      %v2818 = vpop.trf.xlu0
      %v2819 = vpop.trf.xlu0
      %v2820 = vpop.trf.xlu0
      %v2821 = vpop.trf.xlu0
      %v2822 = vpop.trf.xlu0
      %v2823 = vpop.trf.xlu0
      %v2824 = vpop.trf.xlu0
      %v2826 = vsel %vm1007, %v2809, 0
      %v2829 = vsel %vm1007, %v2810, 0
      %2831 = vmatprep.subr.mxu0 0.0
      %2832 = vmatpush1.msra.mxu0 %v714
      %2833 = vmatprep.subr.mxu0 0.0
      %2834 = vmatpush1.msra.mxu0 %v715
      %2835 = vmatprep.subr.mxu0 0.0
      %2836 = vmatpush1.msra.mxu0 0.0
      %2837 = vmatprep.subr.mxu0 0.0
      %2838 = vmatpush1.msra.mxu0 0.0
      %2839 = vmatprep.subr.mxu0 0.0
      %2840 = vmatpush1.msra.mxu0 0.0
      %2841 = vmatprep.subr.mxu0 0.0
      %2842 = vmatpush1.msra.mxu0 0.0
      %2843 = vmatprep.subr.mxu0 0.0
      %2844 = vmatpush1.msra.mxu0 0.0
      %2845 = vmatprep.subr.mxu0 0.0
      %2846 = vmatpush1.msra.mxu0 0.0
      %2847 = vmatprep.subr.mxu0 0.0
      %2848 = vmatpush1.msra.mxu0 0.0
      %2849 = vmatprep.subr.mxu0 0.0
      %2850 = vmatpush1.msra.mxu0 0.0
      %2851 = vmatprep.subr.mxu0 0.0
      %2852 = vmatpush1.msra.mxu0 0.0
      %2853 = vmatprep.subr.mxu0 0.0
      %2854 = vmatpush1.msra.mxu0 0.0
      %2855 = vmatprep.subr.mxu0 0.0
      %2856 = vmatpush1.msra.mxu0 0.0
      %2857 = vmatprep.subr.mxu0 0.0
      %2858 = vmatpush1.msra.mxu0 0.0
      %2859 = vmatprep.subr.mxu0 0.0
      %2860 = vmatpush1.msra.mxu0 0.0
      %2861 = vmatprep.subr.mxu0 0.0
      %2862 = vmatpush1.msra.mxu0 0.0
      %2863 = vmatprep.subr.mxu0 0.0
      %2864 = vmatpush1.msra.mxu0 0.0
      %2865 = vmatprep.subr.mxu0 0.0
      %2866 = vmatpush1.msra.mxu0 0.0
      %2867 = vmatprep.subr.mxu0 0.0
      %2868 = vmatpush1.msra.mxu0 0.0
      %2869 = vmatprep.subr.mxu0 0.0
      %2870 = vmatpush1.msra.mxu0 0.0
      %2871 = vmatprep.subr.mxu0 0.0
      %2872 = vmatpush1.msra.mxu0 0.0
      %2873 = vmatprep.subr.mxu0 0.0
      %2874 = vmatpush1.msra.mxu0 0.0
      %2875 = vmatprep.subr.mxu0 0.0
      %2876 = vmatpush1.msra.mxu0 0.0
      %2877 = vmatprep.subr.mxu0 0.0
      %2878 = vmatpush1.msra.mxu0 0.0
      %2879 = vmatprep.subr.mxu0 0.0
      %2880 = vmatpush1.msra.mxu0 0.0
      %2881 = vmatprep.subr.mxu0 0.0
      %2882 = vmatpush1.msra.mxu0 0.0
      %2883 = vmatprep.subr.mxu0 0.0
      %2884 = vmatpush1.msra.mxu0 0.0
      %2885 = vmatprep.subr.mxu0 0.0
      %2886 = vmatpush1.msra.mxu0 0.0
      %2887 = vmatprep.subr.mxu0 0.0
      %2888 = vmatpush1.msra.mxu0 0.0
      %2889 = vmatprep.subr.mxu0 0.0
      %2890 = vmatpush1.msra.mxu0 0.0
      %2891 = vmatprep.subr.mxu0 0.0
      %2892 = vmatpush1.msra.mxu0 0.0
      %2893 = vmatprep.subr.mxu0 0.0
      %2894 = vmatpush1.msra.mxu0 0.0
      %2895 = vmatprep.mubr.f32.mxu0 0.0
      %2896 = vmatmul.mubr.f32.gmra.mrb[0].mxu0 %v2826
      %v2897 = vpop.f32.mrb[0].mxu0
      %v2898 = vadd.f32 0.0, %v2897
      %v2899 = vpop.f32.mrb[0].mxu0
      %2900 = vmatprep.mubr.f32.mxu0 0.0
      %2901 = vmatmul.mubr.f32.gmra.mrb[0].mxu0 %v2829
      %v2902 = vpop.f32.mrb[0].mxu0
      %v2903 = vadd.f32 0.0, %v2902
      %v2904 = vpop.f32.mrb[0].mxu0
      %2905 = vdwg.mxu0
      %v2906 = vpack.c.bf16 %v2788, %v2783
      %v2907 = vpack.c.bf16 %v2903, %v2898
      %v2908 = vld [vmem:[%s14] sm:$0xff]
      %v2909 = vld [vmem:[%s14 + $0x8] sm:$0xff]
      %v2910 = vld [vmem:[%s14 + $0x10] sm:$0xff]
      %v2911 = vld [vmem:[%s14 + $0x18] sm:$0xff]
      %s2912 = scalar_lea.vmem %s13, 16
      %v2913 = vld [vmem:[%s2912] sm:$0xff]
      %v2914 = vld [vmem:[%s2912 + $0x8] sm:$0xff]
      %v2915 = vmul.f32 %v2913, %v1812
      %v2916 = vmul.f32 %v2914, %v1813
      %2917 = vxpose.xlu0.b32.start [1/16] %v2915, 128
      %2918 = vxpose.xlu0.b32.cont [2/16] %v2916, 128
      %2919 = vxpose.xlu0.b32.cont [3/16] 0.0, 128
      %2920 = vxpose.xlu0.b32.cont [4/16] 0.0, 128
      %2921 = vxpose.xlu0.b32.cont [5/16] 0.0, 128
      %2922 = vxpose.xlu0.b32.cont [6/16] 0.0, 128
      %2923 = vxpose.xlu0.b32.cont [7/16] 0.0, 128
      %2924 = vxpose.xlu0.b32.cont [8/16] 0.0, 128
      %2925 = vxpose.xlu0.b32.cont [9/16] 0.0, 128
      %2926 = vxpose.xlu0.b32.cont [10/16] 0.0, 128
      %2927 = vxpose.xlu0.b32.cont [11/16] 0.0, 128
      %2928 = vxpose.xlu0.b32.cont [12/16] 0.0, 128
      %2929 = vxpose.xlu0.b32.cont [13/16] 0.0, 128
      %2930 = vxpose.xlu0.b32.cont [14/16] 0.0, 128
      %2931 = vxpose.xlu0.b32.cont [15/16] 0.0, 128
      %2932 = vxpose.xlu0.b32.end [16/16] 0.0, 128
      %v2933 = vpop.trf.xlu0
      %v2934 = vpop.trf.xlu0
      %v2935 = vpop.trf.xlu0
      %v2936 = vpop.trf.xlu0
      %v2937 = vpop.trf.xlu0
      %v2938 = vpop.trf.xlu0
      %v2939 = vpop.trf.xlu0
      %v2940 = vpop.trf.xlu0
      %v2941 = vpop.trf.xlu0
      %v2942 = vpop.trf.xlu0
      %v2943 = vpop.trf.xlu0
      %v2944 = vpop.trf.xlu0
      %v2945 = vpop.trf.xlu0
      %v2946 = vpop.trf.xlu0
      %v2947 = vpop.trf.xlu0
      %v2948 = vpop.trf.xlu0
      %v2950 = vsel %vm1007, %v2933, 0
      %v2953 = vsel %vm1007, %v2934, 0
      %2955 = vmatprep.subr.mxu0 0.0
      %2956 = vmatpush1.msra.mxu0 %v712
      %2957 = vmatprep.subr.mxu0 0.0
      %2958 = vmatpush1.msra.mxu0 %v713
      %2959 = vmatprep.subr.mxu0 0.0
      %2960 = vmatpush1.msra.mxu0 0.0
      %2961 = vmatprep.subr.mxu0 0.0
      %2962 = vmatpush1.msra.mxu0 0.0
      %2963 = vmatprep.subr.mxu0 0.0
      %2964 = vmatpush1.msra.mxu0 0.0
      %2965 = vmatprep.subr.mxu0 0.0
      %2966 = vmatpush1.msra.mxu0 0.0
      %2967 = vmatprep.subr.mxu0 0.0
      %2968 = vmatpush1.msra.mxu0 0.0
      %2969 = vmatprep.subr.mxu0 0.0
      %2970 = vmatpush1.msra.mxu0 0.0
      %2971 = vmatprep.subr.mxu0 0.0
      %2972 = vmatpush1.msra.mxu0 0.0
      %2973 = vmatprep.subr.mxu0 0.0
      %2974 = vmatpush1.msra.mxu0 0.0
      %2975 = vmatprep.subr.mxu0 0.0
      %2976 = vmatpush1.msra.mxu0 0.0
      %2977 = vmatprep.subr.mxu0 0.0
      %2978 = vmatpush1.msra.mxu0 0.0
      %2979 = vmatprep.subr.mxu0 0.0
      %2980 = vmatpush1.msra.mxu0 0.0
      %2981 = vmatprep.subr.mxu0 0.0
      %2982 = vmatpush1.msra.mxu0 0.0
      %2983 = vmatprep.subr.mxu0 0.0
      %2984 = vmatpush1.msra.mxu0 0.0
      %2985 = vmatprep.subr.mxu0 0.0
      %2986 = vmatpush1.msra.mxu0 0.0
      %2987 = vmatprep.subr.mxu0 0.0
      %2988 = vmatpush1.msra.mxu0 0.0
      %2989 = vmatprep.subr.mxu0 0.0
      %2990 = vmatpush1.msra.mxu0 0.0
      %2991 = vmatprep.subr.mxu0 0.0
      %2992 = vmatpush1.msra.mxu0 0.0
      %2993 = vmatprep.subr.mxu0 0.0
      %2994 = vmatpush1.msra.mxu0 0.0
      %2995 = vmatprep.subr.mxu0 0.0
      %2996 = vmatpush1.msra.mxu0 0.0
      %2997 = vmatprep.subr.mxu0 0.0
      %2998 = vmatpush1.msra.mxu0 0.0
      %2999 = vmatprep.subr.mxu0 0.0
      %3000 = vmatpush1.msra.mxu0 0.0
      %3001 = vmatprep.subr.mxu0 0.0
      %3002 = vmatpush1.msra.mxu0 0.0
      %3003 = vmatprep.subr.mxu0 0.0
      %3004 = vmatpush1.msra.mxu0 0.0
      %3005 = vmatprep.subr.mxu0 0.0
      %3006 = vmatpush1.msra.mxu0 0.0
      %3007 = vmatprep.subr.mxu0 0.0
      %3008 = vmatpush1.msra.mxu0 0.0
      %3009 = vmatprep.subr.mxu0 0.0
      %3010 = vmatpush1.msra.mxu0 0.0
      %3011 = vmatprep.subr.mxu0 0.0
      %3012 = vmatpush1.msra.mxu0 0.0
      %3013 = vmatprep.subr.mxu0 0.0
      %3014 = vmatpush1.msra.mxu0 0.0
      %3015 = vmatprep.subr.mxu0 0.0
      %3016 = vmatpush1.msra.mxu0 0.0
      %3017 = vmatprep.subr.mxu0 0.0
      %3018 = vmatpush1.msra.mxu0 0.0
      %3019 = vmatprep.mubr.f32.mxu0 0.0
      %3020 = vmatmul.mubr.f32.gmra.mrb[0].mxu0 %v2950
      %v3021 = vpop.f32.mrb[0].mxu0
      %v3022 = vadd.f32 0.0, %v3021
      %v3023 = vpop.f32.mrb[0].mxu0
      %3024 = vmatprep.mubr.f32.mxu0 0.0
      %3025 = vmatmul.mubr.f32.gmra.mrb[0].mxu0 %v2953
      %v3026 = vpop.f32.mrb[0].mxu0
      %v3027 = vadd.f32 0.0, %v3026
      %v3028 = vpop.f32.mrb[0].mxu0
      %3029 = vdwg.mxu0
      %v3030 = vmul.f32 %v2913, %v2672
      %v3031 = vmul.f32 %v2914, %v2673
      %3032 = vxpose.xlu0.b32.start [1/16] %v3030, 128
      %3033 = vxpose.xlu0.b32.cont [2/16] %v3031, 128
      %3034 = vxpose.xlu0.b32.cont [3/16] 0.0, 128
      %3035 = vxpose.xlu0.b32.cont [4/16] 0.0, 128
      %3036 = vxpose.xlu0.b32.cont [5/16] 0.0, 128
      %3037 = vxpose.xlu0.b32.cont [6/16] 0.0, 128
      %3038 = vxpose.xlu0.b32.cont [7/16] 0.0, 128
      %3039 = vxpose.xlu0.b32.cont [8/16] 0.0, 128
      %3040 = vxpose.xlu0.b32.cont [9/16] 0.0, 128
      %3041 = vxpose.xlu0.b32.cont [10/16] 0.0, 128
      %3042 = vxpose.xlu0.b32.cont [11/16] 0.0, 128
      %3043 = vxpose.xlu0.b32.cont [12/16] 0.0, 128
      %3044 = vxpose.xlu0.b32.cont [13/16] 0.0, 128
      %3045 = vxpose.xlu0.b32.cont [14/16] 0.0, 128
      %3046 = vxpose.xlu0.b32.cont [15/16] 0.0, 128
      %3047 = vxpose.xlu0.b32.end [16/16] 0.0, 128
      %v3048 = vpop.trf.xlu0
      %v3049 = vpop.trf.xlu0
      %v3050 = vpop.trf.xlu0
      %v3051 = vpop.trf.xlu0
      %v3052 = vpop.trf.xlu0
      %v3053 = vpop.trf.xlu0
      %v3054 = vpop.trf.xlu0
      %v3055 = vpop.trf.xlu0
      %v3056 = vpop.trf.xlu0
      %v3057 = vpop.trf.xlu0
      %v3058 = vpop.trf.xlu0
      %v3059 = vpop.trf.xlu0
      %v3060 = vpop.trf.xlu0
      %v3061 = vpop.trf.xlu0
      %v3062 = vpop.trf.xlu0
      %v3063 = vpop.trf.xlu0
      %v3065 = vsel %vm1007, %v3048, 0
      %v3068 = vsel %vm1007, %v3049, 0
      %3070 = vmatprep.subr.mxu0 0.0
      %3071 = vmatpush1.msra.mxu0 %v714
      %3072 = vmatprep.subr.mxu0 0.0
      %3073 = vmatpush1.msra.mxu0 %v715
      %3074 = vmatprep.subr.mxu0 0.0
      %3075 = vmatpush1.msra.mxu0 0.0
      %3076 = vmatprep.subr.mxu0 0.0
      %3077 = vmatpush1.msra.mxu0 0.0
      %3078 = vmatprep.subr.mxu0 0.0
      %3079 = vmatpush1.msra.mxu0 0.0
      %3080 = vmatprep.subr.mxu0 0.0
      %3081 = vmatpush1.msra.mxu0 0.0
      %3082 = vmatprep.subr.mxu0 0.0
      %3083 = vmatpush1.msra.mxu0 0.0
      %3084 = vmatprep.subr.mxu0 0.0
      %3085 = vmatpush1.msra.mxu0 0.0
      %3086 = vmatprep.subr.mxu0 0.0
      %3087 = vmatpush1.msra.mxu0 0.0
      %3088 = vmatprep.subr.mxu0 0.0
      %3089 = vmatpush1.msra.mxu0 0.0
      %3090 = vmatprep.subr.mxu0 0.0
      %3091 = vmatpush1.msra.mxu0 0.0
      %3092 = vmatprep.subr.mxu0 0.0
      %3093 = vmatpush1.msra.mxu0 0.0
      %3094 = vmatprep.subr.mxu0 0.0
      %3095 = vmatpush1.msra.mxu0 0.0
      %3096 = vmatprep.subr.mxu0 0.0
      %3097 = vmatpush1.msra.mxu0 0.0
      %3098 = vmatprep.subr.mxu0 0.0
      %3099 = vmatpush1.msra.mxu0 0.0
      %3100 = vmatprep.subr.mxu0 0.0
      %3101 = vmatpush1.msra.mxu0 0.0
      %3102 = vmatprep.subr.mxu0 0.0
      %3103 = vmatpush1.msra.mxu0 0.0
      %3104 = vmatprep.subr.mxu0 0.0
      %3105 = vmatpush1.msra.mxu0 0.0
      %3106 = vmatprep.subr.mxu0 0.0
      %3107 = vmatpush1.msra.mxu0 0.0
      %3108 = vmatprep.subr.mxu0 0.0
      %3109 = vmatpush1.msra.mxu0 0.0
      %3110 = vmatprep.subr.mxu0 0.0
      %3111 = vmatpush1.msra.mxu0 0.0
      %3112 = vmatprep.subr.mxu0 0.0
      %3113 = vmatpush1.msra.mxu0 0.0
      %3114 = vmatprep.subr.mxu0 0.0
      %3115 = vmatpush1.msra.mxu0 0.0
      %3116 = vmatprep.subr.mxu0 0.0
      %3117 = vmatpush1.msra.mxu0 0.0
      %3118 = vmatprep.subr.mxu0 0.0
      %3119 = vmatpush1.msra.mxu0 0.0
      %3120 = vmatprep.subr.mxu0 0.0
      %3121 = vmatpush1.msra.mxu0 0.0
      %3122 = vmatprep.subr.mxu0 0.0
      %3123 = vmatpush1.msra.mxu0 0.0
      %3124 = vmatprep.subr.mxu0 0.0
      %3125 = vmatpush1.msra.mxu0 0.0
      %3126 = vmatprep.subr.mxu0 0.0
      %3127 = vmatpush1.msra.mxu0 0.0
      %3128 = vmatprep.subr.mxu0 0.0
      %3129 = vmatpush1.msra.mxu0 0.0
      %3130 = vmatprep.subr.mxu0 0.0
      %3131 = vmatpush1.msra.mxu0 0.0
      %3132 = vmatprep.subr.mxu0 0.0
      %3133 = vmatpush1.msra.mxu0 0.0
      %3134 = vmatprep.mubr.f32.mxu0 0.0
      %3135 = vmatmul.mubr.f32.gmra.mrb[0].mxu0 %v3065
      %v3136 = vpop.f32.mrb[0].mxu0
      %v3137 = vadd.f32 0.0, %v3136
      %v3138 = vpop.f32.mrb[0].mxu0
      %3139 = vmatprep.mubr.f32.mxu0 0.0
      %3140 = vmatmul.mubr.f32.gmra.mrb[0].mxu0 %v3068
      %v3141 = vpop.f32.mrb[0].mxu0
      %v3142 = vadd.f32 0.0, %v3141
      %v3143 = vpop.f32.mrb[0].mxu0
      %3144 = vdwg.mxu0
      %v3145 = vpack.c.bf16 %v3027, %v3022
      %v3146 = vpack.c.bf16 %v3142, %v3137
      %s3147 = scalar_lea.vmem %s14, 32
      %v3148 = vld [vmem:[%s3147] sm:$0xff]
      %v3149 = vld [vmem:[%s3147 + $0x8] sm:$0xff]
      %v3150 = vld [vmem:[%s3147 + $0x10] sm:$0xff]
      %v3151 = vld [vmem:[%s3147 + $0x18] sm:$0xff]
      %v3156 = vunpack.c.l.b16 %v3148
      %v3157 = vunpack.c.h.b16 %v3148
      %v3158 = vunpack.c.l.b16 %v3149
      %v3159 = vunpack.c.h.b16 %v3149
      %v3160 = vunpack.c.l.b16 %v3150
      %v3161 = vunpack.c.h.b16 %v3150
      %v3162 = vunpack.c.l.b16 %v3151
      %v3163 = vunpack.c.h.b16 %v3151
      %v3164 = vpack.c.b16 %v3158, %v3156
      %v3165 = vpack.c.b16 %v3159, %v3157
      %v3166 = vpack.c.b16 %v3162, %v3160
      %v3167 = vpack.c.b16 %v3163, %v3161
      %v3173 = vsel %vm720, %v3145, 0
      %v3176 = vsel %vm720, %v3146, 0
      %3178 = vmatprep.subr.bf16.mxu0 %v3165
      %3179 = vmatpush1.bf16.msra.mxu0 %v3164
      %3180 = vmatprep.subr.bf16.mxu0 %v3167
      %3181 = vmatpush1.bf16.msra.mxu0 %v3166
      %3182 = vmatprep.subr.bf16.mxu0 0
      %3183 = vmatpush1.bf16.msra.mxu0 0
      %3184 = vmatprep.subr.bf16.mxu0 0
      %3185 = vmatpush1.bf16.msra.mxu0 0
      %3186 = vmatprep.subr.bf16.mxu0 0
      %3187 = vmatpush1.bf16.msra.mxu0 0
      %3188 = vmatprep.subr.bf16.mxu0 0
      %3189 = vmatpush1.bf16.msra.mxu0 0
      %3190 = vmatprep.subr.bf16.mxu0 0
      %3191 = vmatpush1.bf16.msra.mxu0 0
      %3192 = vmatprep.subr.bf16.mxu0 0
      %3193 = vmatpush1.bf16.msra.mxu0 0
      %3194 = vmatprep.subr.bf16.mxu0 0
      %3195 = vmatpush1.bf16.msra.mxu0 0
      %3196 = vmatprep.subr.bf16.mxu0 0
      %3197 = vmatpush1.bf16.msra.mxu0 0
      %3198 = vmatprep.subr.bf16.mxu0 0
      %3199 = vmatpush1.bf16.msra.mxu0 0
      %3200 = vmatprep.subr.bf16.mxu0 0
      %3201 = vmatpush1.bf16.msra.mxu0 0
      %3202 = vmatprep.subr.bf16.mxu0 0
      %3203 = vmatpush1.bf16.msra.mxu0 0
      %3204 = vmatprep.subr.bf16.mxu0 0
      %3205 = vmatpush1.bf16.msra.mxu0 0
      %3206 = vmatprep.subr.bf16.mxu0 0
      %3207 = vmatpush1.bf16.msra.mxu0 0
      %3208 = vmatprep.subr.bf16.mxu0 0
      %3209 = vmatpush1.bf16.msra.mxu0 0
      %3210 = vmatprep.mubr.bf16.mxu0 0
      %3211 = vmatmul.mubr.bf16.gmra.mrb[0].mxu0 %v3173
      %v3212 = vpop.f32.mrb[0].mxu0
      %v3213 = vadd.f32 0.0, %v3212
      %v3214 = vpop.f32.mrb[0].mxu0
      %v3215 = vadd.f32 0.0, %v3214
      %v3216 = vpop.f32.mrb[0].mxu0
      %v3217 = vadd.f32 0.0, %v3216
      %v3218 = vpop.f32.mrb[0].mxu0
      %v3219 = vadd.f32 0.0, %v3218
      %3220 = vmatprep.mubr.bf16.mxu0 0
      %3221 = vmatmul.mubr.bf16.gmra.mrb[0].mxu0 %v3176
      %v3222 = vpop.f32.mrb[0].mxu0
      %v3223 = vadd.f32 0.0, %v3222
      %v3224 = vpop.f32.mrb[0].mxu0
      %v3225 = vadd.f32 0.0, %v3224
      %v3226 = vpop.f32.mrb[0].mxu0
      %v3227 = vadd.f32 0.0, %v3226
      %v3228 = vpop.f32.mrb[0].mxu0
      %v3229 = vadd.f32 0.0, %v3228
      %3230 = vdwg.mxu0
      %v3235 = vunpack.c.l.b16 %v2908
      %v3236 = vunpack.c.h.b16 %v2908
      %v3237 = vunpack.c.l.b16 %v2909
      %v3238 = vunpack.c.h.b16 %v2909
      %v3239 = vunpack.c.l.b16 %v2910
      %v3240 = vunpack.c.h.b16 %v2910
      %v3241 = vunpack.c.l.b16 %v2911
      %v3242 = vunpack.c.h.b16 %v2911
      %v3243 = vpack.c.b16 %v3237, %v3235
      %v3244 = vpack.c.b16 %v3238, %v3236
      %v3245 = vpack.c.b16 %v3241, %v3239
      %v3246 = vpack.c.b16 %v3242, %v3240
      %v3252 = vsel %vm720, %v2906, 0
      %v3255 = vsel %vm720, %v2907, 0
      %3257 = vmatprep.subr.bf16.mxu0 %v3244
      %3258 = vmatpush1.bf16.msra.mxu0 %v3243
      %3259 = vmatprep.subr.bf16.mxu0 %v3246
      %3260 = vmatpush1.bf16.msra.mxu0 %v3245
      %3261 = vmatprep.subr.bf16.mxu0 0
      %3262 = vmatpush1.bf16.msra.mxu0 0
      %3263 = vmatprep.subr.bf16.mxu0 0
      %3264 = vmatpush1.bf16.msra.mxu0 0
      %3265 = vmatprep.subr.bf16.mxu0 0
      %3266 = vmatpush1.bf16.msra.mxu0 0
      %3267 = vmatprep.subr.bf16.mxu0 0
      %3268 = vmatpush1.bf16.msra.mxu0 0
      %3269 = vmatprep.subr.bf16.mxu0 0
      %3270 = vmatpush1.bf16.msra.mxu0 0
      %3271 = vmatprep.subr.bf16.mxu0 0
      %3272 = vmatpush1.bf16.msra.mxu0 0
      %3273 = vmatprep.subr.bf16.mxu0 0
      %3274 = vmatpush1.bf16.msra.mxu0 0
      %3275 = vmatprep.subr.bf16.mxu0 0
      %3276 = vmatpush1.bf16.msra.mxu0 0
      %3277 = vmatprep.subr.bf16.mxu0 0
      %3278 = vmatpush1.bf16.msra.mxu0 0
      %3279 = vmatprep.subr.bf16.mxu0 0
      %3280 = vmatpush1.bf16.msra.mxu0 0
      %3281 = vmatprep.subr.bf16.mxu0 0
      %3282 = vmatpush1.bf16.msra.mxu0 0
      %3283 = vmatprep.subr.bf16.mxu0 0
      %3284 = vmatpush1.bf16.msra.mxu0 0
      %3285 = vmatprep.subr.bf16.mxu0 0
      %3286 = vmatpush1.bf16.msra.mxu0 0
      %3287 = vmatprep.subr.bf16.mxu0 0
      %3288 = vmatpush1.bf16.msra.mxu0 0
      %3289 = vmatprep.mubr.bf16.mxu0 0
      %3290 = vmatmul.mubr.bf16.gmra.mrb[0].mxu0 %v3252
      %v3291 = vpop.f32.mrb[0].mxu0
      %v3292 = vadd.f32 %v3213, %v3291
      %v3293 = vpop.f32.mrb[0].mxu0
      %v3294 = vadd.f32 %v3215, %v3293
      %v3295 = vpop.f32.mrb[0].mxu0
      %v3296 = vadd.f32 %v3217, %v3295
      %v3297 = vpop.f32.mrb[0].mxu0
      %v3298 = vadd.f32 %v3219, %v3297
      %3299 = vmatprep.mubr.bf16.mxu0 0
      %3300 = vmatmul.mubr.bf16.gmra.mrb[0].mxu0 %v3255
      %v3301 = vpop.f32.mrb[0].mxu0
      %v3302 = vadd.f32 %v3223, %v3301
      %v3303 = vpop.f32.mrb[0].mxu0
      %v3304 = vadd.f32 %v3225, %v3303
      %v3305 = vpop.f32.mrb[0].mxu0
      %v3306 = vadd.f32 %v3227, %v3305
      %v3307 = vpop.f32.mrb[0].mxu0
      %v3308 = vadd.f32 %v3229, %v3307
      %3309 = vdwg.mxu0
      %s3310 = scalar_lea.vmem %s13, 32
      %v3311 = vld [vmem:[%s3310] sm:$0xff]
      %v3312 = vld [vmem:[%s3310 + $0x8] sm:$0xff]
      %v3313 = vmul.f32 %v3311, %v1812
      %v3314 = vmul.f32 %v3312, %v1813
      %3315 = vxpose.xlu0.b32.start [1/16] %v3313, 128
      %3316 = vxpose.xlu0.b32.cont [2/16] %v3314, 128
      %3317 = vxpose.xlu0.b32.cont [3/16] 0.0, 128
      %3318 = vxpose.xlu0.b32.cont [4/16] 0.0, 128
      %3319 = vxpose.xlu0.b32.cont [5/16] 0.0, 128
      %3320 = vxpose.xlu0.b32.cont [6/16] 0.0, 128
      %3321 = vxpose.xlu0.b32.cont [7/16] 0.0, 128
      %3322 = vxpose.xlu0.b32.cont [8/16] 0.0, 128
      %3323 = vxpose.xlu0.b32.cont [9/16] 0.0, 128
      %3324 = vxpose.xlu0.b32.cont [10/16] 0.0, 128
      %3325 = vxpose.xlu0.b32.cont [11/16] 0.0, 128
      %3326 = vxpose.xlu0.b32.cont [12/16] 0.0, 128
      %3327 = vxpose.xlu0.b32.cont [13/16] 0.0, 128
      %3328 = vxpose.xlu0.b32.cont [14/16] 0.0, 128
      %3329 = vxpose.xlu0.b32.cont [15/16] 0.0, 128
      %3330 = vxpose.xlu0.b32.end [16/16] 0.0, 128
      %v3331 = vpop.trf.xlu0
      %v3332 = vpop.trf.xlu0
      %v3333 = vpop.trf.xlu0
      %v3334 = vpop.trf.xlu0
      %v3335 = vpop.trf.xlu0
      %v3336 = vpop.trf.xlu0
      %v3337 = vpop.trf.xlu0
      %v3338 = vpop.trf.xlu0
      %v3339 = vpop.trf.xlu0
      %v3340 = vpop.trf.xlu0
      %v3341 = vpop.trf.xlu0
      %v3342 = vpop.trf.xlu0
      %v3343 = vpop.trf.xlu0
      %v3344 = vpop.trf.xlu0
      %v3345 = vpop.trf.xlu0
      %v3346 = vpop.trf.xlu0
      %v3348 = vsel %vm1007, %v3331, 0
      %v3351 = vsel %vm1007, %v3332, 0
      %3353 = vmatprep.subr.mxu0 0.0
      %3354 = vmatpush1.msra.mxu0 %v712
      %3355 = vmatprep.subr.mxu0 0.0
      %3356 = vmatpush1.msra.mxu0 %v713
      %3357 = vmatprep.subr.mxu0 0.0
      %3358 = vmatpush1.msra.mxu0 0.0
      %3359 = vmatprep.subr.mxu0 0.0
      %3360 = vmatpush1.msra.mxu0 0.0
      %3361 = vmatprep.subr.mxu0 0.0
      %3362 = vmatpush1.msra.mxu0 0.0
      %3363 = vmatprep.subr.mxu0 0.0
      %3364 = vmatpush1.msra.mxu0 0.0
      %3365 = vmatprep.subr.mxu0 0.0
      %3366 = vmatpush1.msra.mxu0 0.0
      %3367 = vmatprep.subr.mxu0 0.0
      %3368 = vmatpush1.msra.mxu0 0.0
      %3369 = vmatprep.subr.mxu0 0.0
      %3370 = vmatpush1.msra.mxu0 0.0
      %3371 = vmatprep.subr.mxu0 0.0
      %3372 = vmatpush1.msra.mxu0 0.0
      %3373 = vmatprep.subr.mxu0 0.0
      %3374 = vmatpush1.msra.mxu0 0.0
      %3375 = vmatprep.subr.mxu0 0.0
      %3376 = vmatpush1.msra.mxu0 0.0
      %3377 = vmatprep.subr.mxu0 0.0
      %3378 = vmatpush1.msra.mxu0 0.0
      %3379 = vmatprep.subr.mxu0 0.0
      %3380 = vmatpush1.msra.mxu0 0.0
      %3381 = vmatprep.subr.mxu0 0.0
      %3382 = vmatpush1.msra.mxu0 0.0
      %3383 = vmatprep.subr.mxu0 0.0
      %3384 = vmatpush1.msra.mxu0 0.0
      %3385 = vmatprep.subr.mxu0 0.0
      %3386 = vmatpush1.msra.mxu0 0.0
      %3387 = vmatprep.subr.mxu0 0.0
      %3388 = vmatpush1.msra.mxu0 0.0
      %3389 = vmatprep.subr.mxu0 0.0
      %3390 = vmatpush1.msra.mxu0 0.0
      %3391 = vmatprep.subr.mxu0 0.0
      %3392 = vmatpush1.msra.mxu0 0.0
      %3393 = vmatprep.subr.mxu0 0.0
      %3394 = vmatpush1.msra.mxu0 0.0
      %3395 = vmatprep.subr.mxu0 0.0
      %3396 = vmatpush1.msra.mxu0 0.0
      %3397 = vmatprep.subr.mxu0 0.0
      %3398 = vmatpush1.msra.mxu0 0.0
      %3399 = vmatprep.subr.mxu0 0.0
      %3400 = vmatpush1.msra.mxu0 0.0
      %3401 = vmatprep.subr.mxu0 0.0
      %3402 = vmatpush1.msra.mxu0 0.0
      %3403 = vmatprep.subr.mxu0 0.0
      %3404 = vmatpush1.msra.mxu0 0.0
      %3405 = vmatprep.subr.mxu0 0.0
      %3406 = vmatpush1.msra.mxu0 0.0
      %3407 = vmatprep.subr.mxu0 0.0
      %3408 = vmatpush1.msra.mxu0 0.0
      %3409 = vmatprep.subr.mxu0 0.0
      %3410 = vmatpush1.msra.mxu0 0.0
      %3411 = vmatprep.subr.mxu0 0.0
      %3412 = vmatpush1.msra.mxu0 0.0
      %3413 = vmatprep.subr.mxu0 0.0
      %3414 = vmatpush1.msra.mxu0 0.0
      %3415 = vmatprep.subr.mxu0 0.0
      %3416 = vmatpush1.msra.mxu0 0.0
      %3417 = vmatprep.mubr.f32.mxu0 0.0
      %3418 = vmatmul.mubr.f32.gmra.mrb[0].mxu0 %v3348
      %v3419 = vpop.f32.mrb[0].mxu0
      %v3420 = vadd.f32 0.0, %v3419
      %v3421 = vpop.f32.mrb[0].mxu0
      %3422 = vmatprep.mubr.f32.mxu0 0.0
      %3423 = vmatmul.mubr.f32.gmra.mrb[0].mxu0 %v3351
      %v3424 = vpop.f32.mrb[0].mxu0
      %v3425 = vadd.f32 0.0, %v3424
      %v3426 = vpop.f32.mrb[0].mxu0
      %3427 = vdwg.mxu0
      %v3428 = vmul.f32 %v3311, %v2672
      %v3429 = vmul.f32 %v3312, %v2673
      %3430 = vxpose.xlu0.b32.start [1/16] %v3428, 128
      %3431 = vxpose.xlu0.b32.cont [2/16] %v3429, 128
      %3432 = vxpose.xlu0.b32.cont [3/16] 0.0, 128
      %3433 = vxpose.xlu0.b32.cont [4/16] 0.0, 128
      %3434 = vxpose.xlu0.b32.cont [5/16] 0.0, 128
      %3435 = vxpose.xlu0.b32.cont [6/16] 0.0, 128
      %3436 = vxpose.xlu0.b32.cont [7/16] 0.0, 128
      %3437 = vxpose.xlu0.b32.cont [8/16] 0.0, 128
      %3438 = vxpose.xlu0.b32.cont [9/16] 0.0, 128
      %3439 = vxpose.xlu0.b32.cont [10/16] 0.0, 128
      %3440 = vxpose.xlu0.b32.cont [11/16] 0.0, 128
      %3441 = vxpose.xlu0.b32.cont [12/16] 0.0, 128
      %3442 = vxpose.xlu0.b32.cont [13/16] 0.0, 128
      %3443 = vxpose.xlu0.b32.cont [14/16] 0.0, 128
      %3444 = vxpose.xlu0.b32.cont [15/16] 0.0, 128
      %3445 = vxpose.xlu0.b32.end [16/16] 0.0, 128
      %v3446 = vpop.trf.xlu0
      %v3447 = vpop.trf.xlu0
      %v3448 = vpop.trf.xlu0
      %v3449 = vpop.trf.xlu0
      %v3450 = vpop.trf.xlu0
      %v3451 = vpop.trf.xlu0
      %v3452 = vpop.trf.xlu0
      %v3453 = vpop.trf.xlu0
      %v3454 = vpop.trf.xlu0
      %v3455 = vpop.trf.xlu0
      %v3456 = vpop.trf.xlu0
      %v3457 = vpop.trf.xlu0
      %v3458 = vpop.trf.xlu0
      %v3459 = vpop.trf.xlu0
      %v3460 = vpop.trf.xlu0
      %v3461 = vpop.trf.xlu0
      %v3463 = vsel %vm1007, %v3446, 0
      %v3466 = vsel %vm1007, %v3447, 0
      %3468 = vmatprep.subr.mxu0 0.0
      %3469 = vmatpush1.msra.mxu0 %v714
      %3470 = vmatprep.subr.mxu0 0.0
      %3471 = vmatpush1.msra.mxu0 %v715
      %3472 = vmatprep.subr.mxu0 0.0
      %3473 = vmatpush1.msra.mxu0 0.0
      %3474 = vmatprep.subr.mxu0 0.0
      %3475 = vmatpush1.msra.mxu0 0.0
      %3476 = vmatprep.subr.mxu0 0.0
      %3477 = vmatpush1.msra.mxu0 0.0
      %3478 = vmatprep.subr.mxu0 0.0
      %3479 = vmatpush1.msra.mxu0 0.0
      %3480 = vmatprep.subr.mxu0 0.0
      %3481 = vmatpush1.msra.mxu0 0.0
      %3482 = vmatprep.subr.mxu0 0.0
      %3483 = vmatpush1.msra.mxu0 0.0
      %3484 = vmatprep.subr.mxu0 0.0
      %3485 = vmatpush1.msra.mxu0 0.0
      %3486 = vmatprep.subr.mxu0 0.0
      %3487 = vmatpush1.msra.mxu0 0.0
      %3488 = vmatprep.subr.mxu0 0.0
      %3489 = vmatpush1.msra.mxu0 0.0
      %3490 = vmatprep.subr.mxu0 0.0
      %3491 = vmatpush1.msra.mxu0 0.0
      %3492 = vmatprep.subr.mxu0 0.0
      %3493 = vmatpush1.msra.mxu0 0.0
      %3494 = vmatprep.subr.mxu0 0.0
      %3495 = vmatpush1.msra.mxu0 0.0
      %3496 = vmatprep.subr.mxu0 0.0
      %3497 = vmatpush1.msra.mxu0 0.0
      %3498 = vmatprep.subr.mxu0 0.0
      %3499 = vmatpush1.msra.mxu0 0.0
      %3500 = vmatprep.subr.mxu0 0.0
      %3501 = vmatpush1.msra.mxu0 0.0
      %3502 = vmatprep.subr.mxu0 0.0
      %3503 = vmatpush1.msra.mxu0 0.0
      %3504 = vmatprep.subr.mxu0 0.0
      %3505 = vmatpush1.msra.mxu0 0.0
      %3506 = vmatprep.subr.mxu0 0.0
      %3507 = vmatpush1.msra.mxu0 0.0
      %3508 = vmatprep.subr.mxu0 0.0
      %3509 = vmatpush1.msra.mxu0 0.0
      %3510 = vmatprep.subr.mxu0 0.0
      %3511 = vmatpush1.msra.mxu0 0.0
      %3512 = vmatprep.subr.mxu0 0.0
      %3513 = vmatpush1.msra.mxu0 0.0
      %3514 = vmatprep.subr.mxu0 0.0
      %3515 = vmatpush1.msra.mxu0 0.0
      %3516 = vmatprep.subr.mxu0 0.0
      %3517 = vmatpush1.msra.mxu0 0.0
      %3518 = vmatprep.subr.mxu0 0.0
      %3519 = vmatpush1.msra.mxu0 0.0
      %3520 = vmatprep.subr.mxu0 0.0
      %3521 = vmatpush1.msra.mxu0 0.0
      %3522 = vmatprep.subr.mxu0 0.0
      %3523 = vmatpush1.msra.mxu0 0.0
      %3524 = vmatprep.subr.mxu0 0.0
      %3525 = vmatpush1.msra.mxu0 0.0
      %3526 = vmatprep.subr.mxu0 0.0
      %3527 = vmatpush1.msra.mxu0 0.0
      %3528 = vmatprep.subr.mxu0 0.0
      %3529 = vmatpush1.msra.mxu0 0.0
      %3530 = vmatprep.subr.mxu0 0.0
      %3531 = vmatpush1.msra.mxu0 0.0
      %3532 = vmatprep.mubr.f32.mxu0 0.0
      %3533 = vmatmul.mubr.f32.gmra.mrb[0].mxu0 %v3463
      %v3534 = vpop.f32.mrb[0].mxu0
      %v3535 = vadd.f32 0.0, %v3534
      %v3536 = vpop.f32.mrb[0].mxu0
      %3537 = vmatprep.mubr.f32.mxu0 0.0
      %3538 = vmatmul.mubr.f32.gmra.mrb[0].mxu0 %v3466
      %v3539 = vpop.f32.mrb[0].mxu0
      %v3540 = vadd.f32 0.0, %v3539
      %v3541 = vpop.f32.mrb[0].mxu0
      %3542 = vdwg.mxu0
      %v3543 = vpack.c.bf16 %v3425, %v3420
      %v3544 = vpack.c.bf16 %v3540, %v3535
      %s3545 = scalar_lea.vmem %s14, 64
      %v3546 = vld [vmem:[%s3545] sm:$0xff]
      %v3547 = vld [vmem:[%s3545 + $0x8] sm:$0xff]
      %v3548 = vld [vmem:[%s3545 + $0x10] sm:$0xff]
      %v3549 = vld [vmem:[%s3545 + $0x18] sm:$0xff]
      %v3554 = vunpack.c.l.b16 %v3546
      %v3555 = vunpack.c.h.b16 %v3546
      %v3556 = vunpack.c.l.b16 %v3547
      %v3557 = vunpack.c.h.b16 %v3547
      %v3558 = vunpack.c.l.b16 %v3548
      %v3559 = vunpack.c.h.b16 %v3548
      %v3560 = vunpack.c.l.b16 %v3549
      %v3561 = vunpack.c.h.b16 %v3549
      %v3562 = vpack.c.b16 %v3556, %v3554
      %v3563 = vpack.c.b16 %v3557, %v3555
      %v3564 = vpack.c.b16 %v3560, %v3558
      %v3565 = vpack.c.b16 %v3561, %v3559
      %v3571 = vsel %vm720, %v3543, 0
      %v3574 = vsel %vm720, %v3544, 0
      %3576 = vmatprep.subr.bf16.mxu0 %v3563
      %3577 = vmatpush1.bf16.msra.mxu0 %v3562
      %3578 = vmatprep.subr.bf16.mxu0 %v3565
      %3579 = vmatpush1.bf16.msra.mxu0 %v3564
      %3580 = vmatprep.subr.bf16.mxu0 0
      %3581 = vmatpush1.bf16.msra.mxu0 0
      %3582 = vmatprep.subr.bf16.mxu0 0
      %3583 = vmatpush1.bf16.msra.mxu0 0
      %3584 = vmatprep.subr.bf16.mxu0 0
      %3585 = vmatpush1.bf16.msra.mxu0 0
      %3586 = vmatprep.subr.bf16.mxu0 0
      %3587 = vmatpush1.bf16.msra.mxu0 0
      %3588 = vmatprep.subr.bf16.mxu0 0
      %3589 = vmatpush1.bf16.msra.mxu0 0
      %3590 = vmatprep.subr.bf16.mxu0 0
      %3591 = vmatpush1.bf16.msra.mxu0 0
      %3592 = vmatprep.subr.bf16.mxu0 0
      %3593 = vmatpush1.bf16.msra.mxu0 0
      %3594 = vmatprep.subr.bf16.mxu0 0
      %3595 = vmatpush1.bf16.msra.mxu0 0
      %3596 = vmatprep.subr.bf16.mxu0 0
      %3597 = vmatpush1.bf16.msra.mxu0 0
      %3598 = vmatprep.subr.bf16.mxu0 0
      %3599 = vmatpush1.bf16.msra.mxu0 0
      %3600 = vmatprep.subr.bf16.mxu0 0
      %3601 = vmatpush1.bf16.msra.mxu0 0
      %3602 = vmatprep.subr.bf16.mxu0 0
      %3603 = vmatpush1.bf16.msra.mxu0 0
      %3604 = vmatprep.subr.bf16.mxu0 0
      %3605 = vmatpush1.bf16.msra.mxu0 0
      %3606 = vmatprep.subr.bf16.mxu0 0
      %3607 = vmatpush1.bf16.msra.mxu0 0
      %3608 = vmatprep.mubr.bf16.mxu0 0
      %3609 = vmatmul.mubr.bf16.gmra.mrb[0].mxu0 %v3571
      %v3610 = vpop.f32.mrb[0].mxu0
      %v3611 = vadd.f32 0.0, %v3610
      %v3612 = vpop.f32.mrb[0].mxu0
      %v3613 = vadd.f32 0.0, %v3612
      %v3614 = vpop.f32.mrb[0].mxu0
      %v3615 = vadd.f32 0.0, %v3614
      %v3616 = vpop.f32.mrb[0].mxu0
      %v3617 = vadd.f32 0.0, %v3616
      %3618 = vmatprep.mubr.bf16.mxu0 0
      %3619 = vmatmul.mubr.bf16.gmra.mrb[0].mxu0 %v3574
      %v3620 = vpop.f32.mrb[0].mxu0
      %v3621 = vadd.f32 0.0, %v3620
      %v3622 = vpop.f32.mrb[0].mxu0
      %v3623 = vadd.f32 0.0, %v3622
      %v3624 = vpop.f32.mrb[0].mxu0
      %v3625 = vadd.f32 0.0, %v3624
      %v3626 = vpop.f32.mrb[0].mxu0
      %v3627 = vadd.f32 0.0, %v3626
      %3628 = vdwg.mxu0
      %v3629 = vadd.f32 %v3292, %v3611
      %v3630 = vadd.f32 %v3294, %v3613
      %v3631 = vadd.f32 %v3296, %v3615
      %v3632 = vadd.f32 %v3298, %v3617
      %v3633 = vadd.f32 %v3302, %v3621
      %v3634 = vadd.f32 %v3304, %v3623
      %v3635 = vadd.f32 %v3306, %v3625
      %v3636 = vadd.f32 %v3308, %v3627
      %v3637 = vmax.f32 %v3629, 0.0
      %v3638 = vmax.f32 %v3630, 0.0
      %v3639 = vmax.f32 %v3631, 0.0
      %v3640 = vmax.f32 %v3632, 0.0
      %v3641 = vmax.f32 %v3633, 0.0
      %v3642 = vmax.f32 %v3634, 0.0
      %v3643 = vmax.f32 %v3635, 0.0
      %v3644 = vmax.f32 %v3636, 0.0
      %v3645 = vpack.c.bf16 %v3639, %v3637
      %v3646 = vpack.c.bf16 %v3640, %v3638
      %v3647 = vpack.c.bf16 %v3643, %v3641
      %v3648 = vpack.c.bf16 %v3644, %v3642
      %v3649 = vld [vmem:[%s15] sm:$0xff]
      %v3650 = vld [vmem:[%s15 + $0x8] sm:$0xff]
      %v3651 = vld [vmem:[%s15 + $0x10] sm:$0xff]
      %v3652 = vld [vmem:[%s15 + $0x18] sm:$0xff]
      %v3653 = vld [vmem:[%s15 + $0x20] sm:$0xff]
      %v3654 = vld [vmem:[%s15 + $0x28] sm:$0xff]
      %v3655 = vld [vmem:[%s15 + $0x30] sm:$0xff]
      %v3656 = vld [vmem:[%s15 + $0x38] sm:$0xff]
      %v3657 = vld [vmem:[%s15 + $0x40] sm:$0xff]
      %v3658 = vld [vmem:[%s15 + $0x48] sm:$0xff]
      %v3659 = vld [vmem:[%s15 + $0x50] sm:$0xff]
      %v3660 = vld [vmem:[%s15 + $0x58] sm:$0xff]
      %v3661 = vld [vmem:[%s15 + $0x60] sm:$0xff]
      %v3662 = vld [vmem:[%s15 + $0x68] sm:$0xff]
      %v3663 = vld [vmem:[%s15 + $0x70] sm:$0xff]
      %v3664 = vld [vmem:[%s15 + $0x78] sm:$0xff]
      %v3665 = vld [vmem:[%s15 + $0x80] sm:$0xff]
      %v3666 = vld [vmem:[%s15 + $0x88] sm:$0xff]
      %v3667 = vld [vmem:[%s15 + $0x90] sm:$0xff]
      %v3668 = vld [vmem:[%s15 + $0x98] sm:$0xff]
      %v3669 = vld [vmem:[%s15 + $0xa0] sm:$0xff]
      %v3670 = vld [vmem:[%s15 + $0xa8] sm:$0xff]
      %v3671 = vld [vmem:[%s15 + $0xb0] sm:$0xff]
      %v3672 = vld [vmem:[%s15 + $0xb8] sm:$0xff]
      %v3673 = vld [vmem:[%s15 + $0xc0] sm:$0xff]
      %v3674 = vld [vmem:[%s15 + $0xc8] sm:$0xff]
      %v3675 = vld [vmem:[%s15 + $0xd0] sm:$0xff]
      %v3676 = vld [vmem:[%s15 + $0xd8] sm:$0xff]
      %v3677 = vld [vmem:[%s15 + $0xe0] sm:$0xff]
      %v3678 = vld [vmem:[%s15 + $0xe8] sm:$0xff]
      %v3679 = vld [vmem:[%s15 + $0xf0] sm:$0xff]
      %v3680 = vld [vmem:[%s15 + $0xf8] sm:$0xff]
      %v3681 = vld [vmem:[%s16] sm:$0x3]
      %v3683 = vlaneseq
      %v3684 = vshrl.u32 %v3683, 7
      %v3685 = vsub.s32 0, %v3684
      %v3686 = vrot.slane %v3681, %v3685
      %v3687 = vlaneseq
      %v3688 = vshrl.u32 %v3687, 7
      %v3689 = vsub.s32 1, %v3688
      %v3690 = vrot.slane %v3681, %v3689
      %v3725 = vunpack.c.l.b16 %v3649
      %v3726 = vunpack.c.h.b16 %v3649
      %v3727 = vunpack.c.l.b16 %v3650
      %v3728 = vunpack.c.h.b16 %v3650
      %v3729 = vunpack.c.l.b16 %v3651
      %v3730 = vunpack.c.h.b16 %v3651
      %v3731 = vunpack.c.l.b16 %v3652
      %v3732 = vunpack.c.h.b16 %v3652
      %v3733 = vunpack.c.l.b16 %v3653
      %v3734 = vunpack.c.h.b16 %v3653
      %v3735 = vunpack.c.l.b16 %v3654
      %v3736 = vunpack.c.h.b16 %v3654
      %v3737 = vunpack.c.l.b16 %v3655
      %v3738 = vunpack.c.h.b16 %v3655
      %v3739 = vunpack.c.l.b16 %v3656
      %v3740 = vunpack.c.h.b16 %v3656
      %v3741 = vunpack.c.l.b16 %v3657
      %v3742 = vunpack.c.h.b16 %v3657
      %v3743 = vunpack.c.l.b16 %v3658
      %v3744 = vunpack.c.h.b16 %v3658
      %v3745 = vunpack.c.l.b16 %v3659
      %v3746 = vunpack.c.h.b16 %v3659
      %v3747 = vunpack.c.l.b16 %v3660
      %v3748 = vunpack.c.h.b16 %v3660
      %v3749 = vunpack.c.l.b16 %v3661
      %v3750 = vunpack.c.h.b16 %v3661
      %v3751 = vunpack.c.l.b16 %v3662
      %v3752 = vunpack.c.h.b16 %v3662
      %v3753 = vunpack.c.l.b16 %v3663
      %v3754 = vunpack.c.h.b16 %v3663
      %v3755 = vunpack.c.l.b16 %v3664
      %v3756 = vunpack.c.h.b16 %v3664
      %v3757 = vunpack.c.l.b16 %v3665
      %v3758 = vunpack.c.h.b16 %v3665
      %v3759 = vunpack.c.l.b16 %v3666
      %v3760 = vunpack.c.h.b16 %v3666
      %v3761 = vunpack.c.l.b16 %v3667
      %v3762 = vunpack.c.h.b16 %v3667
      %v3763 = vunpack.c.l.b16 %v3668
      %v3764 = vunpack.c.h.b16 %v3668
      %v3765 = vunpack.c.l.b16 %v3669
      %v3766 = vunpack.c.h.b16 %v3669
      %v3767 = vunpack.c.l.b16 %v3670
      %v3768 = vunpack.c.h.b16 %v3670
      %v3769 = vunpack.c.l.b16 %v3671
      %v3770 = vunpack.c.h.b16 %v3671
      %v3771 = vunpack.c.l.b16 %v3672
      %v3772 = vunpack.c.h.b16 %v3672
      %v3773 = vunpack.c.l.b16 %v3673
      %v3774 = vunpack.c.h.b16 %v3673
      %v3775 = vunpack.c.l.b16 %v3674
      %v3776 = vunpack.c.h.b16 %v3674
      %v3777 = vunpack.c.l.b16 %v3675
      %v3778 = vunpack.c.h.b16 %v3675
      %v3779 = vunpack.c.l.b16 %v3676
      %v3780 = vunpack.c.h.b16 %v3676
      %v3781 = vunpack.c.l.b16 %v3677
      %v3782 = vunpack.c.h.b16 %v3677
      %v3783 = vunpack.c.l.b16 %v3678
      %v3784 = vunpack.c.h.b16 %v3678
      %v3785 = vunpack.c.l.b16 %v3679
      %v3786 = vunpack.c.h.b16 %v3679
      %v3787 = vunpack.c.l.b16 %v3680
      %v3788 = vunpack.c.h.b16 %v3680
      %v3789 = vpack.c.b16 %v3727, %v3725
      %v3790 = vpack.c.b16 %v3728, %v3726
      %v3791 = vpack.c.b16 %v3731, %v3729
      %v3792 = vpack.c.b16 %v3732, %v3730
      %v3793 = vpack.c.b16 %v3735, %v3733
      %v3794 = vpack.c.b16 %v3736, %v3734
      %v3795 = vpack.c.b16 %v3739, %v3737
      %v3796 = vpack.c.b16 %v3740, %v3738
      %v3797 = vpack.c.b16 %v3743, %v3741
      %v3798 = vpack.c.b16 %v3744, %v3742
      %v3799 = vpack.c.b16 %v3747, %v3745
      %v3800 = vpack.c.b16 %v3748, %v3746
      %v3801 = vpack.c.b16 %v3751, %v3749
      %v3802 = vpack.c.b16 %v3752, %v3750
      %v3803 = vpack.c.b16 %v3755, %v3753
      %v3804 = vpack.c.b16 %v3756, %v3754
      %v3805 = vpack.c.b16 %v3759, %v3757
      %v3806 = vpack.c.b16 %v3760, %v3758
      %v3807 = vpack.c.b16 %v3763, %v3761
      %v3808 = vpack.c.b16 %v3764, %v3762
      %v3809 = vpack.c.b16 %v3767, %v3765
      %v3810 = vpack.c.b16 %v3768, %v3766
      %v3811 = vpack.c.b16 %v3771, %v3769
      %v3812 = vpack.c.b16 %v3772, %v3770
      %v3813 = vpack.c.b16 %v3775, %v3773
      %v3814 = vpack.c.b16 %v3776, %v3774
      %v3815 = vpack.c.b16 %v3779, %v3777
      %v3816 = vpack.c.b16 %v3780, %v3778
      %v3817 = vpack.c.b16 %v3783, %v3781
      %v3818 = vpack.c.b16 %v3784, %v3782
      %v3819 = vpack.c.b16 %v3787, %v3785
      %v3820 = vpack.c.b16 %v3788, %v3786
      %3853 = vmatprep.subr.bf16.mxu0 %v3790
      %3854 = vmatpush1.bf16.msra.mxu0 %v3789
      %3855 = vmatprep.subr.bf16.mxu0 %v3792
      %3856 = vmatpush1.bf16.msra.mxu0 %v3791
      %3857 = vmatprep.subr.bf16.mxu0 %v3794
      %3858 = vmatpush1.bf16.msra.mxu0 %v3793
      %3859 = vmatprep.subr.bf16.mxu0 %v3796
      %3860 = vmatpush1.bf16.msra.mxu0 %v3795
      %3861 = vmatprep.subr.bf16.mxu0 %v3798
      %3862 = vmatpush1.bf16.msra.mxu0 %v3797
      %3863 = vmatprep.subr.bf16.mxu0 %v3800
      %3864 = vmatpush1.bf16.msra.mxu0 %v3799
      %3865 = vmatprep.subr.bf16.mxu0 %v3802
      %3866 = vmatpush1.bf16.msra.mxu0 %v3801
      %3867 = vmatprep.subr.bf16.mxu0 %v3804
      %3868 = vmatpush1.bf16.msra.mxu0 %v3803
      %3869 = vmatprep.subr.bf16.mxu0 %v3806
      %3870 = vmatpush1.bf16.msra.mxu0 %v3805
      %3871 = vmatprep.subr.bf16.mxu0 %v3808
      %3872 = vmatpush1.bf16.msra.mxu0 %v3807
      %3873 = vmatprep.subr.bf16.mxu0 %v3810
      %3874 = vmatpush1.bf16.msra.mxu0 %v3809
      %3875 = vmatprep.subr.bf16.mxu0 %v3812
      %3876 = vmatpush1.bf16.msra.mxu0 %v3811
      %3877 = vmatprep.subr.bf16.mxu0 %v3814
      %3878 = vmatpush1.bf16.msra.mxu0 %v3813
      %3879 = vmatprep.subr.bf16.mxu0 %v3816
      %3880 = vmatpush1.bf16.msra.mxu0 %v3815
      %3881 = vmatprep.subr.bf16.mxu0 %v3818
      %3882 = vmatpush1.bf16.msra.mxu0 %v3817
      %3883 = vmatprep.subr.bf16.mxu0 %v3820
      %3884 = vmatpush1.bf16.msra.mxu0 %v3819
      %3885 = vmatprep.mubr.bf16.mxu0 %v3646
      %3886 = vmatmul.mubr.bf16.gmra.mrb[0].mxu0 %v3645
      %v3887 = vpop.f32.mrb[0].mxu0
      %v3888 = vadd.f32 %v3686, %v3887
      %v3889 = vpop.f32.mrb[0].mxu0
      %v3890 = vadd.f32 %v3690, %v3889
      %v3891 = vpop.f32.mrb[0].mxu0
      %v3892 = vadd.f32 %v3686, %v3891
      %v3893 = vpop.f32.mrb[0].mxu0
      %v3894 = vadd.f32 %v3690, %v3893
      %3895 = vmatprep.mubr.bf16.mxu0 %v3648
      %3896 = vmatmul.mubr.bf16.gmra.mrb[0].mxu0 %v3647
      %v3897 = vpop.f32.mrb[0].mxu0
      %v3898 = vadd.f32 %v3686, %v3897
      %v3899 = vpop.f32.mrb[0].mxu0
      %v3900 = vadd.f32 %v3690, %v3899
      %v3901 = vpop.f32.mrb[0].mxu0
      %v3902 = vadd.f32 %v3686, %v3901
      %v3903 = vpop.f32.mrb[0].mxu0
      %v3904 = vadd.f32 %v3690, %v3903
      %3905 = vdwg.mxu0
      %v3906 = vpack.c.bf16 %v713, %v712
      %v3907 = vpack.c.bf16 %v715, %v714
      %v3908 = vld [vmem:[%s17] sm:$0xff]
      %v3909 = vld [vmem:[%s17 + $0x8] sm:$0xff]
      %v3910 = vld [vmem:[%s17 + $0x10] sm:$0xff]
      %v3911 = vld [vmem:[%s17 + $0x18] sm:$0xff]
      %v3912 = vld [vmem:[%s18] sm:$0x3]
      %v3914 = vlaneseq
      %v3915 = vshrl.u32 %v3914, 7
      %v3916 = vsub.s32 0, %v3915
      %v3917 = vrot.slane %v3912, %v3916
      %v3918 = vlaneseq
      %v3919 = vshrl.u32 %v3918, 7
      %v3920 = vsub.s32 1, %v3919
      %v3921 = vrot.slane %v3912, %v3920
      %v3928 = vunpack.c.l.b16 %v3908
      %v3929 = vunpack.c.h.b16 %v3908
      %v3930 = vunpack.c.l.b16 %v3909
      %v3931 = vunpack.c.h.b16 %v3909
      %v3932 = vunpack.c.l.b16 %v3910
      %v3933 = vunpack.c.h.b16 %v3910
      %v3934 = vunpack.c.l.b16 %v3911
      %v3935 = vunpack.c.h.b16 %v3911
      %v3936 = vpack.c.b16 %v3930, %v3928
      %v3937 = vpack.c.b16 %v3931, %v3929
      %v3938 = vpack.c.b16 %v3934, %v3932
      %v3939 = vpack.c.b16 %v3935, %v3933
      %v3945 = vsel %vm720, %v3906, 0
      %v3948 = vsel %vm720, %v3907, 0
      %3950 = vmatprep.subr.bf16.mxu0 %v3937
      %3951 = vmatpush1.bf16.msra.mxu0 %v3936
      %3952 = vmatprep.subr.bf16.mxu0 %v3939
      %3953 = vmatpush1.bf16.msra.mxu0 %v3938
      %3954 = vmatprep.subr.bf16.mxu0 0
      %3955 = vmatpush1.bf16.msra.mxu0 0
      %3956 = vmatprep.subr.bf16.mxu0 0
      %3957 = vmatpush1.bf16.msra.mxu0 0
      %3958 = vmatprep.subr.bf16.mxu0 0
      %3959 = vmatpush1.bf16.msra.mxu0 0
      %3960 = vmatprep.subr.bf16.mxu0 0
      %3961 = vmatpush1.bf16.msra.mxu0 0
      %3962 = vmatprep.subr.bf16.mxu0 0
      %3963 = vmatpush1.bf16.msra.mxu0 0
      %3964 = vmatprep.subr.bf16.mxu0 0
      %3965 = vmatpush1.bf16.msra.mxu0 0
      %3966 = vmatprep.subr.bf16.mxu0 0
      %3967 = vmatpush1.bf16.msra.mxu0 0
      %3968 = vmatprep.subr.bf16.mxu0 0
      %3969 = vmatpush1.bf16.msra.mxu0 0
      %3970 = vmatprep.subr.bf16.mxu0 0
      %3971 = vmatpush1.bf16.msra.mxu0 0
      %3972 = vmatprep.subr.bf16.mxu0 0
      %3973 = vmatpush1.bf16.msra.mxu0 0
      %3974 = vmatprep.subr.bf16.mxu0 0
      %3975 = vmatpush1.bf16.msra.mxu0 0
      %3976 = vmatprep.subr.bf16.mxu0 0
      %3977 = vmatpush1.bf16.msra.mxu0 0
      %3978 = vmatprep.subr.bf16.mxu0 0
      %3979 = vmatpush1.bf16.msra.mxu0 0
      %3980 = vmatprep.subr.bf16.mxu0 0
      %3981 = vmatpush1.bf16.msra.mxu0 0
      %3982 = vmatprep.mubr.bf16.mxu0 0
      %3983 = vmatmul.mubr.bf16.gmra.mrb[0].mxu0 %v3945
      %v3984 = vpop.f32.mrb[0].mxu0
      %v3985 = vadd.f32 %v3917, %v3984
      %v3986 = vpop.f32.mrb[0].mxu0
      %v3987 = vadd.f32 %v3921, %v3986
      %v3988 = vpop.f32.mrb[0].mxu0
      %v3989 = vadd.f32 %v3917, %v3988
      %v3990 = vpop.f32.mrb[0].mxu0
      %v3991 = vadd.f32 %v3921, %v3990
      %3992 = vmatprep.mubr.bf16.mxu0 0
      %3993 = vmatmul.mubr.bf16.gmra.mrb[0].mxu0 %v3948
      %v3994 = vpop.f32.mrb[0].mxu0
      %v3995 = vadd.f32 %v3917, %v3994
      %v3996 = vpop.f32.mrb[0].mxu0
      %v3997 = vadd.f32 %v3921, %v3996
      %v3998 = vpop.f32.mrb[0].mxu0
      %v3999 = vadd.f32 %v3917, %v3998
      %v4000 = vpop.f32.mrb[0].mxu0
      %v4001 = vadd.f32 %v3921, %v4000
      %4002 = vdwg.mxu0
      %v4003 = vadd.f32 %v3888, %v3985
      %v4004 = vadd.f32 %v3890, %v3987
      %v4005 = vadd.f32 %v3892, %v3989
      %v4006 = vadd.f32 %v3894, %v3991
      %v4007 = vadd.f32 %v3898, %v3995
      %v4008 = vadd.f32 %v3900, %v3997
      %v4009 = vadd.f32 %v3902, %v3999
      %v4010 = vadd.f32 %v3904, %v4001
      %v4011 = vmax.f32 %v4003, 0.0
      %v4012 = vmax.f32 %v4004, 0.0
      %v4013 = vmax.f32 %v4005, 0.0
      %v4014 = vmax.f32 %v4006, 0.0
      %v4015 = vmax.f32 %v4007, 0.0
      %v4016 = vmax.f32 %v4008, 0.0
      %v4017 = vmax.f32 %v4009, 0.0
      %v4018 = vmax.f32 %v4010, 0.0
      %v4019 = vld [vmem:[%s19] sm:$0xff]
      %v4020 = vld [vmem:[%s19 + $0x8] sm:$0xff]
      %v4021 = vld [vmem:[%s19 + $0x10] sm:$0xff]
      %v4022 = vld [vmem:[%s19 + $0x18] sm:$0xff]
      %v4023 = vld [vmem:[%s19 + $0x20] sm:$0xff]
      %v4024 = vld [vmem:[%s19 + $0x28] sm:$0xff]
      %v4025 = vld [vmem:[%s19 + $0x30] sm:$0xff]
      %v4026 = vld [vmem:[%s19 + $0x38] sm:$0xff]
      %v4027 = vld [vmem:[%s19 + $0x40] sm:$0xff]
      %v4028 = vld [vmem:[%s19 + $0x48] sm:$0xff]
      %v4029 = vld [vmem:[%s19 + $0x50] sm:$0xff]
      %v4030 = vld [vmem:[%s19 + $0x58] sm:$0xff]
      %v4031 = vld [vmem:[%s19 + $0x60] sm:$0xff]
      %v4032 = vld [vmem:[%s19 + $0x68] sm:$0xff]
      %v4033 = vld [vmem:[%s19 + $0x70] sm:$0xff]
      %v4034 = vld [vmem:[%s19 + $0x78] sm:$0xff]
      %v4035 = vld [vmem:[%s19 + $0x80] sm:$0xff]
      %v4036 = vld [vmem:[%s19 + $0x88] sm:$0xff]
      %v4037 = vld [vmem:[%s19 + $0x90] sm:$0xff]
      %v4038 = vld [vmem:[%s19 + $0x98] sm:$0xff]
      %v4039 = vld [vmem:[%s19 + $0xa0] sm:$0xff]
      %v4040 = vld [vmem:[%s19 + $0xa8] sm:$0xff]
      %v4041 = vld [vmem:[%s19 + $0xb0] sm:$0xff]
      %v4042 = vld [vmem:[%s19 + $0xb8] sm:$0xff]
      %v4043 = vld [vmem:[%s19 + $0xc0] sm:$0xff]
      %v4044 = vld [vmem:[%s19 + $0xc8] sm:$0xff]
      %v4045 = vld [vmem:[%s19 + $0xd0] sm:$0xff]
      %v4046 = vld [vmem:[%s19 + $0xd8] sm:$0xff]
      %v4047 = vld [vmem:[%s19 + $0xe0] sm:$0xff]
      %v4048 = vld [vmem:[%s19 + $0xe8] sm:$0xff]
      %v4049 = vld [vmem:[%s19 + $0xf0] sm:$0xff]
      %v4050 = vld [vmem:[%s19 + $0xf8] sm:$0xff]
      %v4051 = vld [vmem:[%s19 + $0x100] sm:$0xff]
      %v4052 = vld [vmem:[%s19 + $0x108] sm:$0xff]
      %v4053 = vld [vmem:[%s19 + $0x110] sm:$0xff]
      %v4054 = vld [vmem:[%s19 + $0x118] sm:$0xff]
      %v4055 = vld [vmem:[%s19 + $0x120] sm:$0xff]
      %v4056 = vld [vmem:[%s19 + $0x128] sm:$0xff]
      %v4057 = vld [vmem:[%s19 + $0x130] sm:$0xff]
      %v4058 = vld [vmem:[%s19 + $0x138] sm:$0xff]
      %v4059 = vld [vmem:[%s19 + $0x140] sm:$0xff]
      %v4060 = vld [vmem:[%s19 + $0x148] sm:$0xff]
      %v4061 = vld [vmem:[%s19 + $0x150] sm:$0xff]
      %v4062 = vld [vmem:[%s19 + $0x158] sm:$0xff]
      %v4063 = vld [vmem:[%s19 + $0x160] sm:$0xff]
      %v4064 = vld [vmem:[%s19 + $0x168] sm:$0xff]
      %v4065 = vld [vmem:[%s19 + $0x170] sm:$0xff]
      %v4066 = vld [vmem:[%s19 + $0x178] sm:$0xff]
      %v4067 = vld [vmem:[%s19 + $0x180] sm:$0xff]
      %v4068 = vld [vmem:[%s19 + $0x188] sm:$0xff]
      %v4069 = vld [vmem:[%s19 + $0x190] sm:$0xff]
      %v4070 = vld [vmem:[%s19 + $0x198] sm:$0xff]
      %v4071 = vld [vmem:[%s19 + $0x1a0] sm:$0xff]
      %v4072 = vld [vmem:[%s19 + $0x1a8] sm:$0xff]
      %v4073 = vld [vmem:[%s19 + $0x1b0] sm:$0xff]
      %v4074 = vld [vmem:[%s19 + $0x1b8] sm:$0xff]
      %v4075 = vld [vmem:[%s19 + $0x1c0] sm:$0xff]
      %v4076 = vld [vmem:[%s19 + $0x1c8] sm:$0xff]
      %v4077 = vld [vmem:[%s19 + $0x1d0] sm:$0xff]
      %v4078 = vld [vmem:[%s19 + $0x1d8] sm:$0xff]
      %v4079 = vld [vmem:[%s19 + $0x1e0] sm:$0xff]
      %v4080 = vld [vmem:[%s19 + $0x1e8] sm:$0xff]
      %v4081 = vld [vmem:[%s19 + $0x1f0] sm:$0xff]
      %v4082 = vld [vmem:[%s19 + $0x1f8] sm:$0xff]
      %4083 = vmatprep.subr.mxu0 %v4020
      %4084 = vmatpush1.msra.mxu0 %v4019
      %4085 = vmatprep.subr.mxu0 %v4022
      %4086 = vmatpush1.msra.mxu0 %v4021
      %4087 = vmatprep.subr.mxu0 %v4024
      %4088 = vmatpush1.msra.mxu0 %v4023
      %4089 = vmatprep.subr.mxu0 %v4026
      %4090 = vmatpush1.msra.mxu0 %v4025
      %4091 = vmatprep.subr.mxu0 %v4028
      %4092 = vmatpush1.msra.mxu0 %v4027
      %4093 = vmatprep.subr.mxu0 %v4030
      %4094 = vmatpush1.msra.mxu0 %v4029
      %4095 = vmatprep.subr.mxu0 %v4032
      %4096 = vmatpush1.msra.mxu0 %v4031
      %4097 = vmatprep.subr.mxu0 %v4034
      %4098 = vmatpush1.msra.mxu0 %v4033
      %4099 = vmatprep.subr.mxu0 %v4036
      %4100 = vmatpush1.msra.mxu0 %v4035
      %4101 = vmatprep.subr.mxu0 %v4038
      %4102 = vmatpush1.msra.mxu0 %v4037
      %4103 = vmatprep.subr.mxu0 %v4040
      %4104 = vmatpush1.msra.mxu0 %v4039
      %4105 = vmatprep.subr.mxu0 %v4042
      %4106 = vmatpush1.msra.mxu0 %v4041
      %4107 = vmatprep.subr.mxu0 %v4044
      %4108 = vmatpush1.msra.mxu0 %v4043
      %4109 = vmatprep.subr.mxu0 %v4046
      %4110 = vmatpush1.msra.mxu0 %v4045
      %4111 = vmatprep.subr.mxu0 %v4048
      %4112 = vmatpush1.msra.mxu0 %v4047
      %4113 = vmatprep.subr.mxu0 %v4050
      %4114 = vmatpush1.msra.mxu0 %v4049
      %4115 = vmatprep.subr.mxu0 %v4052
      %4116 = vmatpush1.msra.mxu0 %v4051
      %4117 = vmatprep.subr.mxu0 %v4054
      %4118 = vmatpush1.msra.mxu0 %v4053
      %4119 = vmatprep.subr.mxu0 %v4056
      %4120 = vmatpush1.msra.mxu0 %v4055
      %4121 = vmatprep.subr.mxu0 %v4058
      %4122 = vmatpush1.msra.mxu0 %v4057
      %4123 = vmatprep.subr.mxu0 %v4060
      %4124 = vmatpush1.msra.mxu0 %v4059
      %4125 = vmatprep.subr.mxu0 %v4062
      %4126 = vmatpush1.msra.mxu0 %v4061
      %4127 = vmatprep.subr.mxu0 %v4064
      %4128 = vmatpush1.msra.mxu0 %v4063
      %4129 = vmatprep.subr.mxu0 %v4066
      %4130 = vmatpush1.msra.mxu0 %v4065
      %4131 = vmatprep.subr.mxu0 %v4068
      %4132 = vmatpush1.msra.mxu0 %v4067
      %4133 = vmatprep.subr.mxu0 %v4070
      %4134 = vmatpush1.msra.mxu0 %v4069
      %4135 = vmatprep.subr.mxu0 %v4072
      %4136 = vmatpush1.msra.mxu0 %v4071
      %4137 = vmatprep.subr.mxu0 %v4074
      %4138 = vmatpush1.msra.mxu0 %v4073
      %4139 = vmatprep.subr.mxu0 %v4076
      %4140 = vmatpush1.msra.mxu0 %v4075
      %4141 = vmatprep.subr.mxu0 %v4078
      %4142 = vmatpush1.msra.mxu0 %v4077
      %4143 = vmatprep.subr.mxu0 %v4080
      %4144 = vmatpush1.msra.mxu0 %v4079
      %4145 = vmatprep.subr.mxu0 %v4082
      %4146 = vmatpush1.msra.mxu0 %v4081
      %4147 = vmatprep.mubr.f32.mxu0 %v4012
      %4148 = vmatmul.mubr.f32.gmra.mrb[0].mxu0 %v4011
      %v4149 = vpop.f32.mrb[0].mxu0
      %v4150 = vadd.f32 0.0, %v4149
      %v4151 = vpop.f32.mrb[0].mxu0
      %v4152 = vadd.f32 0.0, %v4151
      %4153 = vmatprep.mubr.f32.mxu0 %v4014
      %4154 = vmatmul.mubr.f32.gmra.mrb[0].mxu0 %v4013
      %v4155 = vpop.f32.mrb[0].mxu0
      %v4156 = vadd.f32 0.0, %v4155
      %v4157 = vpop.f32.mrb[0].mxu0
      %v4158 = vadd.f32 0.0, %v4157
      %4159 = vmatprep.mubr.f32.mxu0 %v4016
      %4160 = vmatmul.mubr.f32.gmra.mrb[0].mxu0 %v4015
      %v4161 = vpop.f32.mrb[0].mxu0
      %v4162 = vadd.f32 0.0, %v4161
      %v4163 = vpop.f32.mrb[0].mxu0
      %v4164 = vadd.f32 0.0, %v4163
      %4165 = vmatprep.mubr.f32.mxu0 %v4018
      %4166 = vmatmul.mubr.f32.gmra.mrb[0].mxu0 %v4017
      %v4167 = vpop.f32.mrb[0].mxu0
      %v4168 = vadd.f32 0.0, %v4167
      %v4169 = vpop.f32.mrb[0].mxu0
      %v4170 = vadd.f32 0.0, %v4169
      %4171 = vdwg.mxu0
      %v4172 = vmul.f32 %v4011, %v4011
      %v4173 = vmul.f32 %v4012, %v4012
      %v4174 = vmul.f32 %v4013, %v4013
      %v4175 = vmul.f32 %v4014, %v4014
      %v4176 = vmul.f32 %v4015, %v4015
      %v4177 = vmul.f32 %v4016, %v4016
      %v4178 = vmul.f32 %v4017, %v4017
      %v4179 = vmul.f32 %v4018, %v4018
      %4180 = vmatprep.subr.mxu0 %v4020
      %4181 = vmatpush1.msra.mxu0 %v4019
      %4182 = vmatprep.subr.mxu0 %v4022
      %4183 = vmatpush1.msra.mxu0 %v4021
      %4184 = vmatprep.subr.mxu0 %v4024
      %4185 = vmatpush1.msra.mxu0 %v4023
      %4186 = vmatprep.subr.mxu0 %v4026
      %4187 = vmatpush1.msra.mxu0 %v4025
      %4188 = vmatprep.subr.mxu0 %v4028
      %4189 = vmatpush1.msra.mxu0 %v4027
      %4190 = vmatprep.subr.mxu0 %v4030
      %4191 = vmatpush1.msra.mxu0 %v4029
      %4192 = vmatprep.subr.mxu0 %v4032
      %4193 = vmatpush1.msra.mxu0 %v4031
      %4194 = vmatprep.subr.mxu0 %v4034
      %4195 = vmatpush1.msra.mxu0 %v4033
      %4196 = vmatprep.subr.mxu0 %v4036
      %4197 = vmatpush1.msra.mxu0 %v4035
      %4198 = vmatprep.subr.mxu0 %v4038
      %4199 = vmatpush1.msra.mxu0 %v4037
      %4200 = vmatprep.subr.mxu0 %v4040
      %4201 = vmatpush1.msra.mxu0 %v4039
      %4202 = vmatprep.subr.mxu0 %v4042
      %4203 = vmatpush1.msra.mxu0 %v4041
      %4204 = vmatprep.subr.mxu0 %v4044
      %4205 = vmatpush1.msra.mxu0 %v4043
      %4206 = vmatprep.subr.mxu0 %v4046
      %4207 = vmatpush1.msra.mxu0 %v4045
      %4208 = vmatprep.subr.mxu0 %v4048
      %4209 = vmatpush1.msra.mxu0 %v4047
      %4210 = vmatprep.subr.mxu0 %v4050
      %4211 = vmatpush1.msra.mxu0 %v4049
      %4212 = vmatprep.subr.mxu0 %v4052
      %4213 = vmatpush1.msra.mxu0 %v4051
      %4214 = vmatprep.subr.mxu0 %v4054
      %4215 = vmatpush1.msra.mxu0 %v4053
      %4216 = vmatprep.subr.mxu0 %v4056
      %4217 = vmatpush1.msra.mxu0 %v4055
      %4218 = vmatprep.subr.mxu0 %v4058
      %4219 = vmatpush1.msra.mxu0 %v4057
      %4220 = vmatprep.subr.mxu0 %v4060
      %4221 = vmatpush1.msra.mxu0 %v4059
      %4222 = vmatprep.subr.mxu0 %v4062
      %4223 = vmatpush1.msra.mxu0 %v4061
      %4224 = vmatprep.subr.mxu0 %v4064
      %4225 = vmatpush1.msra.mxu0 %v4063
      %4226 = vmatprep.subr.mxu0 %v4066
      %4227 = vmatpush1.msra.mxu0 %v4065
      %4228 = vmatprep.subr.mxu0 %v4068
      %4229 = vmatpush1.msra.mxu0 %v4067
      %4230 = vmatprep.subr.mxu0 %v4070
      %4231 = vmatpush1.msra.mxu0 %v4069
      %4232 = vmatprep.subr.mxu0 %v4072
      %4233 = vmatpush1.msra.mxu0 %v4071
      %4234 = vmatprep.subr.mxu0 %v4074
      %4235 = vmatpush1.msra.mxu0 %v4073
      %4236 = vmatprep.subr.mxu0 %v4076
      %4237 = vmatpush1.msra.mxu0 %v4075
      %4238 = vmatprep.subr.mxu0 %v4078
      %4239 = vmatpush1.msra.mxu0 %v4077
      %4240 = vmatprep.subr.mxu0 %v4080
      %4241 = vmatpush1.msra.mxu0 %v4079
      %4242 = vmatprep.subr.mxu0 %v4082
      %4243 = vmatpush1.msra.mxu0 %v4081
      %4244 = vmatprep.mubr.f32.mxu0 %v4173
      %4245 = vmatmul.mubr.f32.gmra.mrb[0].mxu0 %v4172
      %v4246 = vpop.f32.mrb[0].mxu0
      %v4247 = vadd.f32 0.0, %v4246
      %v4248 = vpop.f32.mrb[0].mxu0
      %v4249 = vadd.f32 0.0, %v4248
      %4250 = vmatprep.mubr.f32.mxu0 %v4175
      %4251 = vmatmul.mubr.f32.gmra.mrb[0].mxu0 %v4174
      %v4252 = vpop.f32.mrb[0].mxu0
      %v4253 = vadd.f32 0.0, %v4252
      %v4254 = vpop.f32.mrb[0].mxu0
      %v4255 = vadd.f32 0.0, %v4254
      %4256 = vmatprep.mubr.f32.mxu0 %v4177
      %4257 = vmatmul.mubr.f32.gmra.mrb[0].mxu0 %v4176
      %v4258 = vpop.f32.mrb[0].mxu0
      %v4259 = vadd.f32 0.0, %v4258
      %v4260 = vpop.f32.mrb[0].mxu0
      %v4261 = vadd.f32 0.0, %v4260
      %4262 = vmatprep.mubr.f32.mxu0 %v4179
      %4263 = vmatmul.mubr.f32.gmra.mrb[0].mxu0 %v4178
      %v4264 = vpop.f32.mrb[0].mxu0
      %v4265 = vadd.f32 0.0, %v4264
      %v4266 = vpop.f32.mrb[0].mxu0
      %v4267 = vadd.f32 0.0, %v4266
      %4268 = vdwg.mxu0
      %v4269 = vmul.f32 %v4150, %v4150
      %v4270 = vmul.f32 %v4152, %v4152
      %v4271 = vmul.f32 %v4156, %v4156
      %v4272 = vmul.f32 %v4158, %v4158
      %v4273 = vmul.f32 %v4162, %v4162
      %v4274 = vmul.f32 %v4164, %v4164
      %v4275 = vmul.f32 %v4168, %v4168
      %v4276 = vmul.f32 %v4170, %v4170
      %v4277 = vsub.f32 %v4247, %v4269
      %v4278 = vsub.f32 %v4249, %v4270
      %v4279 = vsub.f32 %v4253, %v4271
      %v4280 = vsub.f32 %v4255, %v4272
      %v4281 = vsub.f32 %v4259, %v4273
      %v4282 = vsub.f32 %v4261, %v4274
      %v4283 = vsub.f32 %v4265, %v4275
      %v4284 = vsub.f32 %v4267, %v4276
      %v4285 = vadd.f32 %v4277, 1e-05
      %v4286 = vadd.f32 %v4278, 1e-05
      %v4287 = vadd.f32 %v4279, 1e-05
      %v4288 = vadd.f32 %v4280, 1e-05
      %v4289 = vadd.f32 %v4281, 1e-05
      %v4290 = vadd.f32 %v4282, 1e-05
      %v4291 = vadd.f32 %v4283, 1e-05
      %v4292 = vadd.f32 %v4284, 1e-05
      %v4293 = vrsqrt.pop %v4285
      %v4294 = vrsqrt.pop %v4286
      %v4295 = vrsqrt.pop %v4287
      %v4296 = vrsqrt.pop %v4288
      %v4297 = vrsqrt.pop %v4289
      %v4298 = vrsqrt.pop %v4290
      %v4299 = vrsqrt.pop %v4291
      %v4300 = vrsqrt.pop %v4292
      %v4301 = vsub.f32 %v4011, %v4150
      %v4302 = vsub.f32 %v4012, %v4152
      %v4303 = vsub.f32 %v4013, %v4156
      %v4304 = vsub.f32 %v4014, %v4158
      %v4305 = vsub.f32 %v4015, %v4162
      %v4306 = vsub.f32 %v4016, %v4164
      %v4307 = vsub.f32 %v4017, %v4168
      %v4308 = vsub.f32 %v4018, %v4170
      %v4309 = vmul.f32 %v4301, %v4293
      %v4310 = vmul.f32 %v4302, %v4294
      %v4311 = vmul.f32 %v4303, %v4295
      %v4312 = vmul.f32 %v4304, %v4296
      %v4313 = vmul.f32 %v4305, %v4297
      %v4314 = vmul.f32 %v4306, %v4298
      %v4315 = vmul.f32 %v4307, %v4299
      %v4316 = vmul.f32 %v4308, %v4300
      %v4317 = vld [vmem:[%s20] sm:$0x3]
      %v4319 = vlaneseq
      %v4320 = vshrl.u32 %v4319, 7
      %v4321 = vsub.s32 0, %v4320
      %v4322 = vrot.slane %v4317, %v4321
      %v4323 = vlaneseq
      %v4324 = vshrl.u32 %v4323, 7
      %v4325 = vsub.s32 1, %v4324
      %v4326 = vrot.slane %v4317, %v4325
      %v4329 = vmul.f32 %v4309, %v4322
      %v4330 = vmul.f32 %v4310, %v4326
      %v4331 = vmul.f32 %v4311, %v4322
      %v4332 = vmul.f32 %v4312, %v4326
      %v4333 = vmul.f32 %v4313, %v4322
      %v4334 = vmul.f32 %v4314, %v4326
      %v4335 = vmul.f32 %v4315, %v4322
      %v4336 = vmul.f32 %v4316, %v4326
      %v4337 = vld [vmem:[%s21] sm:$0x3]
      %v4339 = vlaneseq
      %v4340 = vshrl.u32 %v4339, 7
      %v4341 = vsub.s32 0, %v4340
      %v4342 = vrot.slane %v4337, %v4341
      %v4343 = vlaneseq
      %v4344 = vshrl.u32 %v4343, 7
      %v4345 = vsub.s32 1, %v4344
      %v4346 = vrot.slane %v4337, %v4345
      %v4349 = vadd.f32 %v4329, %v4342
      %v4350 = vadd.f32 %v4330, %v4346
      %v4351 = vadd.f32 %v4331, %v4342
      %v4352 = vadd.f32 %v4332, %v4346
      %v4353 = vadd.f32 %v4333, %v4342
      %v4354 = vadd.f32 %v4334, %v4346
      %v4355 = vadd.f32 %v4335, %v4342
      %v4356 = vadd.f32 %v4336, %v4346
      %4357 = vst [vmem:[%s709] sm:$0xff] %v4349
      %4358 = vst [vmem:[%s709 + $0x8] sm:$0xff] %v4350
      %4359 = vst [vmem:[%s709 + $0x10] sm:$0xff] %v4351
      %4360 = vst [vmem:[%s709 + $0x18] sm:$0xff] %v4352
      %4361 = vst [vmem:[%s709 + $0x20] sm:$0xff] %v4353
      %4362 = vst [vmem:[%s709 + $0x28] sm:$0xff] %v4354
      %4363 = vst [vmem:[%s709 + $0x30] sm:$0xff] %v4355
      %4364 = vst [vmem:[%s709 + $0x38] sm:$0xff] %v4356
      %s4365 = smul.u32 4, %s33
      %p4366 = scmp.lt.s32.totalorder %s4365, 7
      %s4367 = scalar_select %p4366, %s4365, 7
      %s4368 = smul.addr %s4367, 2
      %s4369 = smul.addr %s4368, 8
      %s4370 = scalar_lea.vmem %s22, %s4369
      // Predicated region
      $region109: #{astgcn_block_forward.1} parent=107 // pred_check
        %p4371 = pneg %p523
      $region110: #{astgcn_block_forward.1} parent=107 // pred_check_branch
        %4373 = sbr.rel (%p4371) target = $region112
      $region111: #{astgcn_block_forward.1} parent=107 // pred_region
        %s4374 = smul.u32 4, %s33
      $region112: #{astgcn_block_forward.1} parent=107 // pred_fallthru
        _
    $region108: #{astgcn_block_forward.1} parent=5 // pred_fallthru
      _
    %p4375 = scmp.le.s32.totalorder 2, %s28
    // Predicated region
    $region113: #{astgcn_block_forward.1} parent=5 // pred_check
      %p4376 = pneg %p4375
    $region114: #{astgcn_block_forward.1} parent=5 // pred_check_branch
      %4378 = sbr.rel (%p4376) target = $region116
    $region115: #{astgcn_block_forward.1} parent=5 // pred_region
      %s4379 = ssub.s32 %s28, 2
      // Predicated region
      $region117: #{astgcn_block_forward.1} parent=115 // pred_check
        %p4380 = pneg %p529
      $region118: #{astgcn_block_forward.1} parent=115 // pred_check_branch
        %4382 = sbr.rel (%p4380) target = $region120
      $region119: #{astgcn_block_forward.1} parent=115 // pred_region
        %s4383 = smul.u32 4, %s34
        %p4384 = scmp.lt.s32.totalorder %s4383, 7
        %s4385 = scalar_select %p4384, %s4383, 7
        %s4386 = smul.addr %s4385, 2
        %s4387 = smul.addr %s4386, 8
        %s4388 = scalar_lea.vmem %s22, %s4387
      $region120: #{astgcn_block_forward.1} parent=115 // pred_fallthru
        _
    $region116: #{astgcn_block_forward.1} parent=5 // pred_fallthru
      _
  $region6: #{astgcn_block_forward.1} parent=0 // loop_footer
    %s32 = sadd.s32 1, %s28
  $region7: #{astgcn_block_forward.1} parent=0 // loop_footer_branch
    %27 = sbr.rel target = $region3
  $region8: #{astgcn_block_forward.1} parent=0 // loop_exit
    _

</llo_original>
